<compile_context>
chip_gen: v5e
topology: v5e:2x2
jax: 0.10.0
libtpu: 0.0.40
codegen_flags: <defaults>
</compile_context>

<pallas_src>
from functools import partial

import jax
import jax.numpy as jnp
from jax import lax
from jax.experimental import pallas as pl
from jax.experimental.pallas import tpu as pltpu


GATE_LANES = 128                      # one full lane-tile per gate
PACK_LANES = 4 * GATE_LANES           # 512 lanes for gate-fused weights
# Fixed row offsets inside the packed weight slab (every matrix is row-padded
# to 128, so the layout is independent of the model's hidden sizes).
_R_E2G_C = 0        # one-hot char id -> char-LSTM gate pre-activations
_R_WHH_C = 128      # char-LSTM recurrent weights
_R_E2G_W = 256      # one-hot word id -> word-LSTM gate pre-activations
_R_WIH_CH = 384     # char feature    -> word-LSTM gate pre-activations
_R_WHH_W = 512      # word-LSTM recurrent weights
_R_WTAG = 640       # hidden2tag weights (lanes [0, tagset_size))
_R_BIAS = 768       # row 768: b_c, row 769: b_w, row 770: b_tag(-1e30 pads)
_PACK_ROWS = 776


# ---------------------------------------------------------------------------
# One-time parameter packing (plain JAX, outside the hot path).
# ---------------------------------------------------------------------------
def _gate_pad(w, h):
    """[in, 4*h] (i,f,g,o) -> [in, 4*128] with gate g at lanes [g*128, g*128+h)."""
    out = jnp.zeros((w.shape[0], PACK_LANES), jnp.float32)
    for g in range(4):
        out = out.at[:, g * GATE_LANES:g * GATE_LANES + h].set(
            w[:, g * h:(g + 1) * h])
    return out


def _row_pad(w, rows=GATE_LANES):
    return jnp.pad(w, ((0, rows - w.shape[0]), (0, 0)))


def pack_params(params):
    """Pack all weights/biases/embedding tables into one (776, 512) f32 slab."""
    e_w = params["word_emb"].shape[1]
    h_c = params["whh_c"].shape[0]
    h_w = params["whh_w"].shape[0]
    t_sz = params["w_tag"].shape[1]
    assert params["char_emb"].shape[0] <= GATE_LANES, "char vocab must be <= 128"
    assert params["word_emb"].shape[0] <= GATE_LANES, "word vocab must be <= 128"
    assert h_c <= GATE_LANES and h_w <= GATE_LANES and t_sz <= GATE_LANES

    hi = jax.lax.Precision.HIGHEST
    # Fold the embedding gather into the input projection:
    #   one_hot(id) @ (emb_table @ W_ih)  ==  emb_table[id] @ W_ih
    e2g_c = jnp.dot(_row_pad(params["char_emb"]),
                    _gate_pad(params["wih_c"], h_c), precision=hi)
    e2g_w = jnp.dot(_row_pad(params["word_emb"]),
                    _gate_pad(params["wih_w"][:e_w], h_w), precision=hi)
    whh_c = _row_pad(_gate_pad(params["whh_c"], h_c))
    wih_ch = _row_pad(_gate_pad(params["wih_w"][e_w:], h_w))
    whh_w = _row_pad(_gate_pad(params["whh_w"], h_w))
    wtag = jnp.pad(params["w_tag"],
                   ((0, GATE_LANES - h_w), (0, PACK_LANES - t_sz)))
    bias = jnp.zeros((8, PACK_LANES), jnp.float32)
    bias = bias.at[0:1, :].set(_gate_pad(params["b_c"], h_c))
    bias = bias.at[1:2, :].set(_gate_pad(params["b_w"], h_w))
    bias = bias.at[2, :].set(-1e30)                      # tag pad lanes vanish
    bias = bias.at[2, :t_sz].set(params["b_tag"][0])     # under log_softmax

    packed = jnp.concatenate(
        [e2g_c, whh_c, e2g_w, wih_ch, whh_w, wtag, bias], axis=0)
    assert packed.shape == (_PACK_ROWS, PACK_LANES)
    return packed, t_sz


# ---------------------------------------------------------------------------
# Fused tagger kernel (grid-less: total working set ~1.7 MiB, fully VMEM
# resident; pipelining machinery would be pure overhead).
# ---------------------------------------------------------------------------
def _tagger_kernel(ints_ref, w_ref, out_ref, xwc_scr, xww_scr):
    sp = out_ref.shape[0]            # padded sentence length (sublanes)
    l_sp = xwc_scr.shape[0]          # l_max * sp
    l_max = l_sp // sp
    f32 = jnp.float32

    # ---- integer side-car: time-major char ids, word ids, char lengths ----
    cid = ints_ref[pl.ds(0, l_sp), :]                 # (L*Sp, 1)
    wid = ints_ref[pl.ds(l_sp, sp), :]                # (Sp, 1)
    lens = ints_ref[pl.ds(l_sp + sp, sp), :]          # (Sp, 1)

    # In-kernel embedding gather as one-hot matmuls (vocab <= 128).
    onehot_c = (cid == lax.broadcasted_iota(
        jnp.int32, (l_sp, GATE_LANES), 1)).astype(f32)
    onehot_w = (wid == lax.broadcasted_iota(
        jnp.int32, (sp, GATE_LANES), 1)).astype(f32)

    # ---- char LSTM: hoisted input projection for ALL (t, word) rows -------
    xwc_scr[...] = (jnp.dot(onehot_c, w_ref[pl.ds(_R_E2G_C, 128), :],
                            preferred_element_type=f32)
                    + w_ref[pl.ds(_R_BIAS + 0, 1), :])

    def lstm_gates(gates):
        # Whole-vreg static gate views (per-gate 128-lane blocks).
        i = jax.nn.sigmoid(gates[:, 0 * GATE_LANES:1 * GATE_LANES])
        f = jax.nn.sigmoid(gates[:, 1 * GATE_LANES:2 * GATE_LANES])
        g = jnp.tanh(gates[:, 2 * GATE_LANES:3 * GATE_LANES])
        o = jax.nn.sigmoid(gates[:, 3 * GATE_LANES:4 * GATE_LANES])
        return i, f, g, o

    # All words batched on the sublane axis; validity from char lengths.
    def char_step(t, carry):
        h, c = carry                                   # (Sp, 128) lane-padded
        row = pl.multiple_of(t * sp, sp)
        gates = xwc_scr[pl.ds(row, sp), :] + jnp.dot(
            h, w_ref[pl.ds(_R_WHH_C, 128), :], preferred_element_type=f32)
        i, f, g, o = lstm_gates(gates)
        c_new = f * c + i * g
        h_new = o * jnp.tanh(c_new)
        valid = t < lens                               # (Sp, 1) bool
        return jnp.where(valid, h_new, h), jnp.where(valid, c_new, c)

    zeros = jnp.zeros((sp, GATE_LANES), f32)
    char_feat, _ = lax.fori_loop(0, l_max, char_step, (zeros, zeros),
                                 unroll=True)

    # ---- word LSTM: hoisted input projection (word emb + char feature) ----
    xww_scr[...] = (
        jnp.dot(onehot_w, w_ref[pl.ds(_R_E2G_W, 128), :],
                preferred_element_type=f32)
        + jnp.dot(char_feat, w_ref[pl.ds(_R_WIH_CH, 128), :],
                  preferred_element_type=f32)
        + w_ref[pl.ds(_R_BIAS + 1, 1), :])             # (Sp, 512)

    # Unrolled word recurrence; hidden rows kept in registers and stacked
    # once (no per-step single-sublane stores).  Runs all Sp padded steps so
    # nothing depends on the real sentence length (pad rows are sliced off).
    h = jnp.zeros((1, GATE_LANES), f32)
    c = jnp.zeros((1, GATE_LANES), f32)
    rows = []
    for t in range(sp):
        gates = xww_scr[pl.ds(t, 1), :] + jnp.dot(
            h, w_ref[pl.ds(_R_WHH_W, 128), :], preferred_element_type=f32)
        i, f, g, o = lstm_gates(gates)
        c = f * c + i * g
        h = o * jnp.tanh(c)
        rows.append(h)
    hout = jnp.concatenate(rows, axis=0)               # (Sp, 128)

    # ---- hidden2tag + log_softmax (pad lanes carry -1e30 bias) ------------
    tag = (jnp.dot(hout, w_ref[pl.ds(_R_WTAG, 128), :],
                   preferred_element_type=f32)
           + w_ref[pl.ds(_R_BIAS + 2, 1), :])[:, 0:GATE_LANES]
    z = tag - jnp.max(tag, axis=-1, keepdims=True)
    lse = jnp.log(jnp.sum(jnp.exp(z), axis=-1, keepdims=True))
    out_ref[...] = z - lse


# ---------------------------------------------------------------------------
# Forward wrapper: only tiny integer re-layout happens outside the kernel.
# ---------------------------------------------------------------------------
@partial(jax.jit, static_argnames=("tagset_size",))
def lstm_tagger_forward(sentence, char_ids, char_lens, packed_w, tagset_size):
    s = int(sentence.shape[0])
    l_max = int(char_ids.shape[1])
    sp = max(8, ((s + 7) // 8) * 8)                    # sublane-pad sentence
    l_sp = l_max * sp

    cid = jnp.pad(char_ids.astype(jnp.int32), ((0, sp - s), (0, 0)))
    cid_tm = jnp.transpose(cid, (1, 0)).reshape(l_sp, 1)        # time-major
    wid = jnp.pad(sentence.astype(jnp.int32), (0, sp - s)).reshape(sp, 1)
    lens = jnp.pad(char_lens.astype(jnp.int32), (0, sp - s)).reshape(sp, 1)
    ints = jnp.concatenate([cid_tm, wid, lens], axis=0)         # one int input

    vmem = pl.BlockSpec(memory_space=pltpu.MemorySpace.VMEM)
    out = pl.pallas_call(
        _tagger_kernel,
        out_shape=jax.ShapeDtypeStruct((sp, GATE_LANES), jnp.float32),
        in_specs=[vmem, vmem],
        out_specs=vmem,
        scratch_shapes=[
            pltpu.VMEM((l_sp, PACK_LANES), jnp.float32),   # hoisted char x@W
            pltpu.VMEM((sp, PACK_LANES), jnp.float32),     # hoisted word x@W
        ],
    )(ints, packed_w)
    return out[:s, :tagset_size]


# ---------------------------------------------------------------------------
# Pure-JAX reference (original gate-fused [in, 4H] weights, PyTorch semantics).
# ---------------------------------------------------------------------------
def _cell_ref(x, h, c, wih, whh, b, hdim):
    g = x @ wih + h @ whh + b
    i = jax.nn.sigmoid(g[:, 0 * hdim:1 * hdim])
    f = jax.nn.sigmoid(g[:, 1 * hdim:2 * hdim])
    gg = jnp.tanh(g[:, 2 * hdim:3 * hdim])
    o = jax.nn.sigmoid(g[:, 3 * hdim:4 * hdim])
    c_new = f * c + i * gg
    return o * jnp.tanh(c_new), c_new


def ref_forward(sentence, char_ids, char_lens_list, params):
    h_c = params["whh_c"].shape[0]
    h_w = params["whh_w"].shape[0]
    s = sentence.shape[0]
    ce = params["char_emb"][char_ids]
    feats = []
    for w in range(s):
        h = jnp.zeros((1, h_c)); c = jnp.zeros((1, h_c))
        for t in range(int(char_lens_list[w])):
            h, c = _cell_ref(ce[w, t:t + 1], h, c,
                             params["wih_c"], params["whh_c"], params["b_c"], h_c)
        feats.append(h)
    char_feat = jnp.concatenate(feats, axis=0)
    embeds = jnp.concatenate([params["word_emb"][sentence], char_feat], axis=1)
    h = jnp.zeros((1, h_w)); c = jnp.zeros((1, h_w))
    outs = []
    for t in range(s):
        h, c = _cell_ref(embeds[t:t + 1], h, c,
                         params["wih_w"], params["whh_w"], params["b_w"], h_w)
        outs.append(h)
    tag = jnp.concatenate(outs, axis=0) @ params["w_tag"] + params["b_tag"]
    return jax.nn.log_softmax(tag, axis=1)


if __name__ == "__main__":
    # Hyperparameters (hidden_dim_char == embedding_dim_char, see note at top).
    E_c, E_w = 8, 16
    H_c, H_w = 8, 32
    char_num, word_num, tagset_size = 20, 30, 5
    S, L_max = 6, 7

    key = jax.random.PRNGKey(0)
    keys = jax.random.split(key, 16)

    def uinit(k, shape, bound):
        return jax.random.uniform(k, shape, jnp.float32, -bound, bound)

    kc = 1.0 / (H_c ** 0.5)
    kw = 1.0 / (H_w ** 0.5)

    params = {
        # nn.Embedding default init ~ N(0, 1)
        "char_emb": jax.random.normal(keys[0], (char_num, E_c), jnp.float32),
        "word_emb": jax.random.normal(keys[1], (word_num, E_w), jnp.float32),
        # char LSTM, gate-fused [in, 4*H] layout (gate order i, f, g, o),
        # bias = b_ih + b_hh
        "wih_c": uinit(keys[2], (E_c, 4 * H_c), kc),
        "whh_c": uinit(keys[3], (H_c, 4 * H_c), kc),
        "b_c": uinit(keys[4], (1, 4 * H_c), kc) + uinit(keys[5], (1, 4 * H_c), kc),
        # word LSTM, input D = E_w + H_c (== E_c + E_w)
        "wih_w": uinit(keys[6], (E_w + H_c, 4 * H_w), kw),
        "whh_w": uinit(keys[7], (H_w, 4 * H_w), kw),
        "b_w": uinit(keys[8], (1, 4 * H_w), kw) + uinit(keys[9], (1, 4 * H_w), kw),
        # hidden2tag Linear
        "w_tag": uinit(keys[10], (H_w, tagset_size), kw),
        "b_tag": uinit(keys[11], (1, tagset_size), kw),
    }

    sentence = jax.random.randint(keys[12], (S,), 0, word_num, dtype=jnp.int32)
    char_ids = jax.random.randint(keys[13], (S, L_max), 0, char_num, dtype=jnp.int32)
    char_lens_list = [5, 3, 7, 4, 6, 2]               # variable-length char sequences
    char_lens = jnp.array(char_lens_list, dtype=jnp.int32)

    packed_w, t_sz = pack_params(params)              # one-time preprocessing

    tag_scores = lstm_tagger_forward(sentence, char_ids, char_lens,
                                     packed_w, t_sz)
    tag_scores = jax.block_until_ready(tag_scores)

    expected = ref_forward(sentence, char_ids, char_lens_list, params)
    assert tag_scores.shape == (S, tagset_size)
    assert jnp.allclose(tag_scores, expected, rtol=5e-4, atol=5e-4), (
        "mismatch vs pure-JAX reference")

    print("KERNEL_OK")
</pallas_src>

<mosaic_0001>
module attributes {stable_mosaic.version = 11 : i64} {
  func.func @_tagger_kernel(%arg0: memref<72x1xi32, #tpu.memory_space<vmem>>, %arg1: memref<776x512xf32, #tpu.memory_space<vmem>>, %arg2: memref<8x128xf32, #tpu.memory_space<vmem>>, %arg3: memref<56x512xf32, #tpu.memory_space<vmem>>, %arg4: memref<8x512xf32, #tpu.memory_space<vmem>>) attributes {dimension_semantics = [], scalar_prefetch = 0 : i64, scratch_operands = 2 : i64, tpu.core_type = #tpu.core_type<tc>} {
    %c0 = arith.constant 0 : index
    %c0_0 = arith.constant 0 : index
    %0 = vector.load %arg0[%c0, %c0_0] : memref<72x1xi32, #tpu.memory_space<vmem>>, vector<56x1xi32>
    %c56 = arith.constant 56 : index
    %c0_1 = arith.constant 0 : index
    %1 = vector.load %arg0[%c56, %c0_1] : memref<72x1xi32, #tpu.memory_space<vmem>>, vector<8x1xi32>
    %c64 = arith.constant 64 : index
    %c0_2 = arith.constant 0 : index
    %2 = vector.load %arg0[%c64, %c0_2] : memref<72x1xi32, #tpu.memory_space<vmem>>, vector<8x1xi32>
    %3 = tpu.iota {dimensions = array<i32: 1>} : vector<56x128xi32>
    %4 = vector.broadcast %0 : vector<56x1xi32> to vector<56x128xi32>
    %5 = arith.cmpi eq, %4, %3 : vector<56x128xi32>
    %6 = arith.extui %5 : vector<56x128xi1> to vector<56x128xi32>
    %7 = arith.sitofp %6 : vector<56x128xi32> to vector<56x128xf32>
    %8 = tpu.iota {dimensions = array<i32: 1>} : vector<8x128xi32>
    %9 = vector.broadcast %1 : vector<8x1xi32> to vector<8x128xi32>
    %10 = arith.cmpi eq, %9, %8 : vector<8x128xi32>
    %11 = arith.extui %10 : vector<8x128xi1> to vector<8x128xi32>
    %12 = arith.sitofp %11 : vector<8x128xi32> to vector<8x128xf32>
    %c0_3 = arith.constant 0 : index
    %c0_4 = arith.constant 0 : index
    %13 = vector.load %arg1[%c0_3, %c0_4] : memref<776x512xf32, #tpu.memory_space<vmem>>, vector<128x512xf32>
    %cst = arith.constant dense<0.000000e+00> : vector<56x512xf32>
    %14 = tpu.matmul %7, %13, %cst {dimension_numbers = #tpu.dot_dimension_numbers<[1], [0], [0], [1], [0, 0, 1, 1], [], []>} : vector<56x128xf32>, vector<128x512xf32>, vector<56x512xf32> -> vector<56x512xf32>
    %c768 = arith.constant 768 : index
    %c0_5 = arith.constant 0 : index
    %15 = vector.load %arg1[%c768, %c0_5] : memref<776x512xf32, #tpu.memory_space<vmem>>, vector<1x512xf32>
    %16 = vector.broadcast %15 : vector<1x512xf32> to vector<56x512xf32>
    %17 = arith.addf %14, %16 : vector<56x512xf32>
    %c0_6 = arith.constant 0 : index
    %c0_7 = arith.constant 0 : index
    %18 = vector.load %arg3[%c0_6, %c0_7] : memref<56x512xf32, #tpu.memory_space<vmem>>, vector<56x512xf32>
    tpu.vector_store %arg3[%c0_6, %c0_7], %17 {strides = array<i32>} : memref<56x512xf32, #tpu.memory_space<vmem>>, vector<56x512xf32>,
    %cst_8 = arith.constant 0.000000e+00 : f32
    %19 = vector.broadcast %cst_8 : f32 to vector<8x128xf32>
    %c0_i32 = arith.constant 0 : i32
    %c8_i32 = arith.constant 8 : i32
    %20 = arith.muli %c0_i32, %c8_i32 : i32
    %21 = tpu.assume_multiple %20, 8 : i32
    %22 = arith.index_cast %21 : i32 to index
    %c0_9 = arith.constant 0 : index
    %23 = vector.load %arg3[%22, %c0_9] : memref<56x512xf32, #tpu.memory_space<vmem>>, vector<8x512xf32>
    %c128 = arith.constant 128 : index
    %c0_10 = arith.constant 0 : index
    %24 = vector.load %arg1[%c128, %c0_10] : memref<776x512xf32, #tpu.memory_space<vmem>>, vector<128x512xf32>
    %cst_11 = arith.constant dense<0.000000e+00> : vector<8x512xf32>
    %25 = tpu.matmul %19, %24, %cst_11 {dimension_numbers = #tpu.dot_dimension_numbers<[1], [0], [0], [1], [0, 0, 1, 1], [], []>} : vector<8x128xf32>, vector<128x512xf32>, vector<8x512xf32> -> vector<8x512xf32>
    %26 = arith.addf %23, %25 : vector<8x512xf32>
    %27 = vector.extract_strided_slice %26 {offsets = [0, 0], sizes = [8, 128], strides = [1, 1]} : vector<8x512xf32> to vector<8x128xf32>
    %28 = arith.negf %27 : vector<8x128xf32>
    %29 = math.exp %28 : vector<8x128xf32>
    %cst_12 = arith.constant 1.000000e+00 : f32
    %30 = vector.broadcast %cst_12 : f32 to vector<8x128xf32>
    %31 = arith.addf %30, %29 : vector<8x128xf32>
    %32 = arith.divf %30, %31 : vector<8x128xf32>
    %33 = vector.extract_strided_slice %26 {offsets = [0, 128], sizes = [8, 128], strides = [1, 1]} : vector<8x512xf32> to vector<8x128xf32>
    %34 = arith.negf %33 : vector<8x128xf32>
    %35 = math.exp %34 : vector<8x128xf32>
    %cst_13 = arith.constant 1.000000e+00 : f32
    %36 = vector.broadcast %cst_13 : f32 to vector<8x128xf32>
    %37 = arith.addf %36, %35 : vector<8x128xf32>
    %38 = arith.divf %36, %37 : vector<8x128xf32>
    %39 = vector.extract_strided_slice %26 {offsets = [0, 256], sizes = [8, 128], strides = [1, 1]} : vector<8x512xf32> to vector<8x128xf32>
    %40 = math.tanh %39 : vector<8x128xf32>
    %41 = vector.extract_strided_slice %26 {offsets = [0, 384], sizes = [8, 128], strides = [1, 1]} : vector<8x512xf32> to vector<8x128xf32>
    %42 = arith.negf %41 : vector<8x128xf32>
    %43 = math.exp %42 : vector<8x128xf32>
    %cst_14 = arith.constant 1.000000e+00 : f32
    %44 = vector.broadcast %cst_14 : f32 to vector<8x128xf32>
    %45 = arith.addf %44, %43 : vector<8x128xf32>
    %46 = arith.divf %44, %45 : vector<8x128xf32>
    %47 = arith.mulf %38, %19 : vector<8x128xf32>
    %48 = arith.mulf %32, %40 : vector<8x128xf32>
    %49 = arith.addf %47, %48 : vector<8x128xf32>
    %50 = math.tanh %49 : vector<8x128xf32>
    %51 = arith.mulf %46, %50 : vector<8x128xf32>
    %52 = vector.broadcast %c0_i32 : i32 to vector<8x1xi32>
    %53 = arith.cmpi slt, %52, %2 : vector<8x1xi32>
    %54 = vector.shape_cast %53 : vector<8x1xi1> to vector<8x1xi1>
    %55 = vector.broadcast %54 : vector<8x1xi1> to vector<8x128xi1>
    %56 = arith.select %55, %51, %19 : vector<8x128xi1>, vector<8x128xf32>
    %57 = vector.shape_cast %53 : vector<8x1xi1> to vector<8x1xi1>
    %58 = vector.broadcast %57 : vector<8x1xi1> to vector<8x128xi1>
    %59 = arith.select %58, %49, %19 : vector<8x128xi1>, vector<8x128xf32>
    %c1_i32 = arith.constant 1 : i32
    %c8_i32_15 = arith.constant 8 : i32
    %60 = arith.muli %c1_i32, %c8_i32_15 : i32
    %61 = tpu.assume_multiple %60, 8 : i32
    %62 = arith.index_cast %61 : i32 to index
    %c0_16 = arith.constant 0 : index
    %63 = vector.load %arg3[%62, %c0_16] : memref<56x512xf32, #tpu.memory_space<vmem>>, vector<8x512xf32>
    %c128_17 = arith.constant 128 : index
    %c0_18 = arith.constant 0 : index
    %64 = vector.load %arg1[%c128_17, %c0_18] : memref<776x512xf32, #tpu.memory_space<vmem>>, vector<128x512xf32>
    %cst_19 = arith.constant dense<0.000000e+00> : vector<8x512xf32>
    %65 = tpu.matmul %56, %64, %cst_19 {dimension_numbers = #tpu.dot_dimension_numbers<[1], [0], [0], [1], [0, 0, 1, 1], [], []>} : vector<8x128xf32>, vector<128x512xf32>, vector<8x512xf32> -> vector<8x512xf32>
    %66 = arith.addf %63, %65 : vector<8x512xf32>
    %67 = vector.extract_strided_slice %66 {offsets = [0, 0], sizes = [8, 128], strides = [1, 1]} : vector<8x512xf32> to vector<8x128xf32>
    %68 = arith.negf %67 : vector<8x128xf32>
    %69 = math.exp %68 : vector<8x128xf32>
    %cst_20 = arith.constant 1.000000e+00 : f32
    %70 = vector.broadcast %cst_20 : f32 to vector<8x128xf32>
    %71 = arith.addf %70, %69 : vector<8x128xf32>
    %72 = arith.divf %70, %71 : vector<8x128xf32>
    %73 = vector.extract_strided_slice %66 {offsets = [0, 128], sizes = [8, 128], strides = [1, 1]} : vector<8x512xf32> to vector<8x128xf32>
    %74 = arith.negf %73 : vector<8x128xf32>
    %75 = math.exp %74 : vector<8x128xf32>
    %cst_21 = arith.constant 1.000000e+00 : f32
    %76 = vector.broadcast %cst_21 : f32 to vector<8x128xf32>
    %77 = arith.addf %76, %75 : vector<8x128xf32>
    %78 = arith.divf %76, %77 : vector<8x128xf32>
    %79 = vector.extract_strided_slice %66 {offsets = [0, 256], sizes = [8, 128], strides = [1, 1]} : vector<8x512xf32> to vector<8x128xf32>
    %80 = math.tanh %79 : vector<8x128xf32>
    %81 = vector.extract_strided_slice %66 {offsets = [0, 384], sizes = [8, 128], strides = [1, 1]} : vector<8x512xf32> to vector<8x128xf32>
    %82 = arith.negf %81 : vector<8x128xf32>
    %83 = math.exp %82 : vector<8x128xf32>
    %cst_22 = arith.constant 1.000000e+00 : f32
    %84 = vector.broadcast %cst_22 : f32 to vector<8x128xf32>
    %85 = arith.addf %84, %83 : vector<8x128xf32>
    %86 = arith.divf %84, %85 : vector<8x128xf32>
    %87 = arith.mulf %78, %59 : vector<8x128xf32>
    %88 = arith.mulf %72, %80 : vector<8x128xf32>
    %89 = arith.addf %87, %88 : vector<8x128xf32>
    %90 = math.tanh %89 : vector<8x128xf32>
    %91 = arith.mulf %86, %90 : vector<8x128xf32>
    %92 = vector.broadcast %c1_i32 : i32 to vector<8x1xi32>
    %93 = arith.cmpi slt, %92, %2 : vector<8x1xi32>
    %94 = vector.shape_cast %93 : vector<8x1xi1> to vector<8x1xi1>
    %95 = vector.broadcast %94 : vector<8x1xi1> to vector<8x128xi1>
    %96 = arith.select %95, %91, %56 : vector<8x128xi1>, vector<8x128xf32>
    %97 = vector.shape_cast %93 : vector<8x1xi1> to vector<8x1xi1>
    %98 = vector.broadcast %97 : vector<8x1xi1> to vector<8x128xi1>
    %99 = arith.select %98, %89, %59 : vector<8x128xi1>, vector<8x128xf32>
    %c2_i32 = arith.constant 2 : i32
    %c8_i32_23 = arith.constant 8 : i32
    %100 = arith.muli %c2_i32, %c8_i32_23 : i32
    %101 = tpu.assume_multiple %100, 8 : i32
    %102 = arith.index_cast %101 : i32 to index
    %c0_24 = arith.constant 0 : index
    %103 = vector.load %arg3[%102, %c0_24] : memref<56x512xf32, #tpu.memory_space<vmem>>, vector<8x512xf32>
    %c128_25 = arith.constant 128 : index
    %c0_26 = arith.constant 0 : index
    %104 = vector.load %arg1[%c128_25, %c0_26] : memref<776x512xf32, #tpu.memory_space<vmem>>, vector<128x512xf32>
    %cst_27 = arith.constant dense<0.000000e+00> : vector<8x512xf32>
    %105 = tpu.matmul %96, %104, %cst_27 {dimension_numbers = #tpu.dot_dimension_numbers<[1], [0], [0], [1], [0, 0, 1, 1], [], []>} : vector<8x128xf32>, vector<128x512xf32>, vector<8x512xf32> -> vector<8x512xf32>
    %106 = arith.addf %103, %105 : vector<8x512xf32>
    %107 = vector.extract_strided_slice %106 {offsets = [0, 0], sizes = [8, 128], strides = [1, 1]} : vector<8x512xf32> to vector<8x128xf32>
    %108 = arith.negf %107 : vector<8x128xf32>
    %109 = math.exp %108 : vector<8x128xf32>
    %cst_28 = arith.constant 1.000000e+00 : f32
    %110 = vector.broadcast %cst_28 : f32 to vector<8x128xf32>
    %111 = arith.addf %110, %109 : vector<8x128xf32>
    %112 = arith.divf %110, %111 : vector<8x128xf32>
    %113 = vector.extract_strided_slice %106 {offsets = [0, 128], sizes = [8, 128], strides = [1, 1]} : vector<8x512xf32> to vector<8x128xf32>
    %114 = arith.negf %113 : vector<8x128xf32>
    %115 = math.exp %114 : vector<8x128xf32>
    %cst_29 = arith.constant 1.000000e+00 : f32
    %116 = vector.broadcast %cst_29 : f32 to vector<8x128xf32>
    %117 = arith.addf %116, %115 : vector<8x128xf32>
    %118 = arith.divf %116, %117 : vector<8x128xf32>
    %119 = vector.extract_strided_slice %106 {offsets = [0, 256], sizes = [8, 128], strides = [1, 1]} : vector<8x512xf32> to vector<8x128xf32>
    %120 = math.tanh %119 : vector<8x128xf32>
    %121 = vector.extract_strided_slice %106 {offsets = [0, 384], sizes = [8, 128], strides = [1, 1]} : vector<8x512xf32> to vector<8x128xf32>
    %122 = arith.negf %121 : vector<8x128xf32>
    %123 = math.exp %122 : vector<8x128xf32>
    %cst_30 = arith.constant 1.000000e+00 : f32
    %124 = vector.broadcast %cst_30 : f32 to vector<8x128xf32>
    %125 = arith.addf %124, %123 : vector<8x128xf32>
    %126 = arith.divf %124, %125 : vector<8x128xf32>
    %127 = arith.mulf %118, %99 : vector<8x128xf32>
    %128 = arith.mulf %112, %120 : vector<8x128xf32>
    %129 = arith.addf %127, %128 : vector<8x128xf32>
    %130 = math.tanh %129 : vector<8x128xf32>
    %131 = arith.mulf %126, %130 : vector<8x128xf32>
    %132 = vector.broadcast %c2_i32 : i32 to vector<8x1xi32>
    %133 = arith.cmpi slt, %132, %2 : vector<8x1xi32>
    %134 = vector.shape_cast %133 : vector<8x1xi1> to vector<8x1xi1>
    %135 = vector.broadcast %134 : vector<8x1xi1> to vector<8x128xi1>
    %136 = arith.select %135, %131, %96 : vector<8x128xi1>, vector<8x128xf32>
    %137 = vector.shape_cast %133 : vector<8x1xi1> to vector<8x1xi1>
    %138 = vector.broadcast %137 : vector<8x1xi1> to vector<8x128xi1>
    %139 = arith.select %138, %129, %99 : vector<8x128xi1>, vector<8x128xf32>
    %c3_i32 = arith.constant 3 : i32
    %c8_i32_31 = arith.constant 8 : i32
    %140 = arith.muli %c3_i32, %c8_i32_31 : i32
    %141 = tpu.assume_multiple %140, 8 : i32
    %142 = arith.index_cast %141 : i32 to index
    %c0_32 = arith.constant 0 : index
    %143 = vector.load %arg3[%142, %c0_32] : memref<56x512xf32, #tpu.memory_space<vmem>>, vector<8x512xf32>
    %c128_33 = arith.constant 128 : index
    %c0_34 = arith.constant 0 : index
    %144 = vector.load %arg1[%c128_33, %c0_34] : memref<776x512xf32, #tpu.memory_space<vmem>>, vector<128x512xf32>
    %cst_35 = arith.constant dense<0.000000e+00> : vector<8x512xf32>
    %145 = tpu.matmul %136, %144, %cst_35 {dimension_numbers = #tpu.dot_dimension_numbers<[1], [0], [0], [1], [0, 0, 1, 1], [], []>} : vector<8x128xf32>, vector<128x512xf32>, vector<8x512xf32> -> vector<8x512xf32>
    %146 = arith.addf %143, %145 : vector<8x512xf32>
    %147 = vector.extract_strided_slice %146 {offsets = [0, 0], sizes = [8, 128], strides = [1, 1]} : vector<8x512xf32> to vector<8x128xf32>
    %148 = arith.negf %147 : vector<8x128xf32>
    %149 = math.exp %148 : vector<8x128xf32>
    %cst_36 = arith.constant 1.000000e+00 : f32
    %150 = vector.broadcast %cst_36 : f32 to vector<8x128xf32>
    %151 = arith.addf %150, %149 : vector<8x128xf32>
    %152 = arith.divf %150, %151 : vector<8x128xf32>
    %153 = vector.extract_strided_slice %146 {offsets = [0, 128], sizes = [8, 128], strides = [1, 1]} : vector<8x512xf32> to vector<8x128xf32>
    %154 = arith.negf %153 : vector<8x128xf32>
    %155 = math.exp %154 : vector<8x128xf32>
    %cst_37 = arith.constant 1.000000e+00 : f32
    %156 = vector.broadcast %cst_37 : f32 to vector<8x128xf32>
    %157 = arith.addf %156, %155 : vector<8x128xf32>
    %158 = arith.divf %156, %157 : vector<8x128xf32>
    %159 = vector.extract_strided_slice %146 {offsets = [0, 256], sizes = [8, 128], strides = [1, 1]} : vector<8x512xf32> to vector<8x128xf32>
    %160 = math.tanh %159 : vector<8x128xf32>
    %161 = vector.extract_strided_slice %146 {offsets = [0, 384], sizes = [8, 128], strides = [1, 1]} : vector<8x512xf32> to vector<8x128xf32>
    %162 = arith.negf %161 : vector<8x128xf32>
    %163 = math.exp %162 : vector<8x128xf32>
    %cst_38 = arith.constant 1.000000e+00 : f32
    %164 = vector.broadcast %cst_38 : f32 to vector<8x128xf32>
    %165 = arith.addf %164, %163 : vector<8x128xf32>
    %166 = arith.divf %164, %165 : vector<8x128xf32>
    %167 = arith.mulf %158, %139 : vector<8x128xf32>
    %168 = arith.mulf %152, %160 : vector<8x128xf32>
    %169 = arith.addf %167, %168 : vector<8x128xf32>
    %170 = math.tanh %169 : vector<8x128xf32>
    %171 = arith.mulf %166, %170 : vector<8x128xf32>
    %172 = vector.broadcast %c3_i32 : i32 to vector<8x1xi32>
    %173 = arith.cmpi slt, %172, %2 : vector<8x1xi32>
    %174 = vector.shape_cast %173 : vector<8x1xi1> to vector<8x1xi1>
    %175 = vector.broadcast %174 : vector<8x1xi1> to vector<8x128xi1>
    %176 = arith.select %175, %171, %136 : vector<8x128xi1>, vector<8x128xf32>
    %177 = vector.shape_cast %173 : vector<8x1xi1> to vector<8x1xi1>
    %178 = vector.broadcast %177 : vector<8x1xi1> to vector<8x128xi1>
    %179 = arith.select %178, %169, %139 : vector<8x128xi1>, vector<8x128xf32>
    %c4_i32 = arith.constant 4 : i32
    %c8_i32_39 = arith.constant 8 : i32
    %180 = arith.muli %c4_i32, %c8_i32_39 : i32
    %181 = tpu.assume_multiple %180, 8 : i32
    %182 = arith.index_cast %181 : i32 to index
    %c0_40 = arith.constant 0 : index
    %183 = vector.load %arg3[%182, %c0_40] : memref<56x512xf32, #tpu.memory_space<vmem>>, vector<8x512xf32>
    %c128_41 = arith.constant 128 : index
    %c0_42 = arith.constant 0 : index
    %184 = vector.load %arg1[%c128_41, %c0_42] : memref<776x512xf32, #tpu.memory_space<vmem>>, vector<128x512xf32>
    %cst_43 = arith.constant dense<0.000000e+00> : vector<8x512xf32>
    %185 = tpu.matmul %176, %184, %cst_43 {dimension_numbers = #tpu.dot_dimension_numbers<[1], [0], [0], [1], [0, 0, 1, 1], [], []>} : vector<8x128xf32>, vector<128x512xf32>, vector<8x512xf32> -> vector<8x512xf32>
    %186 = arith.addf %183, %185 : vector<8x512xf32>
    %187 = vector.extract_strided_slice %186 {offsets = [0, 0], sizes = [8, 128], strides = [1, 1]} : vector<8x512xf32> to vector<8x128xf32>
    %188 = arith.negf %187 : vector<8x128xf32>
    %189 = math.exp %188 : vector<8x128xf32>
    %cst_44 = arith.constant 1.000000e+00 : f32
    %190 = vector.broadcast %cst_44 : f32 to vector<8x128xf32>
    %191 = arith.addf %190, %189 : vector<8x128xf32>
    %192 = arith.divf %190, %191 : vector<8x128xf32>
    %193 = vector.extract_strided_slice %186 {offsets = [0, 128], sizes = [8, 128], strides = [1, 1]} : vector<8x512xf32> to vector<8x128xf32>
    %194 = arith.negf %193 : vector<8x128xf32>
    %195 = math.exp %194 : vector<8x128xf32>
    %cst_45 = arith.constant 1.000000e+00 : f32
    %196 = vector.broadcast %cst_45 : f32 to vector<8x128xf32>
    %197 = arith.addf %196, %195 : vector<8x128xf32>
    %198 = arith.divf %196, %197 : vector<8x128xf32>
    %199 = vector.extract_strided_slice %186 {offsets = [0, 256], sizes = [8, 128], strides = [1, 1]} : vector<8x512xf32> to vector<8x128xf32>
    %200 = math.tanh %199 : vector<8x128xf32>
    %201 = vector.extract_strided_slice %186 {offsets = [0, 384], sizes = [8, 128], strides = [1, 1]} : vector<8x512xf32> to vector<8x128xf32>
    %202 = arith.negf %201 : vector<8x128xf32>
    %203 = math.exp %202 : vector<8x128xf32>
    %cst_46 = arith.constant 1.000000e+00 : f32
    %204 = vector.broadcast %cst_46 : f32 to vector<8x128xf32>
    %205 = arith.addf %204, %203 : vector<8x128xf32>
    %206 = arith.divf %204, %205 : vector<8x128xf32>
    %207 = arith.mulf %198, %179 : vector<8x128xf32>
    %208 = arith.mulf %192, %200 : vector<8x128xf32>
    %209 = arith.addf %207, %208 : vector<8x128xf32>
    %210 = math.tanh %209 : vector<8x128xf32>
    %211 = arith.mulf %206, %210 : vector<8x128xf32>
    %212 = vector.broadcast %c4_i32 : i32 to vector<8x1xi32>
    %213 = arith.cmpi slt, %212, %2 : vector<8x1xi32>
    %214 = vector.shape_cast %213 : vector<8x1xi1> to vector<8x1xi1>
    %215 = vector.broadcast %214 : vector<8x1xi1> to vector<8x128xi1>
    %216 = arith.select %215, %211, %176 : vector<8x128xi1>, vector<8x128xf32>
    %217 = vector.shape_cast %213 : vector<8x1xi1> to vector<8x1xi1>
    %218 = vector.broadcast %217 : vector<8x1xi1> to vector<8x128xi1>
    %219 = arith.select %218, %209, %179 : vector<8x128xi1>, vector<8x128xf32>
    %c5_i32 = arith.constant 5 : i32
    %c8_i32_47 = arith.constant 8 : i32
    %220 = arith.muli %c5_i32, %c8_i32_47 : i32
    %221 = tpu.assume_multiple %220, 8 : i32
    %222 = arith.index_cast %221 : i32 to index
    %c0_48 = arith.constant 0 : index
    %223 = vector.load %arg3[%222, %c0_48] : memref<56x512xf32, #tpu.memory_space<vmem>>, vector<8x512xf32>
    %c128_49 = arith.constant 128 : index
    %c0_50 = arith.constant 0 : index
    %224 = vector.load %arg1[%c128_49, %c0_50] : memref<776x512xf32, #tpu.memory_space<vmem>>, vector<128x512xf32>
    %cst_51 = arith.constant dense<0.000000e+00> : vector<8x512xf32>
    %225 = tpu.matmul %216, %224, %cst_51 {dimension_numbers = #tpu.dot_dimension_numbers<[1], [0], [0], [1], [0, 0, 1, 1], [], []>} : vector<8x128xf32>, vector<128x512xf32>, vector<8x512xf32> -> vector<8x512xf32>
    %226 = arith.addf %223, %225 : vector<8x512xf32>
    %227 = vector.extract_strided_slice %226 {offsets = [0, 0], sizes = [8, 128], strides = [1, 1]} : vector<8x512xf32> to vector<8x128xf32>
    %228 = arith.negf %227 : vector<8x128xf32>
    %229 = math.exp %228 : vector<8x128xf32>
    %cst_52 = arith.constant 1.000000e+00 : f32
    %230 = vector.broadcast %cst_52 : f32 to vector<8x128xf32>
    %231 = arith.addf %230, %229 : vector<8x128xf32>
    %232 = arith.divf %230, %231 : vector<8x128xf32>
    %233 = vector.extract_strided_slice %226 {offsets = [0, 128], sizes = [8, 128], strides = [1, 1]} : vector<8x512xf32> to vector<8x128xf32>
    %234 = arith.negf %233 : vector<8x128xf32>
    %235 = math.exp %234 : vector<8x128xf32>
    %cst_53 = arith.constant 1.000000e+00 : f32
    %236 = vector.broadcast %cst_53 : f32 to vector<8x128xf32>
    %237 = arith.addf %236, %235 : vector<8x128xf32>
    %238 = arith.divf %236, %237 : vector<8x128xf32>
    %239 = vector.extract_strided_slice %226 {offsets = [0, 256], sizes = [8, 128], strides = [1, 1]} : vector<8x512xf32> to vector<8x128xf32>
    %240 = math.tanh %239 : vector<8x128xf32>
    %241 = vector.extract_strided_slice %226 {offsets = [0, 384], sizes = [8, 128], strides = [1, 1]} : vector<8x512xf32> to vector<8x128xf32>
    %242 = arith.negf %241 : vector<8x128xf32>
    %243 = math.exp %242 : vector<8x128xf32>
    %cst_54 = arith.constant 1.000000e+00 : f32
    %244 = vector.broadcast %cst_54 : f32 to vector<8x128xf32>
    %245 = arith.addf %244, %243 : vector<8x128xf32>
    %246 = arith.divf %244, %245 : vector<8x128xf32>
    %247 = arith.mulf %238, %219 : vector<8x128xf32>
    %248 = arith.mulf %232, %240 : vector<8x128xf32>
    %249 = arith.addf %247, %248 : vector<8x128xf32>
    %250 = math.tanh %249 : vector<8x128xf32>
    %251 = arith.mulf %246, %250 : vector<8x128xf32>
    %252 = vector.broadcast %c5_i32 : i32 to vector<8x1xi32>
    %253 = arith.cmpi slt, %252, %2 : vector<8x1xi32>
    %254 = vector.shape_cast %253 : vector<8x1xi1> to vector<8x1xi1>
    %255 = vector.broadcast %254 : vector<8x1xi1> to vector<8x128xi1>
    %256 = arith.select %255, %251, %216 : vector<8x128xi1>, vector<8x128xf32>
    %257 = vector.shape_cast %253 : vector<8x1xi1> to vector<8x1xi1>
    %258 = vector.broadcast %257 : vector<8x1xi1> to vector<8x128xi1>
    %259 = arith.select %258, %249, %219 : vector<8x128xi1>, vector<8x128xf32>
    %c6_i32 = arith.constant 6 : i32
    %c8_i32_55 = arith.constant 8 : i32
    %260 = arith.muli %c6_i32, %c8_i32_55 : i32
    %261 = tpu.assume_multiple %260, 8 : i32
    %262 = arith.index_cast %261 : i32 to index
    %c0_56 = arith.constant 0 : index
    %263 = vector.load %arg3[%262, %c0_56] : memref<56x512xf32, #tpu.memory_space<vmem>>, vector<8x512xf32>
    %c128_57 = arith.constant 128 : index
    %c0_58 = arith.constant 0 : index
    %264 = vector.load %arg1[%c128_57, %c0_58] : memref<776x512xf32, #tpu.memory_space<vmem>>, vector<128x512xf32>
    %cst_59 = arith.constant dense<0.000000e+00> : vector<8x512xf32>
    %265 = tpu.matmul %256, %264, %cst_59 {dimension_numbers = #tpu.dot_dimension_numbers<[1], [0], [0], [1], [0, 0, 1, 1], [], []>} : vector<8x128xf32>, vector<128x512xf32>, vector<8x512xf32> -> vector<8x512xf32>
    %266 = arith.addf %263, %265 : vector<8x512xf32>
    %267 = vector.extract_strided_slice %266 {offsets = [0, 0], sizes = [8, 128], strides = [1, 1]} : vector<8x512xf32> to vector<8x128xf32>
    %268 = arith.negf %267 : vector<8x128xf32>
    %269 = math.exp %268 : vector<8x128xf32>
    %cst_60 = arith.constant 1.000000e+00 : f32
    %270 = vector.broadcast %cst_60 : f32 to vector<8x128xf32>
    %271 = arith.addf %270, %269 : vector<8x128xf32>
    %272 = arith.divf %270, %271 : vector<8x128xf32>
    %273 = vector.extract_strided_slice %266 {offsets = [0, 128], sizes = [8, 128], strides = [1, 1]} : vector<8x512xf32> to vector<8x128xf32>
    %274 = arith.negf %273 : vector<8x128xf32>
    %275 = math.exp %274 : vector<8x128xf32>
    %cst_61 = arith.constant 1.000000e+00 : f32
    %276 = vector.broadcast %cst_61 : f32 to vector<8x128xf32>
    %277 = arith.addf %276, %275 : vector<8x128xf32>
    %278 = arith.divf %276, %277 : vector<8x128xf32>
    %279 = vector.extract_strided_slice %266 {offsets = [0, 256], sizes = [8, 128], strides = [1, 1]} : vector<8x512xf32> to vector<8x128xf32>
    %280 = math.tanh %279 : vector<8x128xf32>
    %281 = vector.extract_strided_slice %266 {offsets = [0, 384], sizes = [8, 128], strides = [1, 1]} : vector<8x512xf32> to vector<8x128xf32>
    %282 = arith.negf %281 : vector<8x128xf32>
    %283 = math.exp %282 : vector<8x128xf32>
    %cst_62 = arith.constant 1.000000e+00 : f32
    %284 = vector.broadcast %cst_62 : f32 to vector<8x128xf32>
    %285 = arith.addf %284, %283 : vector<8x128xf32>
    %286 = arith.divf %284, %285 : vector<8x128xf32>
    %287 = arith.mulf %278, %259 : vector<8x128xf32>
    %288 = arith.mulf %272, %280 : vector<8x128xf32>
    %289 = arith.addf %287, %288 : vector<8x128xf32>
    %290 = math.tanh %289 : vector<8x128xf32>
    %291 = arith.mulf %286, %290 : vector<8x128xf32>
    %292 = vector.broadcast %c6_i32 : i32 to vector<8x1xi32>
    %293 = arith.cmpi slt, %292, %2 : vector<8x1xi32>
    %294 = vector.shape_cast %293 : vector<8x1xi1> to vector<8x1xi1>
    %295 = vector.broadcast %294 : vector<8x1xi1> to vector<8x128xi1>
    %296 = arith.select %295, %291, %256 : vector<8x128xi1>, vector<8x128xf32>
    %297 = vector.shape_cast %293 : vector<8x1xi1> to vector<8x1xi1>
    %298 = vector.broadcast %297 : vector<8x1xi1> to vector<8x128xi1>
    %299 = arith.select %298, %289, %259 : vector<8x128xi1>, vector<8x128xf32>
    %c7_i32 = arith.constant 7 : i32
    %c256 = arith.constant 256 : index
    %c0_63 = arith.constant 0 : index
    %300 = vector.load %arg1[%c256, %c0_63] : memref<776x512xf32, #tpu.memory_space<vmem>>, vector<128x512xf32>
    %cst_64 = arith.constant dense<0.000000e+00> : vector<8x512xf32>
    %301 = tpu.matmul %12, %300, %cst_64 {dimension_numbers = #tpu.dot_dimension_numbers<[1], [0], [0], [1], [0, 0, 1, 1], [], []>} : vector<8x128xf32>, vector<128x512xf32>, vector<8x512xf32> -> vector<8x512xf32>
    %c384 = arith.constant 384 : index
    %c0_65 = arith.constant 0 : index
    %302 = vector.load %arg1[%c384, %c0_65] : memref<776x512xf32, #tpu.memory_space<vmem>>, vector<128x512xf32>
    %cst_66 = arith.constant dense<0.000000e+00> : vector<8x512xf32>
    %303 = tpu.matmul %296, %302, %cst_66 {dimension_numbers = #tpu.dot_dimension_numbers<[1], [0], [0], [1], [0, 0, 1, 1], [], []>} : vector<8x128xf32>, vector<128x512xf32>, vector<8x512xf32> -> vector<8x512xf32>
    %304 = arith.addf %301, %303 : vector<8x512xf32>
    %c769 = arith.constant 769 : index
    %c0_67 = arith.constant 0 : index
    %305 = vector.load %arg1[%c769, %c0_67] : memref<776x512xf32, #tpu.memory_space<vmem>>, vector<1x512xf32>
    %306 = vector.broadcast %305 : vector<1x512xf32> to vector<8x512xf32>
    %307 = arith.addf %304, %306 : vector<8x512xf32>
    %c0_68 = arith.constant 0 : index
    %c0_69 = arith.constant 0 : index
    %308 = vector.load %arg4[%c0_68, %c0_69] : memref<8x512xf32, #tpu.memory_space<vmem>>, vector<8x512xf32>
    tpu.vector_store %arg4[%c0_68, %c0_69], %307 {strides = array<i32>} : memref<8x512xf32, #tpu.memory_space<vmem>>, vector<8x512xf32>,
    %cst_70 = arith.constant 0.000000e+00 : f32
    %309 = vector.broadcast %cst_70 : f32 to vector<1x128xf32>
    %cst_71 = arith.constant 0.000000e+00 : f32
    %310 = vector.broadcast %cst_71 : f32 to vector<1x128xf32>
    %c0_72 = arith.constant 0 : index
    %c0_73 = arith.constant 0 : index
    %311 = vector.load %arg4[%c0_72, %c0_73] : memref<8x512xf32, #tpu.memory_space<vmem>>, vector<1x512xf32>
    %c512 = arith.constant 512 : index
    %c0_74 = arith.constant 0 : index
    %312 = vector.load %arg1[%c512, %c0_74] : memref<776x512xf32, #tpu.memory_space<vmem>>, vector<128x512xf32>
    %cst_75 = arith.constant dense<0.000000e+00> : vector<1x512xf32>
    %313 = tpu.matmul %309, %312, %cst_75 {dimension_numbers = #tpu.dot_dimension_numbers<[1], [0], [0], [1], [0, 0, 1, 1], [], []>} : vector<1x128xf32>, vector<128x512xf32>, vector<1x512xf32> -> vector<1x512xf32>
    %314 = arith.addf %311, %313 : vector<1x512xf32>
    %315 = vector.extract_strided_slice %314 {offsets = [0, 0], sizes = [1, 128], strides = [1, 1]} : vector<1x512xf32> to vector<1x128xf32>
    %316 = arith.negf %315 : vector<1x128xf32>
    %317 = math.exp %316 : vector<1x128xf32>
    %cst_76 = arith.constant 1.000000e+00 : f32
    %318 = vector.broadcast %cst_76 : f32 to vector<1x128xf32>
    %319 = arith.addf %318, %317 : vector<1x128xf32>
    %320 = arith.divf %318, %319 : vector<1x128xf32>
    %321 = vector.extract_strided_slice %314 {offsets = [0, 128], sizes = [1, 128], strides = [1, 1]} : vector<1x512xf32> to vector<1x128xf32>
    %322 = arith.negf %321 : vector<1x128xf32>
    %323 = math.exp %322 : vector<1x128xf32>
    %cst_77 = arith.constant 1.000000e+00 : f32
    %324 = vector.broadcast %cst_77 : f32 to vector<1x128xf32>
    %325 = arith.addf %324, %323 : vector<1x128xf32>
    %326 = arith.divf %324, %325 : vector<1x128xf32>
    %327 = vector.extract_strided_slice %314 {offsets = [0, 256], sizes = [1, 128], strides = [1, 1]} : vector<1x512xf32> to vector<1x128xf32>
    %328 = math.tanh %327 : vector<1x128xf32>
    %329 = vector.extract_strided_slice %314 {offsets = [0, 384], sizes = [1, 128], strides = [1, 1]} : vector<1x512xf32> to vector<1x128xf32>
    %330 = arith.negf %329 : vector<1x128xf32>
    %331 = math.exp %330 : vector<1x128xf32>
    %cst_78 = arith.constant 1.000000e+00 : f32
    %332 = vector.broadcast %cst_78 : f32 to vector<1x128xf32>
    %333 = arith.addf %332, %331 : vector<1x128xf32>
    %334 = arith.divf %332, %333 : vector<1x128xf32>
    %335 = arith.mulf %326, %310 : vector<1x128xf32>
    %336 = arith.mulf %320, %328 : vector<1x128xf32>
    %337 = arith.addf %335, %336 : vector<1x128xf32>
    %338 = math.tanh %337 : vector<1x128xf32>
    %339 = arith.mulf %334, %338 : vector<1x128xf32>
    %c1 = arith.constant 1 : index
    %c0_79 = arith.constant 0 : index
    %340 = vector.load %arg4[%c1, %c0_79] : memref<8x512xf32, #tpu.memory_space<vmem>>, vector<1x512xf32>
    %c512_80 = arith.constant 512 : index
    %c0_81 = arith.constant 0 : index
    %341 = vector.load %arg1[%c512_80, %c0_81] : memref<776x512xf32, #tpu.memory_space<vmem>>, vector<128x512xf32>
    %cst_82 = arith.constant dense<0.000000e+00> : vector<1x512xf32>
    %342 = tpu.matmul %339, %341, %cst_82 {dimension_numbers = #tpu.dot_dimension_numbers<[1], [0], [0], [1], [0, 0, 1, 1], [], []>} : vector<1x128xf32>, vector<128x512xf32>, vector<1x512xf32> -> vector<1x512xf32>
    %343 = arith.addf %340, %342 : vector<1x512xf32>
    %344 = vector.extract_strided_slice %343 {offsets = [0, 0], sizes = [1, 128], strides = [1, 1]} : vector<1x512xf32> to vector<1x128xf32>
    %345 = arith.negf %344 : vector<1x128xf32>
    %346 = math.exp %345 : vector<1x128xf32>
    %cst_83 = arith.constant 1.000000e+00 : f32
    %347 = vector.broadcast %cst_83 : f32 to vector<1x128xf32>
    %348 = arith.addf %347, %346 : vector<1x128xf32>
    %349 = arith.divf %347, %348 : vector<1x128xf32>
    %350 = vector.extract_strided_slice %343 {offsets = [0, 128], sizes = [1, 128], strides = [1, 1]} : vector<1x512xf32> to vector<1x128xf32>
    %351 = arith.negf %350 : vector<1x128xf32>
    %352 = math.exp %351 : vector<1x128xf32>
    %cst_84 = arith.constant 1.000000e+00 : f32
    %353 = vector.broadcast %cst_84 : f32 to vector<1x128xf32>
    %354 = arith.addf %353, %352 : vector<1x128xf32>
    %355 = arith.divf %353, %354 : vector<1x128xf32>
    %356 = vector.extract_strided_slice %343 {offsets = [0, 256], sizes = [1, 128], strides = [1, 1]} : vector<1x512xf32> to vector<1x128xf32>
    %357 = math.tanh %356 : vector<1x128xf32>
    %358 = vector.extract_strided_slice %343 {offsets = [0, 384], sizes = [1, 128], strides = [1, 1]} : vector<1x512xf32> to vector<1x128xf32>
    %359 = arith.negf %358 : vector<1x128xf32>
    %360 = math.exp %359 : vector<1x128xf32>
    %cst_85 = arith.constant 1.000000e+00 : f32
    %361 = vector.broadcast %cst_85 : f32 to vector<1x128xf32>
    %362 = arith.addf %361, %360 : vector<1x128xf32>
    %363 = arith.divf %361, %362 : vector<1x128xf32>
    %364 = arith.mulf %355, %337 : vector<1x128xf32>
    %365 = arith.mulf %349, %357 : vector<1x128xf32>
    %366 = arith.addf %364, %365 : vector<1x128xf32>
    %367 = math.tanh %366 : vector<1x128xf32>
    %368 = arith.mulf %363, %367 : vector<1x128xf32>
    %c2 = arith.constant 2 : index
    %c0_86 = arith.constant 0 : index
    %369 = vector.load %arg4[%c2, %c0_86] : memref<8x512xf32, #tpu.memory_space<vmem>>, vector<1x512xf32>
    %c512_87 = arith.constant 512 : index
    %c0_88 = arith.constant 0 : index
    %370 = vector.load %arg1[%c512_87, %c0_88] : memref<776x512xf32, #tpu.memory_space<vmem>>, vector<128x512xf32>
    %cst_89 = arith.constant dense<0.000000e+00> : vector<1x512xf32>
    %371 = tpu.matmul %368, %370, %cst_89 {dimension_numbers = #tpu.dot_dimension_numbers<[1], [0], [0], [1], [0, 0, 1, 1], [], []>} : vector<1x128xf32>, vector<128x512xf32>, vector<1x512xf32> -> vector<1x512xf32>
    %372 = arith.addf %369, %371 : vector<1x512xf32>
    %373 = vector.extract_strided_slice %372 {offsets = [0, 0], sizes = [1, 128], strides = [1, 1]} : vector<1x512xf32> to vector<1x128xf32>
    %374 = arith.negf %373 : vector<1x128xf32>
    %375 = math.exp %374 : vector<1x128xf32>
    %cst_90 = arith.constant 1.000000e+00 : f32
    %376 = vector.broadcast %cst_90 : f32 to vector<1x128xf32>
    %377 = arith.addf %376, %375 : vector<1x128xf32>
    %378 = arith.divf %376, %377 : vector<1x128xf32>
    %379 = vector.extract_strided_slice %372 {offsets = [0, 128], sizes = [1, 128], strides = [1, 1]} : vector<1x512xf32> to vector<1x128xf32>
    %380 = arith.negf %379 : vector<1x128xf32>
    %381 = math.exp %380 : vector<1x128xf32>
    %cst_91 = arith.constant 1.000000e+00 : f32
    %382 = vector.broadcast %cst_91 : f32 to vector<1x128xf32>
    %383 = arith.addf %382, %381 : vector<1x128xf32>
    %384 = arith.divf %382, %383 : vector<1x128xf32>
    %385 = vector.extract_strided_slice %372 {offsets = [0, 256], sizes = [1, 128], strides = [1, 1]} : vector<1x512xf32> to vector<1x128xf32>
    %386 = math.tanh %385 : vector<1x128xf32>
    %387 = vector.extract_strided_slice %372 {offsets = [0, 384], sizes = [1, 128], strides = [1, 1]} : vector<1x512xf32> to vector<1x128xf32>
    %388 = arith.negf %387 : vector<1x128xf32>
    %389 = math.exp %388 : vector<1x128xf32>
    %cst_92 = arith.constant 1.000000e+00 : f32
    %390 = vector.broadcast %cst_92 : f32 to vector<1x128xf32>
    %391 = arith.addf %390, %389 : vector<1x128xf32>
    %392 = arith.divf %390, %391 : vector<1x128xf32>
    %393 = arith.mulf %384, %366 : vector<1x128xf32>
    %394 = arith.mulf %378, %386 : vector<1x128xf32>
    %395 = arith.addf %393, %394 : vector<1x128xf32>
    %396 = math.tanh %395 : vector<1x128xf32>
    %397 = arith.mulf %392, %396 : vector<1x128xf32>
    %c3 = arith.constant 3 : index
    %c0_93 = arith.constant 0 : index
    %398 = vector.load %arg4[%c3, %c0_93] : memref<8x512xf32, #tpu.memory_space<vmem>>, vector<1x512xf32>
    %c512_94 = arith.constant 512 : index
    %c0_95 = arith.constant 0 : index
    %399 = vector.load %arg1[%c512_94, %c0_95] : memref<776x512xf32, #tpu.memory_space<vmem>>, vector<128x512xf32>
    %cst_96 = arith.constant dense<0.000000e+00> : vector<1x512xf32>
    %400 = tpu.matmul %397, %399, %cst_96 {dimension_numbers = #tpu.dot_dimension_numbers<[1], [0], [0], [1], [0, 0, 1, 1], [], []>} : vector<1x128xf32>, vector<128x512xf32>, vector<1x512xf32> -> vector<1x512xf32>
    %401 = arith.addf %398, %400 : vector<1x512xf32>
    %402 = vector.extract_strided_slice %401 {offsets = [0, 0], sizes = [1, 128], strides = [1, 1]} : vector<1x512xf32> to vector<1x128xf32>
    %403 = arith.negf %402 : vector<1x128xf32>
    %404 = math.exp %403 : vector<1x128xf32>
    %cst_97 = arith.constant 1.000000e+00 : f32
    %405 = vector.broadcast %cst_97 : f32 to vector<1x128xf32>
    %406 = arith.addf %405, %404 : vector<1x128xf32>
    %407 = arith.divf %405, %406 : vector<1x128xf32>
    %408 = vector.extract_strided_slice %401 {offsets = [0, 128], sizes = [1, 128], strides = [1, 1]} : vector<1x512xf32> to vector<1x128xf32>
    %409 = arith.negf %408 : vector<1x128xf32>
    %410 = math.exp %409 : vector<1x128xf32>
    %cst_98 = arith.constant 1.000000e+00 : f32
    %411 = vector.broadcast %cst_98 : f32 to vector<1x128xf32>
    %412 = arith.addf %411, %410 : vector<1x128xf32>
    %413 = arith.divf %411, %412 : vector<1x128xf32>
    %414 = vector.extract_strided_slice %401 {offsets = [0, 256], sizes = [1, 128], strides = [1, 1]} : vector<1x512xf32> to vector<1x128xf32>
    %415 = math.tanh %414 : vector<1x128xf32>
    %416 = vector.extract_strided_slice %401 {offsets = [0, 384], sizes = [1, 128], strides = [1, 1]} : vector<1x512xf32> to vector<1x128xf32>
    %417 = arith.negf %416 : vector<1x128xf32>
    %418 = math.exp %417 : vector<1x128xf32>
    %cst_99 = arith.constant 1.000000e+00 : f32
    %419 = vector.broadcast %cst_99 : f32 to vector<1x128xf32>
    %420 = arith.addf %419, %418 : vector<1x128xf32>
    %421 = arith.divf %419, %420 : vector<1x128xf32>
    %422 = arith.mulf %413, %395 : vector<1x128xf32>
    %423 = arith.mulf %407, %415 : vector<1x128xf32>
    %424 = arith.addf %422, %423 : vector<1x128xf32>
    %425 = math.tanh %424 : vector<1x128xf32>
    %426 = arith.mulf %421, %425 : vector<1x128xf32>
    %c4 = arith.constant 4 : index
    %c0_100 = arith.constant 0 : index
    %427 = vector.load %arg4[%c4, %c0_100] : memref<8x512xf32, #tpu.memory_space<vmem>>, vector<1x512xf32>
    %c512_101 = arith.constant 512 : index
    %c0_102 = arith.constant 0 : index
    %428 = vector.load %arg1[%c512_101, %c0_102] : memref<776x512xf32, #tpu.memory_space<vmem>>, vector<128x512xf32>
    %cst_103 = arith.constant dense<0.000000e+00> : vector<1x512xf32>
    %429 = tpu.matmul %426, %428, %cst_103 {dimension_numbers = #tpu.dot_dimension_numbers<[1], [0], [0], [1], [0, 0, 1, 1], [], []>} : vector<1x128xf32>, vector<128x512xf32>, vector<1x512xf32> -> vector<1x512xf32>
    %430 = arith.addf %427, %429 : vector<1x512xf32>
    %431 = vector.extract_strided_slice %430 {offsets = [0, 0], sizes = [1, 128], strides = [1, 1]} : vector<1x512xf32> to vector<1x128xf32>
    %432 = arith.negf %431 : vector<1x128xf32>
    %433 = math.exp %432 : vector<1x128xf32>
    %cst_104 = arith.constant 1.000000e+00 : f32
    %434 = vector.broadcast %cst_104 : f32 to vector<1x128xf32>
    %435 = arith.addf %434, %433 : vector<1x128xf32>
    %436 = arith.divf %434, %435 : vector<1x128xf32>
    %437 = vector.extract_strided_slice %430 {offsets = [0, 128], sizes = [1, 128], strides = [1, 1]} : vector<1x512xf32> to vector<1x128xf32>
    %438 = arith.negf %437 : vector<1x128xf32>
    %439 = math.exp %438 : vector<1x128xf32>
    %cst_105 = arith.constant 1.000000e+00 : f32
    %440 = vector.broadcast %cst_105 : f32 to vector<1x128xf32>
    %441 = arith.addf %440, %439 : vector<1x128xf32>
    %442 = arith.divf %440, %441 : vector<1x128xf32>
    %443 = vector.extract_strided_slice %430 {offsets = [0, 256], sizes = [1, 128], strides = [1, 1]} : vector<1x512xf32> to vector<1x128xf32>
    %444 = math.tanh %443 : vector<1x128xf32>
    %445 = vector.extract_strided_slice %430 {offsets = [0, 384], sizes = [1, 128], strides = [1, 1]} : vector<1x512xf32> to vector<1x128xf32>
    %446 = arith.negf %445 : vector<1x128xf32>
    %447 = math.exp %446 : vector<1x128xf32>
    %cst_106 = arith.constant 1.000000e+00 : f32
    %448 = vector.broadcast %cst_106 : f32 to vector<1x128xf32>
    %449 = arith.addf %448, %447 : vector<1x128xf32>
    %450 = arith.divf %448, %449 : vector<1x128xf32>
    %451 = arith.mulf %442, %424 : vector<1x128xf32>
    %452 = arith.mulf %436, %444 : vector<1x128xf32>
    %453 = arith.addf %451, %452 : vector<1x128xf32>
    %454 = math.tanh %453 : vector<1x128xf32>
    %455 = arith.mulf %450, %454 : vector<1x128xf32>
    %c5 = arith.constant 5 : index
    %c0_107 = arith.constant 0 : index
    %456 = vector.load %arg4[%c5, %c0_107] : memref<8x512xf32, #tpu.memory_space<vmem>>, vector<1x512xf32>
    %c512_108 = arith.constant 512 : index
    %c0_109 = arith.constant 0 : index
    %457 = vector.load %arg1[%c512_108, %c0_109] : memref<776x512xf32, #tpu.memory_space<vmem>>, vector<128x512xf32>
    %cst_110 = arith.constant dense<0.000000e+00> : vector<1x512xf32>
    %458 = tpu.matmul %455, %457, %cst_110 {dimension_numbers = #tpu.dot_dimension_numbers<[1], [0], [0], [1], [0, 0, 1, 1], [], []>} : vector<1x128xf32>, vector<128x512xf32>, vector<1x512xf32> -> vector<1x512xf32>
    %459 = arith.addf %456, %458 : vector<1x512xf32>
    %460 = vector.extract_strided_slice %459 {offsets = [0, 0], sizes = [1, 128], strides = [1, 1]} : vector<1x512xf32> to vector<1x128xf32>
    %461 = arith.negf %460 : vector<1x128xf32>
    %462 = math.exp %461 : vector<1x128xf32>
    %cst_111 = arith.constant 1.000000e+00 : f32
    %463 = vector.broadcast %cst_111 : f32 to vector<1x128xf32>
    %464 = arith.addf %463, %462 : vector<1x128xf32>
    %465 = arith.divf %463, %464 : vector<1x128xf32>
    %466 = vector.extract_strided_slice %459 {offsets = [0, 128], sizes = [1, 128], strides = [1, 1]} : vector<1x512xf32> to vector<1x128xf32>
    %467 = arith.negf %466 : vector<1x128xf32>
    %468 = math.exp %467 : vector<1x128xf32>
    %cst_112 = arith.constant 1.000000e+00 : f32
    %469 = vector.broadcast %cst_112 : f32 to vector<1x128xf32>
    %470 = arith.addf %469, %468 : vector<1x128xf32>
    %471 = arith.divf %469, %470 : vector<1x128xf32>
    %472 = vector.extract_strided_slice %459 {offsets = [0, 256], sizes = [1, 128], strides = [1, 1]} : vector<1x512xf32> to vector<1x128xf32>
    %473 = math.tanh %472 : vector<1x128xf32>
    %474 = vector.extract_strided_slice %459 {offsets = [0, 384], sizes = [1, 128], strides = [1, 1]} : vector<1x512xf32> to vector<1x128xf32>
    %475 = arith.negf %474 : vector<1x128xf32>
    %476 = math.exp %475 : vector<1x128xf32>
    %cst_113 = arith.constant 1.000000e+00 : f32
    %477 = vector.broadcast %cst_113 : f32 to vector<1x128xf32>
    %478 = arith.addf %477, %476 : vector<1x128xf32>
    %479 = arith.divf %477, %478 : vector<1x128xf32>
    %480 = arith.mulf %471, %453 : vector<1x128xf32>
    %481 = arith.mulf %465, %473 : vector<1x128xf32>
    %482 = arith.addf %480, %481 : vector<1x128xf32>
    %483 = math.tanh %482 : vector<1x128xf32>
    %484 = arith.mulf %479, %483 : vector<1x128xf32>
    %c6 = arith.constant 6 : index
    %c0_114 = arith.constant 0 : index
    %485 = vector.load %arg4[%c6, %c0_114] : memref<8x512xf32, #tpu.memory_space<vmem>>, vector<1x512xf32>
    %c512_115 = arith.constant 512 : index
    %c0_116 = arith.constant 0 : index
    %486 = vector.load %arg1[%c512_115, %c0_116] : memref<776x512xf32, #tpu.memory_space<vmem>>, vector<128x512xf32>
    %cst_117 = arith.constant dense<0.000000e+00> : vector<1x512xf32>
    %487 = tpu.matmul %484, %486, %cst_117 {dimension_numbers = #tpu.dot_dimension_numbers<[1], [0], [0], [1], [0, 0, 1, 1], [], []>} : vector<1x128xf32>, vector<128x512xf32>, vector<1x512xf32> -> vector<1x512xf32>
    %488 = arith.addf %485, %487 : vector<1x512xf32>
    %489 = vector.extract_strided_slice %488 {offsets = [0, 0], sizes = [1, 128], strides = [1, 1]} : vector<1x512xf32> to vector<1x128xf32>
    %490 = arith.negf %489 : vector<1x128xf32>
    %491 = math.exp %490 : vector<1x128xf32>
    %cst_118 = arith.constant 1.000000e+00 : f32
    %492 = vector.broadcast %cst_118 : f32 to vector<1x128xf32>
    %493 = arith.addf %492, %491 : vector<1x128xf32>
    %494 = arith.divf %492, %493 : vector<1x128xf32>
    %495 = vector.extract_strided_slice %488 {offsets = [0, 128], sizes = [1, 128], strides = [1, 1]} : vector<1x512xf32> to vector<1x128xf32>
    %496 = arith.negf %495 : vector<1x128xf32>
    %497 = math.exp %496 : vector<1x128xf32>
    %cst_119 = arith.constant 1.000000e+00 : f32
    %498 = vector.broadcast %cst_119 : f32 to vector<1x128xf32>
    %499 = arith.addf %498, %497 : vector<1x128xf32>
    %500 = arith.divf %498, %499 : vector<1x128xf32>
    %501 = vector.extract_strided_slice %488 {offsets = [0, 256], sizes = [1, 128], strides = [1, 1]} : vector<1x512xf32> to vector<1x128xf32>
    %502 = math.tanh %501 : vector<1x128xf32>
    %503 = vector.extract_strided_slice %488 {offsets = [0, 384], sizes = [1, 128], strides = [1, 1]} : vector<1x512xf32> to vector<1x128xf32>
    %504 = arith.negf %503 : vector<1x128xf32>
    %505 = math.exp %504 : vector<1x128xf32>
    %cst_120 = arith.constant 1.000000e+00 : f32
    %506 = vector.broadcast %cst_120 : f32 to vector<1x128xf32>
    %507 = arith.addf %506, %505 : vector<1x128xf32>
    %508 = arith.divf %506, %507 : vector<1x128xf32>
    %509 = arith.mulf %500, %482 : vector<1x128xf32>
    %510 = arith.mulf %494, %502 : vector<1x128xf32>
    %511 = arith.addf %509, %510 : vector<1x128xf32>
    %512 = math.tanh %511 : vector<1x128xf32>
    %513 = arith.mulf %508, %512 : vector<1x128xf32>
    %c7 = arith.constant 7 : index
    %c0_121 = arith.constant 0 : index
    %514 = vector.load %arg4[%c7, %c0_121] : memref<8x512xf32, #tpu.memory_space<vmem>>, vector<1x512xf32>
    %c512_122 = arith.constant 512 : index
    %c0_123 = arith.constant 0 : index
    %515 = vector.load %arg1[%c512_122, %c0_123] : memref<776x512xf32, #tpu.memory_space<vmem>>, vector<128x512xf32>
    %cst_124 = arith.constant dense<0.000000e+00> : vector<1x512xf32>
    %516 = tpu.matmul %513, %515, %cst_124 {dimension_numbers = #tpu.dot_dimension_numbers<[1], [0], [0], [1], [0, 0, 1, 1], [], []>} : vector<1x128xf32>, vector<128x512xf32>, vector<1x512xf32> -> vector<1x512xf32>
    %517 = arith.addf %514, %516 : vector<1x512xf32>
    %518 = vector.extract_strided_slice %517 {offsets = [0, 0], sizes = [1, 128], strides = [1, 1]} : vector<1x512xf32> to vector<1x128xf32>
    %519 = arith.negf %518 : vector<1x128xf32>
    %520 = math.exp %519 : vector<1x128xf32>
    %cst_125 = arith.constant 1.000000e+00 : f32
    %521 = vector.broadcast %cst_125 : f32 to vector<1x128xf32>
    %522 = arith.addf %521, %520 : vector<1x128xf32>
    %523 = arith.divf %521, %522 : vector<1x128xf32>
    %524 = vector.extract_strided_slice %517 {offsets = [0, 128], sizes = [1, 128], strides = [1, 1]} : vector<1x512xf32> to vector<1x128xf32>
    %525 = arith.negf %524 : vector<1x128xf32>
    %526 = math.exp %525 : vector<1x128xf32>
    %cst_126 = arith.constant 1.000000e+00 : f32
    %527 = vector.broadcast %cst_126 : f32 to vector<1x128xf32>
    %528 = arith.addf %527, %526 : vector<1x128xf32>
    %529 = arith.divf %527, %528 : vector<1x128xf32>
    %530 = vector.extract_strided_slice %517 {offsets = [0, 256], sizes = [1, 128], strides = [1, 1]} : vector<1x512xf32> to vector<1x128xf32>
    %531 = math.tanh %530 : vector<1x128xf32>
    %532 = vector.extract_strided_slice %517 {offsets = [0, 384], sizes = [1, 128], strides = [1, 1]} : vector<1x512xf32> to vector<1x128xf32>
    %533 = arith.negf %532 : vector<1x128xf32>
    %534 = math.exp %533 : vector<1x128xf32>
    %cst_127 = arith.constant 1.000000e+00 : f32
    %535 = vector.broadcast %cst_127 : f32 to vector<1x128xf32>
    %536 = arith.addf %535, %534 : vector<1x128xf32>
    %537 = arith.divf %535, %536 : vector<1x128xf32>
    %538 = arith.mulf %529, %511 : vector<1x128xf32>
    %539 = arith.mulf %523, %531 : vector<1x128xf32>
    %540 = arith.addf %538, %539 : vector<1x128xf32>
    %541 = math.tanh %540 : vector<1x128xf32>
    %542 = arith.mulf %537, %541 : vector<1x128xf32>
    %543 = tpu.concatenate %339, %368, %397, %426, %455, %484, %513, %542 in 0 : vector<1x128xf32>, vector<1x128xf32>, vector<1x128xf32>, vector<1x128xf32>, vector<1x128xf32>, vector<1x128xf32>, vector<1x128xf32>, vector<1x128xf32> -> vector<8x128xf32>
    %c640 = arith.constant 640 : index
    %c0_128 = arith.constant 0 : index
    %544 = vector.load %arg1[%c640, %c0_128] : memref<776x512xf32, #tpu.memory_space<vmem>>, vector<128x512xf32>
    %cst_129 = arith.constant dense<0.000000e+00> : vector<8x512xf32>
    %545 = tpu.matmul %543, %544, %cst_129 {dimension_numbers = #tpu.dot_dimension_numbers<[1], [0], [0], [1], [0, 0, 1, 1], [], []>} : vector<8x128xf32>, vector<128x512xf32>, vector<8x512xf32> -> vector<8x512xf32>
    %c770 = arith.constant 770 : index
    %c0_130 = arith.constant 0 : index
    %546 = vector.load %arg1[%c770, %c0_130] : memref<776x512xf32, #tpu.memory_space<vmem>>, vector<1x512xf32>
    %547 = vector.broadcast %546 : vector<1x512xf32> to vector<8x512xf32>
    %548 = arith.addf %545, %547 : vector<8x512xf32>
    %549 = vector.extract_strided_slice %548 {offsets = [0, 0], sizes = [8, 128], strides = [1, 1]} : vector<8x512xf32> to vector<8x128xf32>
    %cst_131 = arith.constant dense<0xFF800000> : vector<8xf32>
    %550 = vector.multi_reduction <maximumf>, %549, %cst_131 [1] : vector<8x128xf32> to vector<8xf32>
    %551 = vector.shape_cast %550 : vector<8xf32> to vector<8x1xf32>
    %552 = vector.broadcast %551 : vector<8x1xf32> to vector<8x128xf32>
    %553 = arith.subf %549, %552 : vector<8x128xf32>
    %554 = math.exp %553 : vector<8x128xf32>
    %cst_132 = arith.constant dense<0.000000e+00> : vector<8xf32>
    %555 = vector.multi_reduction <add>, %554, %cst_132 [1] : vector<8x128xf32> to vector<8xf32>
    %556 = vector.shape_cast %555 : vector<8xf32> to vector<8x1xf32>
    %557 = math.log %556 : vector<8x1xf32>
    %558 = vector.broadcast %557 : vector<8x1xf32> to vector<8x128xf32>
    %559 = arith.subf %553, %558 : vector<8x128xf32>
    %c0_133 = arith.constant 0 : index
    %c0_134 = arith.constant 0 : index
    %560 = vector.load %arg2[%c0_133, %c0_134] : memref<8x128xf32, #tpu.memory_space<vmem>>, vector<8x128xf32>
    tpu.vector_store %arg2[%c0_133, %c0_134], %559 {strides = array<i32>} : memref<8x128xf32, #tpu.memory_space<vmem>>, vector<8x128xf32>,
    return
  }
}

</mosaic_0001>

<llo_original>
// kernel: lstm_tagger_forward.1
$region0: #{lstm_tagger_forward.1}
  #allocation0 [shape = 'u32[]', space=smem, size = 0x4, offset = 0x4, fixed_abs, tag = 'smem constant byte address 0x4 - core index']
  #allocation1 [shape = 'u32[72,128]{1,0:T(1,128)}', space=vmem, size = 0x9000, scoped, tag = 'internal scratch']
  #allocation2 [shape = 'f32[56,512]{1,0:T(8,128)}', space=vmem, size = 0x1c000, scoped, tag = 'scratch operand']
  #allocation3 [shape = 'f32[8,512]{1,0:T(8,128)}', space=vmem, size = 0x4000, scoped, tag = 'scratch operand']
  %s0 = inlined_call_operand.vmem [shape: s32[72,1], index: 0, kind: input, shape index: {}]
  %s1 = inlined_call_operand.hbm [shape: f32[776,512], index: 1, kind: input, shape index: {}]
  %s2 = inlined_call_operand.hbm [shape: f32[8,128], index: 2, kind: output, shape index: {}]
  %s3 = sld [smem:[#allocation0]]
  $region22: #{lstm_tagger_forward.1} parent=0
    _
  %s5 = ssub.s32 1, %s3
  %s6 = scalar_select 0, %s5, %s3
  $region1: #{lstm_tagger_forward.1} parent=0
    #allocation4 [shape = 'u8[1589248]{0}', space=vmem, size = 0x184000, scoped, tag = 'input window, operand 1, single buffered']
    #allocation5 [shape = 's32[1]{0}', space=sflag, size = 0x4, scoped, tag = 'scoped memory for lstm_tagger_forward.1']
    #allocation6 [shape = 's32[1]{0}', space=sflag, size = 0x4, scoped, tag = 'scoped memory for lstm_tagger_forward.1']
    #allocation7 [shape = 'u8[4096]{0}', space=vmem, size = 0x1000, scoped, tag = 'output window, operand 0, single buffered']
    %7 = vsyncpa [#allocation5], 0
    %8 = vsyncpa [#allocation6], 0
    // Predicated region
    $region2: #{lstm_tagger_forward.1} parent=1 // pred_check
      _
    $region3: #{lstm_tagger_forward.1} parent=1 // pred_check_branch
      %10 = sbr.rel (0) target = $region5
    $region4: #{lstm_tagger_forward.1} parent=1 // pred_region
      _
    $region5: #{lstm_tagger_forward.1} parent=1 // pred_fallthru
      _
    // Predicated region
    $region6: #{lstm_tagger_forward.1} parent=1 // pred_check
      _
    $region7: #{lstm_tagger_forward.1} parent=1 // pred_check_branch
      %12 = sbr.rel (0) target = $region9
    $region8: #{lstm_tagger_forward.1} parent=1 // pred_region
      %14 = vsyncadd [#allocation5], 0
      %s15 = sshll.u32 %s1, 4
      %s16 = int_to_ptr.hbm [resolvable:$true] %s15
      %s17 = sshll.u32 [#allocation4], 4
      %s18 = int_to_ptr.vmem [resolvable:$true] %s17
      %23 = dma.hbm_to_vmem [thread:$0]  %s16, 49664, %s18, [#allocation5], 512, 512, 32
    $region9: #{lstm_tagger_forward.1} parent=1 // pred_fallthru
      _
    // Predicated region
    $region10: #{lstm_tagger_forward.1} parent=1 // pred_check
      _
    $region11: #{lstm_tagger_forward.1} parent=1 // pred_check_branch
      %25 = sbr.rel (0) target = $region13
    $region12: #{lstm_tagger_forward.1} parent=1 // pred_region
      %27 = dma.done [#allocation5], 49664
    $region13: #{lstm_tagger_forward.1} parent=1 // pred_fallthru
      _
    %v28 = vld [vmem:[%s0] sm:$0xff]
    %v29 = vld [vmem:[%s0 + $0x8] sm:$0xff]
    %v30 = vld [vmem:[%s0 + $0x10] sm:$0xff]
    %v31 = vld [vmem:[%s0 + $0x18] sm:$0xff]
    %v32 = vld [vmem:[%s0 + $0x20] sm:$0xff]
    %v33 = vld [vmem:[%s0 + $0x28] sm:$0xff]
    %v34 = vld [vmem:[%s0 + $0x30] sm:$0xff]
    %v35 = vld [vmem:[%s0 + $0x38] sm:$0xff]
    %v36 = vld [vmem:[%s0 + $0x40] sm:$0xff]
    %v37 = vlaneseq
    %v38 = vand.u32 %v37, 127
    %39 = vset.pattern.permute.xlu0 0
    %40 = vperm.xlu0 %39, %v28
    %v41 = vpop.permute.xlu0 %40
    %42 = vset.pattern.permute.xlu0 0
    %43 = vperm.xlu0 %42, %v29
    %v44 = vpop.permute.xlu0 %43
    %45 = vset.pattern.permute.xlu0 0
    %46 = vperm.xlu0 %45, %v30
    %v47 = vpop.permute.xlu0 %46
    %48 = vset.pattern.permute.xlu0 0
    %49 = vperm.xlu0 %48, %v31
    %v50 = vpop.permute.xlu0 %49
    %51 = vset.pattern.permute.xlu0 0
    %52 = vperm.xlu0 %51, %v32
    %v53 = vpop.permute.xlu0 %52
    %54 = vset.pattern.permute.xlu0 0
    %55 = vperm.xlu0 %54, %v33
    %v56 = vpop.permute.xlu0 %55
    %57 = vset.pattern.permute.xlu0 0
    %58 = vperm.xlu0 %57, %v34
    %v59 = vpop.permute.xlu0 %58
    %vm60 = vcmp.eq.s32.totalorder %v41, %v38
    %vm61 = vcmp.eq.s32.totalorder %v44, %v38
    %vm62 = vcmp.eq.s32.totalorder %v47, %v38
    %vm63 = vcmp.eq.s32.totalorder %v50, %v38
    %vm64 = vcmp.eq.s32.totalorder %v53, %v38
    %vm65 = vcmp.eq.s32.totalorder %v56, %v38
    %vm66 = vcmp.eq.s32.totalorder %v59, %v38
    %v67 = vsel %vm60, 1, 0
    %v68 = vsel %vm61, 1, 0
    %v69 = vsel %vm62, 1, 0
    %v70 = vsel %vm63, 1, 0
    %v71 = vsel %vm64, 1, 0
    %v72 = vsel %vm65, 1, 0
    %v73 = vsel %vm66, 1, 0
    %v74 = vcvt.s32.f32 %v67
    %v75 = vcvt.s32.f32 %v68
    %v76 = vcvt.s32.f32 %v69
    %v77 = vcvt.s32.f32 %v70
    %v78 = vcvt.s32.f32 %v71
    %v79 = vcvt.s32.f32 %v72
    %v80 = vcvt.s32.f32 %v73
    %81 = vset.pattern.permute.xlu0 0
    %82 = vperm.xlu0 %81, %v35
    %v83 = vpop.permute.xlu0 %82
    %vm84 = vcmp.eq.s32.totalorder %v83, %v38
    %v85 = vsel %vm84, 1, 0
    %v86 = vcvt.s32.f32 %v85
    %v87 = vld [vmem:[#allocation4] sm:$0xff]
    %v88 = vld [vmem:[#allocation4 + $0x8] sm:$0xff]
    %v89 = vld [vmem:[#allocation4 + $0x10] sm:$0xff]
    %v90 = vld [vmem:[#allocation4 + $0x18] sm:$0xff]
    %v91 = vld [vmem:[#allocation4 + $0x20] sm:$0xff]
    %v92 = vld [vmem:[#allocation4 + $0x28] sm:$0xff]
    %v93 = vld [vmem:[#allocation4 + $0x30] sm:$0xff]
    %v94 = vld [vmem:[#allocation4 + $0x38] sm:$0xff]
    %v95 = vld [vmem:[#allocation4 + $0x40] sm:$0xff]
    %v96 = vld [vmem:[#allocation4 + $0x48] sm:$0xff]
    %v97 = vld [vmem:[#allocation4 + $0x50] sm:$0xff]
    %v98 = vld [vmem:[#allocation4 + $0x58] sm:$0xff]
    %v99 = vld [vmem:[#allocation4 + $0x60] sm:$0xff]
    %v100 = vld [vmem:[#allocation4 + $0x68] sm:$0xff]
    %v101 = vld [vmem:[#allocation4 + $0x70] sm:$0xff]
    %v102 = vld [vmem:[#allocation4 + $0x78] sm:$0xff]
    %v103 = vld [vmem:[#allocation4 + $0x80] sm:$0xff]
    %v104 = vld [vmem:[#allocation4 + $0x88] sm:$0xff]
    %v105 = vld [vmem:[#allocation4 + $0x90] sm:$0xff]
    %v106 = vld [vmem:[#allocation4 + $0x98] sm:$0xff]
    %v107 = vld [vmem:[#allocation4 + $0xa0] sm:$0xff]
    %v108 = vld [vmem:[#allocation4 + $0xa8] sm:$0xff]
    %v109 = vld [vmem:[#allocation4 + $0xb0] sm:$0xff]
    %v110 = vld [vmem:[#allocation4 + $0xb8] sm:$0xff]
    %v111 = vld [vmem:[#allocation4 + $0xc0] sm:$0xff]
    %v112 = vld [vmem:[#allocation4 + $0xc8] sm:$0xff]
    %v113 = vld [vmem:[#allocation4 + $0xd0] sm:$0xff]
    %v114 = vld [vmem:[#allocation4 + $0xd8] sm:$0xff]
    %v115 = vld [vmem:[#allocation4 + $0xe0] sm:$0xff]
    %v116 = vld [vmem:[#allocation4 + $0xe8] sm:$0xff]
    %v117 = vld [vmem:[#allocation4 + $0xf0] sm:$0xff]
    %v118 = vld [vmem:[#allocation4 + $0xf8] sm:$0xff]
    %v119 = vld [vmem:[#allocation4 + $0x100] sm:$0xff]
    %v120 = vld [vmem:[#allocation4 + $0x108] sm:$0xff]
    %v121 = vld [vmem:[#allocation4 + $0x110] sm:$0xff]
    %v122 = vld [vmem:[#allocation4 + $0x118] sm:$0xff]
    %v123 = vld [vmem:[#allocation4 + $0x120] sm:$0xff]
    %v124 = vld [vmem:[#allocation4 + $0x128] sm:$0xff]
    %v125 = vld [vmem:[#allocation4 + $0x130] sm:$0xff]
    %v126 = vld [vmem:[#allocation4 + $0x138] sm:$0xff]
    %v127 = vld [vmem:[#allocation4 + $0x140] sm:$0xff]
    %v128 = vld [vmem:[#allocation4 + $0x148] sm:$0xff]
    %v129 = vld [vmem:[#allocation4 + $0x150] sm:$0xff]
    %v130 = vld [vmem:[#allocation4 + $0x158] sm:$0xff]
    %v131 = vld [vmem:[#allocation4 + $0x160] sm:$0xff]
    %v132 = vld [vmem:[#allocation4 + $0x168] sm:$0xff]
    %v133 = vld [vmem:[#allocation4 + $0x170] sm:$0xff]
    %v134 = vld [vmem:[#allocation4 + $0x178] sm:$0xff]
    %v135 = vld [vmem:[#allocation4 + $0x180] sm:$0xff]
    %v136 = vld [vmem:[#allocation4 + $0x188] sm:$0xff]
    %v137 = vld [vmem:[#allocation4 + $0x190] sm:$0xff]
    %v138 = vld [vmem:[#allocation4 + $0x198] sm:$0xff]
    %v139 = vld [vmem:[#allocation4 + $0x1a0] sm:$0xff]
    %v140 = vld [vmem:[#allocation4 + $0x1a8] sm:$0xff]
    %v141 = vld [vmem:[#allocation4 + $0x1b0] sm:$0xff]
    %v142 = vld [vmem:[#allocation4 + $0x1b8] sm:$0xff]
    %v143 = vld [vmem:[#allocation4 + $0x1c0] sm:$0xff]
    %v144 = vld [vmem:[#allocation4 + $0x1c8] sm:$0xff]
    %v145 = vld [vmem:[#allocation4 + $0x1d0] sm:$0xff]
    %v146 = vld [vmem:[#allocation4 + $0x1d8] sm:$0xff]
    %v147 = vld [vmem:[#allocation4 + $0x1e0] sm:$0xff]
    %v148 = vld [vmem:[#allocation4 + $0x1e8] sm:$0xff]
    %v149 = vld [vmem:[#allocation4 + $0x1f0] sm:$0xff]
    %v150 = vld [vmem:[#allocation4 + $0x1f8] sm:$0xff]
    %s151 = scalar_lea.vmem [#allocation4], 3072
    %v152 = vld [vmem:[%s151] ss:$8 sm:$0xf]
    %v154 = vperm.slane %v152, 0
    %v155 = vperm.slane %v152, 1
    %v156 = vperm.slane %v152, 2
    %v157 = vperm.slane %v152, 3
    %162 = vmatpush.msra.mxu0 %v147
    %163 = vmatpush.msra.mxu0 %v143
    %164 = vmatpush.msra.mxu0 %v139
    %165 = vmatpush.msra.mxu0 %v135
    %166 = vmatpush.msra.mxu0 %v131
    %167 = vmatpush.msra.mxu0 %v127
    %168 = vmatpush.msra.mxu0 %v123
    %169 = vmatpush.msra.mxu0 %v119
    %170 = vmatpush.msra.mxu0 %v115
    %171 = vmatpush.msra.mxu0 %v111
    %172 = vmatpush.msra.mxu0 %v107
    %173 = vmatpush.msra.mxu0 %v103
    %174 = vmatpush.msra.mxu0 %v99
    %175 = vmatpush.msra.mxu0 %v95
    %176 = vmatpush.msra.mxu0 %v91
    %177 = vmatpush.msra.mxu0 %v87
    %178 = vmatmul.f32.gmra.mxu0 %v74
    %v179 = vpop.f32.mrf.mxu0
    %v180 = vadd.f32 %v154, %v179
    %181 = vmatmul.f32.gmra.mxu0 %v75
    %v182 = vpop.f32.mrf.mxu0
    %v183 = vadd.f32 %v154, %v182
    %184 = vmatmul.f32.gmra.mxu0 %v76
    %v185 = vpop.f32.mrf.mxu0
    %v186 = vadd.f32 %v154, %v185
    %187 = vmatmul.f32.gmra.mxu0 %v77
    %v188 = vpop.f32.mrf.mxu0
    %v189 = vadd.f32 %v154, %v188
    %190 = vmatmul.f32.gmra.mxu0 %v78
    %v191 = vpop.f32.mrf.mxu0
    %v192 = vadd.f32 %v154, %v191
    %193 = vmatmul.f32.gmra.mxu0 %v79
    %v194 = vpop.f32.mrf.mxu0
    %v195 = vadd.f32 %v154, %v194
    %196 = vmatmul.f32.gmra.mxu0 %v80
    %v197 = vpop.f32.mrf.mxu0
    %v198 = vadd.f32 %v154, %v197
    %199 = vdwg.mxu0
    %200 = vmatpush.msra.mxu0 %v148
    %201 = vmatpush.msra.mxu0 %v144
    %202 = vmatpush.msra.mxu0 %v140
    %203 = vmatpush.msra.mxu0 %v136
    %204 = vmatpush.msra.mxu0 %v132
    %205 = vmatpush.msra.mxu0 %v128
    %206 = vmatpush.msra.mxu0 %v124
    %207 = vmatpush.msra.mxu0 %v120
    %208 = vmatpush.msra.mxu0 %v116
    %209 = vmatpush.msra.mxu0 %v112
    %210 = vmatpush.msra.mxu0 %v108
    %211 = vmatpush.msra.mxu0 %v104
    %212 = vmatpush.msra.mxu0 %v100
    %213 = vmatpush.msra.mxu0 %v96
    %214 = vmatpush.msra.mxu0 %v92
    %215 = vmatpush.msra.mxu0 %v88
    %216 = vmatmul.f32.gmra.mxu0 %v74
    %v217 = vpop.f32.mrf.mxu0
    %v218 = vadd.f32 %v155, %v217
    %219 = vmatmul.f32.gmra.mxu0 %v75
    %v220 = vpop.f32.mrf.mxu0
    %v221 = vadd.f32 %v155, %v220
    %222 = vmatmul.f32.gmra.mxu0 %v76
    %v223 = vpop.f32.mrf.mxu0
    %v224 = vadd.f32 %v155, %v223
    %225 = vmatmul.f32.gmra.mxu0 %v77
    %v226 = vpop.f32.mrf.mxu0
    %v227 = vadd.f32 %v155, %v226
    %228 = vmatmul.f32.gmra.mxu0 %v78
    %v229 = vpop.f32.mrf.mxu0
    %v230 = vadd.f32 %v155, %v229
    %231 = vmatmul.f32.gmra.mxu0 %v79
    %v232 = vpop.f32.mrf.mxu0
    %v233 = vadd.f32 %v155, %v232
    %234 = vmatmul.f32.gmra.mxu0 %v80
    %v235 = vpop.f32.mrf.mxu0
    %v236 = vadd.f32 %v155, %v235
    %237 = vdwg.mxu0
    %238 = vmatpush.msra.mxu0 %v149
    %239 = vmatpush.msra.mxu0 %v145
    %240 = vmatpush.msra.mxu0 %v141
    %241 = vmatpush.msra.mxu0 %v137
    %242 = vmatpush.msra.mxu0 %v133
    %243 = vmatpush.msra.mxu0 %v129
    %244 = vmatpush.msra.mxu0 %v125
    %245 = vmatpush.msra.mxu0 %v121
    %246 = vmatpush.msra.mxu0 %v117
    %247 = vmatpush.msra.mxu0 %v113
    %248 = vmatpush.msra.mxu0 %v109
    %249 = vmatpush.msra.mxu0 %v105
    %250 = vmatpush.msra.mxu0 %v101
    %251 = vmatpush.msra.mxu0 %v97
    %252 = vmatpush.msra.mxu0 %v93
    %253 = vmatpush.msra.mxu0 %v89
    %254 = vmatmul.f32.gmra.mxu0 %v74
    %v255 = vpop.f32.mrf.mxu0
    %v256 = vadd.f32 %v156, %v255
    %257 = vmatmul.f32.gmra.mxu0 %v75
    %v258 = vpop.f32.mrf.mxu0
    %v259 = vadd.f32 %v156, %v258
    %260 = vmatmul.f32.gmra.mxu0 %v76
    %v261 = vpop.f32.mrf.mxu0
    %v262 = vadd.f32 %v156, %v261
    %263 = vmatmul.f32.gmra.mxu0 %v77
    %v264 = vpop.f32.mrf.mxu0
    %v265 = vadd.f32 %v156, %v264
    %266 = vmatmul.f32.gmra.mxu0 %v78
    %v267 = vpop.f32.mrf.mxu0
    %v268 = vadd.f32 %v156, %v267
    %269 = vmatmul.f32.gmra.mxu0 %v79
    %v270 = vpop.f32.mrf.mxu0
    %v271 = vadd.f32 %v156, %v270
    %272 = vmatmul.f32.gmra.mxu0 %v80
    %v273 = vpop.f32.mrf.mxu0
    %v274 = vadd.f32 %v156, %v273
    %275 = vdwg.mxu0
    %276 = vmatpush.msra.mxu0 %v150
    %277 = vmatpush.msra.mxu0 %v146
    %278 = vmatpush.msra.mxu0 %v142
    %279 = vmatpush.msra.mxu0 %v138
    %280 = vmatpush.msra.mxu0 %v134
    %281 = vmatpush.msra.mxu0 %v130
    %282 = vmatpush.msra.mxu0 %v126
    %283 = vmatpush.msra.mxu0 %v122
    %284 = vmatpush.msra.mxu0 %v118
    %285 = vmatpush.msra.mxu0 %v114
    %286 = vmatpush.msra.mxu0 %v110
    %287 = vmatpush.msra.mxu0 %v106
    %288 = vmatpush.msra.mxu0 %v102
    %289 = vmatpush.msra.mxu0 %v98
    %290 = vmatpush.msra.mxu0 %v94
    %291 = vmatpush.msra.mxu0 %v90
    %292 = vmatmul.f32.gmra.mxu0 %v74
    %v293 = vpop.f32.mrf.mxu0
    %v294 = vadd.f32 %v157, %v293
    %295 = vmatmul.f32.gmra.mxu0 %v75
    %v296 = vpop.f32.mrf.mxu0
    %v297 = vadd.f32 %v157, %v296
    %298 = vmatmul.f32.gmra.mxu0 %v76
    %v299 = vpop.f32.mrf.mxu0
    %v300 = vadd.f32 %v157, %v299
    %301 = vmatmul.f32.gmra.mxu0 %v77
    %v302 = vpop.f32.mrf.mxu0
    %v303 = vadd.f32 %v157, %v302
    %304 = vmatmul.f32.gmra.mxu0 %v78
    %v305 = vpop.f32.mrf.mxu0
    %v306 = vadd.f32 %v157, %v305
    %307 = vmatmul.f32.gmra.mxu0 %v79
    %v308 = vpop.f32.mrf.mxu0
    %v309 = vadd.f32 %v157, %v308
    %310 = vmatmul.f32.gmra.mxu0 %v80
    %v311 = vpop.f32.mrf.mxu0
    %v312 = vadd.f32 %v157, %v311
    %313 = vdwg.mxu0
    %314 = vst [vmem:[#allocation2] sm:$0xff] %v180
    %315 = vst [vmem:[#allocation2 + $0x8] sm:$0xff] %v218
    %316 = vst [vmem:[#allocation2 + $0x10] sm:$0xff] %v256
    %317 = vst [vmem:[#allocation2 + $0x18] sm:$0xff] %v294
    %318 = vst [vmem:[#allocation2 + $0x20] sm:$0xff] %v183
    %319 = vst [vmem:[#allocation2 + $0x28] sm:$0xff] %v221
    %320 = vst [vmem:[#allocation2 + $0x30] sm:$0xff] %v259
    %321 = vst [vmem:[#allocation2 + $0x38] sm:$0xff] %v297
    %322 = vst [vmem:[#allocation2 + $0x40] sm:$0xff] %v186
    %323 = vst [vmem:[#allocation2 + $0x48] sm:$0xff] %v224
    %324 = vst [vmem:[#allocation2 + $0x50] sm:$0xff] %v262
    %325 = vst [vmem:[#allocation2 + $0x58] sm:$0xff] %v300
    %326 = vst [vmem:[#allocation2 + $0x60] sm:$0xff] %v189
    %327 = vst [vmem:[#allocation2 + $0x68] sm:$0xff] %v227
    %328 = vst [vmem:[#allocation2 + $0x70] sm:$0xff] %v265
    %329 = vst [vmem:[#allocation2 + $0x78] sm:$0xff] %v303
    %330 = vst [vmem:[#allocation2 + $0x80] sm:$0xff] %v192
    %331 = vst [vmem:[#allocation2 + $0x88] sm:$0xff] %v230
    %332 = vst [vmem:[#allocation2 + $0x90] sm:$0xff] %v268
    %333 = vst [vmem:[#allocation2 + $0x98] sm:$0xff] %v306
    %334 = vst [vmem:[#allocation2 + $0xa0] sm:$0xff] %v195
    %335 = vst [vmem:[#allocation2 + $0xa8] sm:$0xff] %v233
    %336 = vst [vmem:[#allocation2 + $0xb0] sm:$0xff] %v271
    %337 = vst [vmem:[#allocation2 + $0xb8] sm:$0xff] %v309
    %338 = vst [vmem:[#allocation2 + $0xc0] sm:$0xff] %v198
    %339 = vst [vmem:[#allocation2 + $0xc8] sm:$0xff] %v236
    %340 = vst [vmem:[#allocation2 + $0xd0] sm:$0xff] %v274
    %341 = vst [vmem:[#allocation2 + $0xd8] sm:$0xff] %v312
    %s342 = smul.u32 0, 4
    %s343 = smul.addr %s342, 8
    %s344 = scalar_lea.vmem [#allocation2], %s343
    %v345 = vld [vmem:[%s344] sm:$0xff]
    %v346 = vld [vmem:[%s344 + $0x8] sm:$0xff]
    %v347 = vld [vmem:[%s344 + $0x10] sm:$0xff]
    %v348 = vld [vmem:[%s344 + $0x18] sm:$0xff]
    %v349 = vld [vmem:[#allocation4 + $0x200] sm:$0xff]
    %v350 = vld [vmem:[#allocation4 + $0x208] sm:$0xff]
    %v351 = vld [vmem:[#allocation4 + $0x210] sm:$0xff]
    %v352 = vld [vmem:[#allocation4 + $0x218] sm:$0xff]
    %v353 = vld [vmem:[#allocation4 + $0x220] sm:$0xff]
    %v354 = vld [vmem:[#allocation4 + $0x228] sm:$0xff]
    %v355 = vld [vmem:[#allocation4 + $0x230] sm:$0xff]
    %v356 = vld [vmem:[#allocation4 + $0x238] sm:$0xff]
    %v357 = vld [vmem:[#allocation4 + $0x240] sm:$0xff]
    %v358 = vld [vmem:[#allocation4 + $0x248] sm:$0xff]
    %v359 = vld [vmem:[#allocation4 + $0x250] sm:$0xff]
    %v360 = vld [vmem:[#allocation4 + $0x258] sm:$0xff]
    %v361 = vld [vmem:[#allocation4 + $0x260] sm:$0xff]
    %v362 = vld [vmem:[#allocation4 + $0x268] sm:$0xff]
    %v363 = vld [vmem:[#allocation4 + $0x270] sm:$0xff]
    %v364 = vld [vmem:[#allocation4 + $0x278] sm:$0xff]
    %v365 = vld [vmem:[#allocation4 + $0x280] sm:$0xff]
    %v366 = vld [vmem:[#allocation4 + $0x288] sm:$0xff]
    %v367 = vld [vmem:[#allocation4 + $0x290] sm:$0xff]
    %v368 = vld [vmem:[#allocation4 + $0x298] sm:$0xff]
    %v369 = vld [vmem:[#allocation4 + $0x2a0] sm:$0xff]
    %v370 = vld [vmem:[#allocation4 + $0x2a8] sm:$0xff]
    %v371 = vld [vmem:[#allocation4 + $0x2b0] sm:$0xff]
    %v372 = vld [vmem:[#allocation4 + $0x2b8] sm:$0xff]
    %v373 = vld [vmem:[#allocation4 + $0x2c0] sm:$0xff]
    %v374 = vld [vmem:[#allocation4 + $0x2c8] sm:$0xff]
    %v375 = vld [vmem:[#allocation4 + $0x2d0] sm:$0xff]
    %v376 = vld [vmem:[#allocation4 + $0x2d8] sm:$0xff]
    %v377 = vld [vmem:[#allocation4 + $0x2e0] sm:$0xff]
    %v378 = vld [vmem:[#allocation4 + $0x2e8] sm:$0xff]
    %v379 = vld [vmem:[#allocation4 + $0x2f0] sm:$0xff]
    %v380 = vld [vmem:[#allocation4 + $0x2f8] sm:$0xff]
    %v381 = vld [vmem:[#allocation4 + $0x300] sm:$0xff]
    %v382 = vld [vmem:[#allocation4 + $0x308] sm:$0xff]
    %v383 = vld [vmem:[#allocation4 + $0x310] sm:$0xff]
    %v384 = vld [vmem:[#allocation4 + $0x318] sm:$0xff]
    %v385 = vld [vmem:[#allocation4 + $0x320] sm:$0xff]
    %v386 = vld [vmem:[#allocation4 + $0x328] sm:$0xff]
    %v387 = vld [vmem:[#allocation4 + $0x330] sm:$0xff]
    %v388 = vld [vmem:[#allocation4 + $0x338] sm:$0xff]
    %v389 = vld [vmem:[#allocation4 + $0x340] sm:$0xff]
    %v390 = vld [vmem:[#allocation4 + $0x348] sm:$0xff]
    %v391 = vld [vmem:[#allocation4 + $0x350] sm:$0xff]
    %v392 = vld [vmem:[#allocation4 + $0x358] sm:$0xff]
    %v393 = vld [vmem:[#allocation4 + $0x360] sm:$0xff]
    %v394 = vld [vmem:[#allocation4 + $0x368] sm:$0xff]
    %v395 = vld [vmem:[#allocation4 + $0x370] sm:$0xff]
    %v396 = vld [vmem:[#allocation4 + $0x378] sm:$0xff]
    %v397 = vld [vmem:[#allocation4 + $0x380] sm:$0xff]
    %v398 = vld [vmem:[#allocation4 + $0x388] sm:$0xff]
    %v399 = vld [vmem:[#allocation4 + $0x390] sm:$0xff]
    %v400 = vld [vmem:[#allocation4 + $0x398] sm:$0xff]
    %v401 = vld [vmem:[#allocation4 + $0x3a0] sm:$0xff]
    %v402 = vld [vmem:[#allocation4 + $0x3a8] sm:$0xff]
    %v403 = vld [vmem:[#allocation4 + $0x3b0] sm:$0xff]
    %v404 = vld [vmem:[#allocation4 + $0x3b8] sm:$0xff]
    %v405 = vld [vmem:[#allocation4 + $0x3c0] sm:$0xff]
    %v406 = vld [vmem:[#allocation4 + $0x3c8] sm:$0xff]
    %v407 = vld [vmem:[#allocation4 + $0x3d0] sm:$0xff]
    %v408 = vld [vmem:[#allocation4 + $0x3d8] sm:$0xff]
    %v409 = vld [vmem:[#allocation4 + $0x3e0] sm:$0xff]
    %v410 = vld [vmem:[#allocation4 + $0x3e8] sm:$0xff]
    %v411 = vld [vmem:[#allocation4 + $0x3f0] sm:$0xff]
    %v412 = vld [vmem:[#allocation4 + $0x3f8] sm:$0xff]
    %413 = vmatpush.msra.mxu0 %v409
    %414 = vmatpush.msra.mxu0 %v405
    %415 = vmatpush.msra.mxu0 %v401
    %416 = vmatpush.msra.mxu0 %v397
    %417 = vmatpush.msra.mxu0 %v393
    %418 = vmatpush.msra.mxu0 %v389
    %419 = vmatpush.msra.mxu0 %v385
    %420 = vmatpush.msra.mxu0 %v381
    %421 = vmatpush.msra.mxu0 %v377
    %422 = vmatpush.msra.mxu0 %v373
    %423 = vmatpush.msra.mxu0 %v369
    %424 = vmatpush.msra.mxu0 %v365
    %425 = vmatpush.msra.mxu0 %v361
    %426 = vmatpush.msra.mxu0 %v357
    %427 = vmatpush.msra.mxu0 %v353
    %428 = vmatpush.msra.mxu0 %v349
    %429 = vmatmul.f32.gmra.mxu0 0.0
    %v430 = vpop.f32.mrf.mxu0
    %v431 = vadd.f32 0.0, %v430
    %432 = vdwg.mxu0
    %433 = vmatpush.msra.mxu0 %v410
    %434 = vmatpush.msra.mxu0 %v406
    %435 = vmatpush.msra.mxu0 %v402
    %436 = vmatpush.msra.mxu0 %v398
    %437 = vmatpush.msra.mxu0 %v394
    %438 = vmatpush.msra.mxu0 %v390
    %439 = vmatpush.msra.mxu0 %v386
    %440 = vmatpush.msra.mxu0 %v382
    %441 = vmatpush.msra.mxu0 %v378
    %442 = vmatpush.msra.mxu0 %v374
    %443 = vmatpush.msra.mxu0 %v370
    %444 = vmatpush.msra.mxu0 %v366
    %445 = vmatpush.msra.mxu0 %v362
    %446 = vmatpush.msra.mxu0 %v358
    %447 = vmatpush.msra.mxu0 %v354
    %448 = vmatpush.msra.mxu0 %v350
    %449 = vmatmul.f32.gmra.mxu0 0.0
    %v450 = vpop.f32.mrf.mxu0
    %v451 = vadd.f32 0.0, %v450
    %452 = vdwg.mxu0
    %453 = vmatpush.msra.mxu0 %v411
    %454 = vmatpush.msra.mxu0 %v407
    %455 = vmatpush.msra.mxu0 %v403
    %456 = vmatpush.msra.mxu0 %v399
    %457 = vmatpush.msra.mxu0 %v395
    %458 = vmatpush.msra.mxu0 %v391
    %459 = vmatpush.msra.mxu0 %v387
    %460 = vmatpush.msra.mxu0 %v383
    %461 = vmatpush.msra.mxu0 %v379
    %462 = vmatpush.msra.mxu0 %v375
    %463 = vmatpush.msra.mxu0 %v371
    %464 = vmatpush.msra.mxu0 %v367
    %465 = vmatpush.msra.mxu0 %v363
    %466 = vmatpush.msra.mxu0 %v359
    %467 = vmatpush.msra.mxu0 %v355
    %468 = vmatpush.msra.mxu0 %v351
    %469 = vmatmul.f32.gmra.mxu0 0.0
    %v470 = vpop.f32.mrf.mxu0
    %v471 = vadd.f32 0.0, %v470
    %472 = vdwg.mxu0
    %473 = vmatpush.msra.mxu0 %v412
    %474 = vmatpush.msra.mxu0 %v408
    %475 = vmatpush.msra.mxu0 %v404
    %476 = vmatpush.msra.mxu0 %v400
    %477 = vmatpush.msra.mxu0 %v396
    %478 = vmatpush.msra.mxu0 %v392
    %479 = vmatpush.msra.mxu0 %v388
    %480 = vmatpush.msra.mxu0 %v384
    %481 = vmatpush.msra.mxu0 %v380
    %482 = vmatpush.msra.mxu0 %v376
    %483 = vmatpush.msra.mxu0 %v372
    %484 = vmatpush.msra.mxu0 %v368
    %485 = vmatpush.msra.mxu0 %v364
    %486 = vmatpush.msra.mxu0 %v360
    %487 = vmatpush.msra.mxu0 %v356
    %488 = vmatpush.msra.mxu0 %v352
    %489 = vmatmul.f32.gmra.mxu0 0.0
    %v490 = vpop.f32.mrf.mxu0
    %v491 = vadd.f32 0.0, %v490
    %492 = vdwg.mxu0
    %v493 = vadd.f32 %v345, %v431
    %v494 = vadd.f32 %v346, %v451
    %v495 = vadd.f32 %v347, %v471
    %v496 = vadd.f32 %v348, %v491
    %v497 = vxor.u32 %v493, 2147483648
    %v498 = vmul.f32 %v497, 1.442695
    %v499 = vpow.pop %v498
    %v500 = vadd.f32 %v499, 1.0
    %v501 = vrcp.pop %v500
    %v502 = vmul.f32 %v500, %v501
    %v503 = vsub.f32 1.0, %v502
    %v504 = vmul.f32 %v501, %v503
    %v505 = vadd.f32 %v501, %v504
    %vm506 = vweird.f32 %v500
    %vm507 = vweird.f32 %v501
    %vm508 = vmor %vm506, %vm507
    %v509 = vsel %vm508, %v501, %v505
    %v510 = vand.u32 2147483647, %v500
    %vm511 = vcmp.eq.f32.partialorder %v510, 8.507059e+37
    %v512 = vand.u32 %v500, 2147483648
    %v513 = vor.u32 1.1754944e-38, %v512
    %v514 = vsel %vm511, %v513, %v509
    %v515 = vmul.f32 1.0, %v514
    %v516 = vxor.u32 %v494, 2147483648
    %v517 = vmul.f32 %v516, 1.442695
    %v518 = vpow.pop %v517
    %v519 = vadd.f32 %v518, 1.0
    %v520 = vrcp.pop %v519
    %v521 = vmul.f32 %v519, %v520
    %v522 = vsub.f32 1.0, %v521
    %v523 = vmul.f32 %v520, %v522
    %v524 = vadd.f32 %v520, %v523
    %vm525 = vweird.f32 %v519
    %vm526 = vweird.f32 %v520
    %vm527 = vmor %vm525, %vm526
    %v528 = vsel %vm527, %v520, %v524
    %v529 = vand.u32 2147483647, %v519
    %vm530 = vcmp.eq.f32.partialorder %v529, 8.507059e+37
    %v531 = vand.u32 %v519, 2147483648
    %v532 = vor.u32 1.1754944e-38, %v531
    %v533 = vsel %vm530, %v532, %v528
    %v534 = vmul.f32 1.0, %v533
    %v535 = vtanh.pop %v495
    %v536 = vxor.u32 %v496, 2147483648
    %v537 = vmul.f32 %v536, 1.442695
    %v538 = vpow.pop %v537
    %v539 = vadd.f32 %v538, 1.0
    %v540 = vrcp.pop %v539
    %v541 = vmul.f32 %v539, %v540
    %v542 = vsub.f32 1.0, %v541
    %v543 = vmul.f32 %v540, %v542
    %v544 = vadd.f32 %v540, %v543
    %vm545 = vweird.f32 %v539
    %vm546 = vweird.f32 %v540
    %vm547 = vmor %vm545, %vm546
    %v548 = vsel %vm547, %v540, %v544
    %v549 = vand.u32 2147483647, %v539
    %vm550 = vcmp.eq.f32.partialorder %v549, 8.507059e+37
    %v551 = vand.u32 %v539, 2147483648
    %v552 = vor.u32 1.1754944e-38, %v551
    %v553 = vsel %vm550, %v552, %v548
    %v554 = vmul.f32 1.0, %v553
    %v555 = vmul.f32 %v534, 0.0
    %v556 = vmul.f32 %v515, %v535
    %v557 = vadd.f32 %v555, %v556
    %v558 = vtanh.pop %v557
    %v559 = vmul.f32 %v554, %v558
    %vm560 = vcmp.gt.s32.totalorder %v36, 0
    %v561 = vsel %vm560, 1, 0
    %562 = vset.pattern.permute.xlu0 0
    %563 = vperm.xlu0 %562, %v561
    %v564 = vpop.permute.xlu0 %563
    %vm565 = vcmp.eq.s32.totalorder %v564, 1
    %v566 = vsel %vm565, %v559, 0.0
    %v567 = vsel %vm565, %v557, 0.0
    %s568 = smul.u32 1, 4
    %s569 = smul.addr %s568, 8
    %s570 = scalar_lea.vmem [#allocation2], %s569
    %v571 = vld [vmem:[%s570] sm:$0xff]
    %v572 = vld [vmem:[%s570 + $0x8] sm:$0xff]
    %v573 = vld [vmem:[%s570 + $0x10] sm:$0xff]
    %v574 = vld [vmem:[%s570 + $0x18] sm:$0xff]
    %575 = vmatpush.msra.mxu0 %v409
    %576 = vmatpush.msra.mxu0 %v405
    %577 = vmatpush.msra.mxu0 %v401
    %578 = vmatpush.msra.mxu0 %v397
    %579 = vmatpush.msra.mxu0 %v393
    %580 = vmatpush.msra.mxu0 %v389
    %581 = vmatpush.msra.mxu0 %v385
    %582 = vmatpush.msra.mxu0 %v381
    %583 = vmatpush.msra.mxu0 %v377
    %584 = vmatpush.msra.mxu0 %v373
    %585 = vmatpush.msra.mxu0 %v369
    %586 = vmatpush.msra.mxu0 %v365
    %587 = vmatpush.msra.mxu0 %v361
    %588 = vmatpush.msra.mxu0 %v357
    %589 = vmatpush.msra.mxu0 %v353
    %590 = vmatpush.msra.mxu0 %v349
    %591 = vmatmul.f32.gmra.mxu0 %v566
    %v592 = vpop.f32.mrf.mxu0
    %v593 = vadd.f32 0.0, %v592
    %594 = vdwg.mxu0
    %595 = vmatpush.msra.mxu0 %v410
    %596 = vmatpush.msra.mxu0 %v406
    %597 = vmatpush.msra.mxu0 %v402
    %598 = vmatpush.msra.mxu0 %v398
    %599 = vmatpush.msra.mxu0 %v394
    %600 = vmatpush.msra.mxu0 %v390
    %601 = vmatpush.msra.mxu0 %v386
    %602 = vmatpush.msra.mxu0 %v382
    %603 = vmatpush.msra.mxu0 %v378
    %604 = vmatpush.msra.mxu0 %v374
    %605 = vmatpush.msra.mxu0 %v370
    %606 = vmatpush.msra.mxu0 %v366
    %607 = vmatpush.msra.mxu0 %v362
    %608 = vmatpush.msra.mxu0 %v358
    %609 = vmatpush.msra.mxu0 %v354
    %610 = vmatpush.msra.mxu0 %v350
    %611 = vmatmul.f32.gmra.mxu0 %v566
    %v612 = vpop.f32.mrf.mxu0
    %v613 = vadd.f32 0.0, %v612
    %614 = vdwg.mxu0
    %615 = vmatpush.msra.mxu0 %v411
    %616 = vmatpush.msra.mxu0 %v407
    %617 = vmatpush.msra.mxu0 %v403
    %618 = vmatpush.msra.mxu0 %v399
    %619 = vmatpush.msra.mxu0 %v395
    %620 = vmatpush.msra.mxu0 %v391
    %621 = vmatpush.msra.mxu0 %v387
    %622 = vmatpush.msra.mxu0 %v383
    %623 = vmatpush.msra.mxu0 %v379
    %624 = vmatpush.msra.mxu0 %v375
    %625 = vmatpush.msra.mxu0 %v371
    %626 = vmatpush.msra.mxu0 %v367
    %627 = vmatpush.msra.mxu0 %v363
    %628 = vmatpush.msra.mxu0 %v359
    %629 = vmatpush.msra.mxu0 %v355
    %630 = vmatpush.msra.mxu0 %v351
    %631 = vmatmul.f32.gmra.mxu0 %v566
    %v632 = vpop.f32.mrf.mxu0
    %v633 = vadd.f32 0.0, %v632
    %634 = vdwg.mxu0
    %635 = vmatpush.msra.mxu0 %v412
    %636 = vmatpush.msra.mxu0 %v408
    %637 = vmatpush.msra.mxu0 %v404
    %638 = vmatpush.msra.mxu0 %v400
    %639 = vmatpush.msra.mxu0 %v396
    %640 = vmatpush.msra.mxu0 %v392
    %641 = vmatpush.msra.mxu0 %v388
    %642 = vmatpush.msra.mxu0 %v384
    %643 = vmatpush.msra.mxu0 %v380
    %644 = vmatpush.msra.mxu0 %v376
    %645 = vmatpush.msra.mxu0 %v372
    %646 = vmatpush.msra.mxu0 %v368
    %647 = vmatpush.msra.mxu0 %v364
    %648 = vmatpush.msra.mxu0 %v360
    %649 = vmatpush.msra.mxu0 %v356
    %650 = vmatpush.msra.mxu0 %v352
    %651 = vmatmul.f32.gmra.mxu0 %v566
    %v652 = vpop.f32.mrf.mxu0
    %v653 = vadd.f32 0.0, %v652
    %654 = vdwg.mxu0
    %v655 = vadd.f32 %v571, %v593
    %v656 = vadd.f32 %v572, %v613
    %v657 = vadd.f32 %v573, %v633
    %v658 = vadd.f32 %v574, %v653
    %v659 = vxor.u32 %v655, 2147483648
    %v660 = vmul.f32 %v659, 1.442695
    %v661 = vpow.pop %v660
    %v662 = vadd.f32 %v661, 1.0
    %v663 = vrcp.pop %v662
    %v664 = vmul.f32 %v662, %v663
    %v665 = vsub.f32 1.0, %v664
    %v666 = vmul.f32 %v663, %v665
    %v667 = vadd.f32 %v663, %v666
    %vm668 = vweird.f32 %v662
    %vm669 = vweird.f32 %v663
    %vm670 = vmor %vm668, %vm669
    %v671 = vsel %vm670, %v663, %v667
    %v672 = vand.u32 2147483647, %v662
    %vm673 = vcmp.eq.f32.partialorder %v672, 8.507059e+37
    %v674 = vand.u32 %v662, 2147483648
    %v675 = vor.u32 1.1754944e-38, %v674
    %v676 = vsel %vm673, %v675, %v671
    %v677 = vmul.f32 1.0, %v676
    %v678 = vxor.u32 %v656, 2147483648
    %v679 = vmul.f32 %v678, 1.442695
    %v680 = vpow.pop %v679
    %v681 = vadd.f32 %v680, 1.0
    %v682 = vrcp.pop %v681
    %v683 = vmul.f32 %v681, %v682
    %v684 = vsub.f32 1.0, %v683
    %v685 = vmul.f32 %v682, %v684
    %v686 = vadd.f32 %v682, %v685
    %vm687 = vweird.f32 %v681
    %vm688 = vweird.f32 %v682
    %vm689 = vmor %vm687, %vm688
    %v690 = vsel %vm689, %v682, %v686
    %v691 = vand.u32 2147483647, %v681
    %vm692 = vcmp.eq.f32.partialorder %v691, 8.507059e+37
    %v693 = vand.u32 %v681, 2147483648
    %v694 = vor.u32 1.1754944e-38, %v693
    %v695 = vsel %vm692, %v694, %v690
    %v696 = vmul.f32 1.0, %v695
    %v697 = vtanh.pop %v657
    %v698 = vxor.u32 %v658, 2147483648
    %v699 = vmul.f32 %v698, 1.442695
    %v700 = vpow.pop %v699
    %v701 = vadd.f32 %v700, 1.0
    %v702 = vrcp.pop %v701
    %v703 = vmul.f32 %v701, %v702
    %v704 = vsub.f32 1.0, %v703
    %v705 = vmul.f32 %v702, %v704
    %v706 = vadd.f32 %v702, %v705
    %vm707 = vweird.f32 %v701
    %vm708 = vweird.f32 %v702
    %vm709 = vmor %vm707, %vm708
    %v710 = vsel %vm709, %v702, %v706
    %v711 = vand.u32 2147483647, %v701
    %vm712 = vcmp.eq.f32.partialorder %v711, 8.507059e+37
    %v713 = vand.u32 %v701, 2147483648
    %v714 = vor.u32 1.1754944e-38, %v713
    %v715 = vsel %vm712, %v714, %v710
    %v716 = vmul.f32 1.0, %v715
    %v717 = vmul.f32 %v696, %v567
    %v718 = vmul.f32 %v677, %v697
    %v719 = vadd.f32 %v717, %v718
    %v720 = vtanh.pop %v719
    %v721 = vmul.f32 %v716, %v720
    %vm722 = vcmp.gt.s32.totalorder %v36, 1
    %v723 = vsel %vm722, 1, 0
    %724 = vset.pattern.permute.xlu0 0
    %725 = vperm.xlu0 %724, %v723
    %v726 = vpop.permute.xlu0 %725
    %vm727 = vcmp.eq.s32.totalorder %v726, 1
    %v728 = vsel %vm727, %v721, %v566
    %v729 = vsel %vm727, %v719, %v567
    %s730 = smul.u32 2, 4
    %s731 = smul.addr %s730, 8
    %s732 = scalar_lea.vmem [#allocation2], %s731
    %v733 = vld [vmem:[%s732] sm:$0xff]
    %v734 = vld [vmem:[%s732 + $0x8] sm:$0xff]
    %v735 = vld [vmem:[%s732 + $0x10] sm:$0xff]
    %v736 = vld [vmem:[%s732 + $0x18] sm:$0xff]
    %737 = vmatpush.msra.mxu0 %v409
    %738 = vmatpush.msra.mxu0 %v405
    %739 = vmatpush.msra.mxu0 %v401
    %740 = vmatpush.msra.mxu0 %v397
    %741 = vmatpush.msra.mxu0 %v393
    %742 = vmatpush.msra.mxu0 %v389
    %743 = vmatpush.msra.mxu0 %v385
    %744 = vmatpush.msra.mxu0 %v381
    %745 = vmatpush.msra.mxu0 %v377
    %746 = vmatpush.msra.mxu0 %v373
    %747 = vmatpush.msra.mxu0 %v369
    %748 = vmatpush.msra.mxu0 %v365
    %749 = vmatpush.msra.mxu0 %v361
    %750 = vmatpush.msra.mxu0 %v357
    %751 = vmatpush.msra.mxu0 %v353
    %752 = vmatpush.msra.mxu0 %v349
    %753 = vmatmul.f32.gmra.mxu0 %v728
    %v754 = vpop.f32.mrf.mxu0
    %v755 = vadd.f32 0.0, %v754
    %756 = vdwg.mxu0
    %757 = vmatpush.msra.mxu0 %v410
    %758 = vmatpush.msra.mxu0 %v406
    %759 = vmatpush.msra.mxu0 %v402
    %760 = vmatpush.msra.mxu0 %v398
    %761 = vmatpush.msra.mxu0 %v394
    %762 = vmatpush.msra.mxu0 %v390
    %763 = vmatpush.msra.mxu0 %v386
    %764 = vmatpush.msra.mxu0 %v382
    %765 = vmatpush.msra.mxu0 %v378
    %766 = vmatpush.msra.mxu0 %v374
    %767 = vmatpush.msra.mxu0 %v370
    %768 = vmatpush.msra.mxu0 %v366
    %769 = vmatpush.msra.mxu0 %v362
    %770 = vmatpush.msra.mxu0 %v358
    %771 = vmatpush.msra.mxu0 %v354
    %772 = vmatpush.msra.mxu0 %v350
    %773 = vmatmul.f32.gmra.mxu0 %v728
    %v774 = vpop.f32.mrf.mxu0
    %v775 = vadd.f32 0.0, %v774
    %776 = vdwg.mxu0
    %777 = vmatpush.msra.mxu0 %v411
    %778 = vmatpush.msra.mxu0 %v407
    %779 = vmatpush.msra.mxu0 %v403
    %780 = vmatpush.msra.mxu0 %v399
    %781 = vmatpush.msra.mxu0 %v395
    %782 = vmatpush.msra.mxu0 %v391
    %783 = vmatpush.msra.mxu0 %v387
    %784 = vmatpush.msra.mxu0 %v383
    %785 = vmatpush.msra.mxu0 %v379
    %786 = vmatpush.msra.mxu0 %v375
    %787 = vmatpush.msra.mxu0 %v371
    %788 = vmatpush.msra.mxu0 %v367
    %789 = vmatpush.msra.mxu0 %v363
    %790 = vmatpush.msra.mxu0 %v359
    %791 = vmatpush.msra.mxu0 %v355
    %792 = vmatpush.msra.mxu0 %v351
    %793 = vmatmul.f32.gmra.mxu0 %v728
    %v794 = vpop.f32.mrf.mxu0
    %v795 = vadd.f32 0.0, %v794
    %796 = vdwg.mxu0
    %797 = vmatpush.msra.mxu0 %v412
    %798 = vmatpush.msra.mxu0 %v408
    %799 = vmatpush.msra.mxu0 %v404
    %800 = vmatpush.msra.mxu0 %v400
    %801 = vmatpush.msra.mxu0 %v396
    %802 = vmatpush.msra.mxu0 %v392
    %803 = vmatpush.msra.mxu0 %v388
    %804 = vmatpush.msra.mxu0 %v384
    %805 = vmatpush.msra.mxu0 %v380
    %806 = vmatpush.msra.mxu0 %v376
    %807 = vmatpush.msra.mxu0 %v372
    %808 = vmatpush.msra.mxu0 %v368
    %809 = vmatpush.msra.mxu0 %v364
    %810 = vmatpush.msra.mxu0 %v360
    %811 = vmatpush.msra.mxu0 %v356
    %812 = vmatpush.msra.mxu0 %v352
    %813 = vmatmul.f32.gmra.mxu0 %v728
    %v814 = vpop.f32.mrf.mxu0
    %v815 = vadd.f32 0.0, %v814
    %816 = vdwg.mxu0
    %v817 = vadd.f32 %v733, %v755
    %v818 = vadd.f32 %v734, %v775
    %v819 = vadd.f32 %v735, %v795
    %v820 = vadd.f32 %v736, %v815
    %v821 = vxor.u32 %v817, 2147483648
    %v822 = vmul.f32 %v821, 1.442695
    %v823 = vpow.pop %v822
    %v824 = vadd.f32 %v823, 1.0
    %v825 = vrcp.pop %v824
    %v826 = vmul.f32 %v824, %v825
    %v827 = vsub.f32 1.0, %v826
    %v828 = vmul.f32 %v825, %v827
    %v829 = vadd.f32 %v825, %v828
    %vm830 = vweird.f32 %v824
    %vm831 = vweird.f32 %v825
    %vm832 = vmor %vm830, %vm831
    %v833 = vsel %vm832, %v825, %v829
    %v834 = vand.u32 2147483647, %v824
    %vm835 = vcmp.eq.f32.partialorder %v834, 8.507059e+37
    %v836 = vand.u32 %v824, 2147483648
    %v837 = vor.u32 1.1754944e-38, %v836
    %v838 = vsel %vm835, %v837, %v833
    %v839 = vmul.f32 1.0, %v838
    %v840 = vxor.u32 %v818, 2147483648
    %v841 = vmul.f32 %v840, 1.442695
    %v842 = vpow.pop %v841
    %v843 = vadd.f32 %v842, 1.0
    %v844 = vrcp.pop %v843
    %v845 = vmul.f32 %v843, %v844
    %v846 = vsub.f32 1.0, %v845
    %v847 = vmul.f32 %v844, %v846
    %v848 = vadd.f32 %v844, %v847
    %vm849 = vweird.f32 %v843
    %vm850 = vweird.f32 %v844
    %vm851 = vmor %vm849, %vm850
    %v852 = vsel %vm851, %v844, %v848
    %v853 = vand.u32 2147483647, %v843
    %vm854 = vcmp.eq.f32.partialorder %v853, 8.507059e+37
    %v855 = vand.u32 %v843, 2147483648
    %v856 = vor.u32 1.1754944e-38, %v855
    %v857 = vsel %vm854, %v856, %v852
    %v858 = vmul.f32 1.0, %v857
    %v859 = vtanh.pop %v819
    %v860 = vxor.u32 %v820, 2147483648
    %v861 = vmul.f32 %v860, 1.442695
    %v862 = vpow.pop %v861
    %v863 = vadd.f32 %v862, 1.0
    %v864 = vrcp.pop %v863
    %v865 = vmul.f32 %v863, %v864
    %v866 = vsub.f32 1.0, %v865
    %v867 = vmul.f32 %v864, %v866
    %v868 = vadd.f32 %v864, %v867
    %vm869 = vweird.f32 %v863
    %vm870 = vweird.f32 %v864
    %vm871 = vmor %vm869, %vm870
    %v872 = vsel %vm871, %v864, %v868
    %v873 = vand.u32 2147483647, %v863
    %vm874 = vcmp.eq.f32.partialorder %v873, 8.507059e+37
    %v875 = vand.u32 %v863, 2147483648
    %v876 = vor.u32 1.1754944e-38, %v875
    %v877 = vsel %vm874, %v876, %v872
    %v878 = vmul.f32 1.0, %v877
    %v879 = vmul.f32 %v858, %v729
    %v880 = vmul.f32 %v839, %v859
    %v881 = vadd.f32 %v879, %v880
    %v882 = vtanh.pop %v881
    %v883 = vmul.f32 %v878, %v882
    %vm884 = vcmp.gt.s32.totalorder %v36, 2
    %v885 = vsel %vm884, 1, 0
    %886 = vset.pattern.permute.xlu0 0
    %887 = vperm.xlu0 %886, %v885
    %v888 = vpop.permute.xlu0 %887
    %vm889 = vcmp.eq.s32.totalorder %v888, 1
    %v890 = vsel %vm889, %v883, %v728
    %v891 = vsel %vm889, %v881, %v729
    %s892 = smul.u32 3, 4
    %s893 = smul.addr %s892, 8
    %s894 = scalar_lea.vmem [#allocation2], %s893
    %v895 = vld [vmem:[%s894] sm:$0xff]
    %v896 = vld [vmem:[%s894 + $0x8] sm:$0xff]
    %v897 = vld [vmem:[%s894 + $0x10] sm:$0xff]
    %v898 = vld [vmem:[%s894 + $0x18] sm:$0xff]
    %899 = vmatpush.msra.mxu0 %v409
    %900 = vmatpush.msra.mxu0 %v405
    %901 = vmatpush.msra.mxu0 %v401
    %902 = vmatpush.msra.mxu0 %v397
    %903 = vmatpush.msra.mxu0 %v393
    %904 = vmatpush.msra.mxu0 %v389
    %905 = vmatpush.msra.mxu0 %v385
    %906 = vmatpush.msra.mxu0 %v381
    %907 = vmatpush.msra.mxu0 %v377
    %908 = vmatpush.msra.mxu0 %v373
    %909 = vmatpush.msra.mxu0 %v369
    %910 = vmatpush.msra.mxu0 %v365
    %911 = vmatpush.msra.mxu0 %v361
    %912 = vmatpush.msra.mxu0 %v357
    %913 = vmatpush.msra.mxu0 %v353
    %914 = vmatpush.msra.mxu0 %v349
    %915 = vmatmul.f32.gmra.mxu0 %v890
    %v916 = vpop.f32.mrf.mxu0
    %v917 = vadd.f32 0.0, %v916
    %918 = vdwg.mxu0
    %919 = vmatpush.msra.mxu0 %v410
    %920 = vmatpush.msra.mxu0 %v406
    %921 = vmatpush.msra.mxu0 %v402
    %922 = vmatpush.msra.mxu0 %v398
    %923 = vmatpush.msra.mxu0 %v394
    %924 = vmatpush.msra.mxu0 %v390
    %925 = vmatpush.msra.mxu0 %v386
    %926 = vmatpush.msra.mxu0 %v382
    %927 = vmatpush.msra.mxu0 %v378
    %928 = vmatpush.msra.mxu0 %v374
    %929 = vmatpush.msra.mxu0 %v370
    %930 = vmatpush.msra.mxu0 %v366
    %931 = vmatpush.msra.mxu0 %v362
    %932 = vmatpush.msra.mxu0 %v358
    %933 = vmatpush.msra.mxu0 %v354
    %934 = vmatpush.msra.mxu0 %v350
    %935 = vmatmul.f32.gmra.mxu0 %v890
    %v936 = vpop.f32.mrf.mxu0
    %v937 = vadd.f32 0.0, %v936
    %938 = vdwg.mxu0
    %939 = vmatpush.msra.mxu0 %v411
    %940 = vmatpush.msra.mxu0 %v407
    %941 = vmatpush.msra.mxu0 %v403
    %942 = vmatpush.msra.mxu0 %v399
    %943 = vmatpush.msra.mxu0 %v395
    %944 = vmatpush.msra.mxu0 %v391
    %945 = vmatpush.msra.mxu0 %v387
    %946 = vmatpush.msra.mxu0 %v383
    %947 = vmatpush.msra.mxu0 %v379
    %948 = vmatpush.msra.mxu0 %v375
    %949 = vmatpush.msra.mxu0 %v371
    %950 = vmatpush.msra.mxu0 %v367
    %951 = vmatpush.msra.mxu0 %v363
    %952 = vmatpush.msra.mxu0 %v359
    %953 = vmatpush.msra.mxu0 %v355
    %954 = vmatpush.msra.mxu0 %v351
    %955 = vmatmul.f32.gmra.mxu0 %v890
    %v956 = vpop.f32.mrf.mxu0
    %v957 = vadd.f32 0.0, %v956
    %958 = vdwg.mxu0
    %959 = vmatpush.msra.mxu0 %v412
    %960 = vmatpush.msra.mxu0 %v408
    %961 = vmatpush.msra.mxu0 %v404
    %962 = vmatpush.msra.mxu0 %v400
    %963 = vmatpush.msra.mxu0 %v396
    %964 = vmatpush.msra.mxu0 %v392
    %965 = vmatpush.msra.mxu0 %v388
    %966 = vmatpush.msra.mxu0 %v384
    %967 = vmatpush.msra.mxu0 %v380
    %968 = vmatpush.msra.mxu0 %v376
    %969 = vmatpush.msra.mxu0 %v372
    %970 = vmatpush.msra.mxu0 %v368
    %971 = vmatpush.msra.mxu0 %v364
    %972 = vmatpush.msra.mxu0 %v360
    %973 = vmatpush.msra.mxu0 %v356
    %974 = vmatpush.msra.mxu0 %v352
    %975 = vmatmul.f32.gmra.mxu0 %v890
    %v976 = vpop.f32.mrf.mxu0
    %v977 = vadd.f32 0.0, %v976
    %978 = vdwg.mxu0
    %v979 = vadd.f32 %v895, %v917
    %v980 = vadd.f32 %v896, %v937
    %v981 = vadd.f32 %v897, %v957
    %v982 = vadd.f32 %v898, %v977
    %v983 = vxor.u32 %v979, 2147483648
    %v984 = vmul.f32 %v983, 1.442695
    %v985 = vpow.pop %v984
    %v986 = vadd.f32 %v985, 1.0
    %v987 = vrcp.pop %v986
    %v988 = vmul.f32 %v986, %v987
    %v989 = vsub.f32 1.0, %v988
    %v990 = vmul.f32 %v987, %v989
    %v991 = vadd.f32 %v987, %v990
    %vm992 = vweird.f32 %v986
    %vm993 = vweird.f32 %v987
    %vm994 = vmor %vm992, %vm993
    %v995 = vsel %vm994, %v987, %v991
    %v996 = vand.u32 2147483647, %v986
    %vm997 = vcmp.eq.f32.partialorder %v996, 8.507059e+37
    %v998 = vand.u32 %v986, 2147483648
    %v999 = vor.u32 1.1754944e-38, %v998
    %v1000 = vsel %vm997, %v999, %v995
    %v1001 = vmul.f32 1.0, %v1000
    %v1002 = vxor.u32 %v980, 2147483648
    %v1003 = vmul.f32 %v1002, 1.442695
    %v1004 = vpow.pop %v1003
    %v1005 = vadd.f32 %v1004, 1.0
    %v1006 = vrcp.pop %v1005
    %v1007 = vmul.f32 %v1005, %v1006
    %v1008 = vsub.f32 1.0, %v1007
    %v1009 = vmul.f32 %v1006, %v1008
    %v1010 = vadd.f32 %v1006, %v1009
    %vm1011 = vweird.f32 %v1005
    %vm1012 = vweird.f32 %v1006
    %vm1013 = vmor %vm1011, %vm1012
    %v1014 = vsel %vm1013, %v1006, %v1010
    %v1015 = vand.u32 2147483647, %v1005
    %vm1016 = vcmp.eq.f32.partialorder %v1015, 8.507059e+37
    %v1017 = vand.u32 %v1005, 2147483648
    %v1018 = vor.u32 1.1754944e-38, %v1017
    %v1019 = vsel %vm1016, %v1018, %v1014
    %v1020 = vmul.f32 1.0, %v1019
    %v1021 = vtanh.pop %v981
    %v1022 = vxor.u32 %v982, 2147483648
    %v1023 = vmul.f32 %v1022, 1.442695
    %v1024 = vpow.pop %v1023
    %v1025 = vadd.f32 %v1024, 1.0
    %v1026 = vrcp.pop %v1025
    %v1027 = vmul.f32 %v1025, %v1026
    %v1028 = vsub.f32 1.0, %v1027
    %v1029 = vmul.f32 %v1026, %v1028
    %v1030 = vadd.f32 %v1026, %v1029
    %vm1031 = vweird.f32 %v1025
    %vm1032 = vweird.f32 %v1026
    %vm1033 = vmor %vm1031, %vm1032
    %v1034 = vsel %vm1033, %v1026, %v1030
    %v1035 = vand.u32 2147483647, %v1025
    %vm1036 = vcmp.eq.f32.partialorder %v1035, 8.507059e+37
    %v1037 = vand.u32 %v1025, 2147483648
    %v1038 = vor.u32 1.1754944e-38, %v1037
    %v1039 = vsel %vm1036, %v1038, %v1034
    %v1040 = vmul.f32 1.0, %v1039
    %v1041 = vmul.f32 %v1020, %v891
    %v1042 = vmul.f32 %v1001, %v1021
    %v1043 = vadd.f32 %v1041, %v1042
    %v1044 = vtanh.pop %v1043
    %v1045 = vmul.f32 %v1040, %v1044
    %vm1046 = vcmp.gt.s32.totalorder %v36, 3
    %v1047 = vsel %vm1046, 1, 0
    %1048 = vset.pattern.permute.xlu0 0
    %1049 = vperm.xlu0 %1048, %v1047
    %v1050 = vpop.permute.xlu0 %1049
    %vm1051 = vcmp.eq.s32.totalorder %v1050, 1
    %v1052 = vsel %vm1051, %v1045, %v890
    %v1053 = vsel %vm1051, %v1043, %v891
    %s1054 = smul.u32 4, 4
    %s1055 = smul.addr %s1054, 8
    %s1056 = scalar_lea.vmem [#allocation2], %s1055
    %v1057 = vld [vmem:[%s1056] sm:$0xff]
    %v1058 = vld [vmem:[%s1056 + $0x8] sm:$0xff]
    %v1059 = vld [vmem:[%s1056 + $0x10] sm:$0xff]
    %v1060 = vld [vmem:[%s1056 + $0x18] sm:$0xff]
    %1061 = vmatpush.msra.mxu0 %v409
    %1062 = vmatpush.msra.mxu0 %v405
    %1063 = vmatpush.msra.mxu0 %v401
    %1064 = vmatpush.msra.mxu0 %v397
    %1065 = vmatpush.msra.mxu0 %v393
    %1066 = vmatpush.msra.mxu0 %v389
    %1067 = vmatpush.msra.mxu0 %v385
    %1068 = vmatpush.msra.mxu0 %v381
    %1069 = vmatpush.msra.mxu0 %v377
    %1070 = vmatpush.msra.mxu0 %v373
    %1071 = vmatpush.msra.mxu0 %v369
    %1072 = vmatpush.msra.mxu0 %v365
    %1073 = vmatpush.msra.mxu0 %v361
    %1074 = vmatpush.msra.mxu0 %v357
    %1075 = vmatpush.msra.mxu0 %v353
    %1076 = vmatpush.msra.mxu0 %v349
    %1077 = vmatmul.f32.gmra.mxu0 %v1052
    %v1078 = vpop.f32.mrf.mxu0
    %v1079 = vadd.f32 0.0, %v1078
    %1080 = vdwg.mxu0
    %1081 = vmatpush.msra.mxu0 %v410
    %1082 = vmatpush.msra.mxu0 %v406
    %1083 = vmatpush.msra.mxu0 %v402
    %1084 = vmatpush.msra.mxu0 %v398
    %1085 = vmatpush.msra.mxu0 %v394
    %1086 = vmatpush.msra.mxu0 %v390
    %1087 = vmatpush.msra.mxu0 %v386
    %1088 = vmatpush.msra.mxu0 %v382
    %1089 = vmatpush.msra.mxu0 %v378
    %1090 = vmatpush.msra.mxu0 %v374
    %1091 = vmatpush.msra.mxu0 %v370
    %1092 = vmatpush.msra.mxu0 %v366
    %1093 = vmatpush.msra.mxu0 %v362
    %1094 = vmatpush.msra.mxu0 %v358
    %1095 = vmatpush.msra.mxu0 %v354
    %1096 = vmatpush.msra.mxu0 %v350
    %1097 = vmatmul.f32.gmra.mxu0 %v1052
    %v1098 = vpop.f32.mrf.mxu0
    %v1099 = vadd.f32 0.0, %v1098
    %1100 = vdwg.mxu0
    %1101 = vmatpush.msra.mxu0 %v411
    %1102 = vmatpush.msra.mxu0 %v407
    %1103 = vmatpush.msra.mxu0 %v403
    %1104 = vmatpush.msra.mxu0 %v399
    %1105 = vmatpush.msra.mxu0 %v395
    %1106 = vmatpush.msra.mxu0 %v391
    %1107 = vmatpush.msra.mxu0 %v387
    %1108 = vmatpush.msra.mxu0 %v383
    %1109 = vmatpush.msra.mxu0 %v379
    %1110 = vmatpush.msra.mxu0 %v375
    %1111 = vmatpush.msra.mxu0 %v371
    %1112 = vmatpush.msra.mxu0 %v367
    %1113 = vmatpush.msra.mxu0 %v363
    %1114 = vmatpush.msra.mxu0 %v359
    %1115 = vmatpush.msra.mxu0 %v355
    %1116 = vmatpush.msra.mxu0 %v351
    %1117 = vmatmul.f32.gmra.mxu0 %v1052
    %v1118 = vpop.f32.mrf.mxu0
    %v1119 = vadd.f32 0.0, %v1118
    %1120 = vdwg.mxu0
    %1121 = vmatpush.msra.mxu0 %v412
    %1122 = vmatpush.msra.mxu0 %v408
    %1123 = vmatpush.msra.mxu0 %v404
    %1124 = vmatpush.msra.mxu0 %v400
    %1125 = vmatpush.msra.mxu0 %v396
    %1126 = vmatpush.msra.mxu0 %v392
    %1127 = vmatpush.msra.mxu0 %v388
    %1128 = vmatpush.msra.mxu0 %v384
    %1129 = vmatpush.msra.mxu0 %v380
    %1130 = vmatpush.msra.mxu0 %v376
    %1131 = vmatpush.msra.mxu0 %v372
    %1132 = vmatpush.msra.mxu0 %v368
    %1133 = vmatpush.msra.mxu0 %v364
    %1134 = vmatpush.msra.mxu0 %v360
    %1135 = vmatpush.msra.mxu0 %v356
    %1136 = vmatpush.msra.mxu0 %v352
    %1137 = vmatmul.f32.gmra.mxu0 %v1052
    %v1138 = vpop.f32.mrf.mxu0
    %v1139 = vadd.f32 0.0, %v1138
    %1140 = vdwg.mxu0
    %v1141 = vadd.f32 %v1057, %v1079
    %v1142 = vadd.f32 %v1058, %v1099
    %v1143 = vadd.f32 %v1059, %v1119
    %v1144 = vadd.f32 %v1060, %v1139
    %v1145 = vxor.u32 %v1141, 2147483648
    %v1146 = vmul.f32 %v1145, 1.442695
    %v1147 = vpow.pop %v1146
    %v1148 = vadd.f32 %v1147, 1.0
    %v1149 = vrcp.pop %v1148
    %v1150 = vmul.f32 %v1148, %v1149
    %v1151 = vsub.f32 1.0, %v1150
    %v1152 = vmul.f32 %v1149, %v1151
    %v1153 = vadd.f32 %v1149, %v1152
    %vm1154 = vweird.f32 %v1148
    %vm1155 = vweird.f32 %v1149
    %vm1156 = vmor %vm1154, %vm1155
    %v1157 = vsel %vm1156, %v1149, %v1153
    %v1158 = vand.u32 2147483647, %v1148
    %vm1159 = vcmp.eq.f32.partialorder %v1158, 8.507059e+37
    %v1160 = vand.u32 %v1148, 2147483648
    %v1161 = vor.u32 1.1754944e-38, %v1160
    %v1162 = vsel %vm1159, %v1161, %v1157
    %v1163 = vmul.f32 1.0, %v1162
    %v1164 = vxor.u32 %v1142, 2147483648
    %v1165 = vmul.f32 %v1164, 1.442695
    %v1166 = vpow.pop %v1165
    %v1167 = vadd.f32 %v1166, 1.0
    %v1168 = vrcp.pop %v1167
    %v1169 = vmul.f32 %v1167, %v1168
    %v1170 = vsub.f32 1.0, %v1169
    %v1171 = vmul.f32 %v1168, %v1170
    %v1172 = vadd.f32 %v1168, %v1171
    %vm1173 = vweird.f32 %v1167
    %vm1174 = vweird.f32 %v1168
    %vm1175 = vmor %vm1173, %vm1174
    %v1176 = vsel %vm1175, %v1168, %v1172
    %v1177 = vand.u32 2147483647, %v1167
    %vm1178 = vcmp.eq.f32.partialorder %v1177, 8.507059e+37
    %v1179 = vand.u32 %v1167, 2147483648
    %v1180 = vor.u32 1.1754944e-38, %v1179
    %v1181 = vsel %vm1178, %v1180, %v1176
    %v1182 = vmul.f32 1.0, %v1181
    %v1183 = vtanh.pop %v1143
    %v1184 = vxor.u32 %v1144, 2147483648
    %v1185 = vmul.f32 %v1184, 1.442695
    %v1186 = vpow.pop %v1185
    %v1187 = vadd.f32 %v1186, 1.0
    %v1188 = vrcp.pop %v1187
    %v1189 = vmul.f32 %v1187, %v1188
    %v1190 = vsub.f32 1.0, %v1189
    %v1191 = vmul.f32 %v1188, %v1190
    %v1192 = vadd.f32 %v1188, %v1191
    %vm1193 = vweird.f32 %v1187
    %vm1194 = vweird.f32 %v1188
    %vm1195 = vmor %vm1193, %vm1194
    %v1196 = vsel %vm1195, %v1188, %v1192
    %v1197 = vand.u32 2147483647, %v1187
    %vm1198 = vcmp.eq.f32.partialorder %v1197, 8.507059e+37
    %v1199 = vand.u32 %v1187, 2147483648
    %v1200 = vor.u32 1.1754944e-38, %v1199
    %v1201 = vsel %vm1198, %v1200, %v1196
    %v1202 = vmul.f32 1.0, %v1201
    %v1203 = vmul.f32 %v1182, %v1053
    %v1204 = vmul.f32 %v1163, %v1183
    %v1205 = vadd.f32 %v1203, %v1204
    %v1206 = vtanh.pop %v1205
    %v1207 = vmul.f32 %v1202, %v1206
    %vm1208 = vcmp.gt.s32.totalorder %v36, 4
    %v1209 = vsel %vm1208, 1, 0
    %1210 = vset.pattern.permute.xlu0 0
    %1211 = vperm.xlu0 %1210, %v1209
    %v1212 = vpop.permute.xlu0 %1211
    %vm1213 = vcmp.eq.s32.totalorder %v1212, 1
    %v1214 = vsel %vm1213, %v1207, %v1052
    %v1215 = vsel %vm1213, %v1205, %v1053
    %s1216 = smul.u32 5, 4
    %s1217 = smul.addr %s1216, 8
    %s1218 = scalar_lea.vmem [#allocation2], %s1217
    %v1219 = vld [vmem:[%s1218] sm:$0xff]
    %v1220 = vld [vmem:[%s1218 + $0x8] sm:$0xff]
    %v1221 = vld [vmem:[%s1218 + $0x10] sm:$0xff]
    %v1222 = vld [vmem:[%s1218 + $0x18] sm:$0xff]
    %1223 = vmatpush.msra.mxu0 %v409
    %1224 = vmatpush.msra.mxu0 %v405
    %1225 = vmatpush.msra.mxu0 %v401
    %1226 = vmatpush.msra.mxu0 %v397
    %1227 = vmatpush.msra.mxu0 %v393
    %1228 = vmatpush.msra.mxu0 %v389
    %1229 = vmatpush.msra.mxu0 %v385
    %1230 = vmatpush.msra.mxu0 %v381
    %1231 = vmatpush.msra.mxu0 %v377
    %1232 = vmatpush.msra.mxu0 %v373
    %1233 = vmatpush.msra.mxu0 %v369
    %1234 = vmatpush.msra.mxu0 %v365
    %1235 = vmatpush.msra.mxu0 %v361
    %1236 = vmatpush.msra.mxu0 %v357
    %1237 = vmatpush.msra.mxu0 %v353
    %1238 = vmatpush.msra.mxu0 %v349
    %1239 = vmatmul.f32.gmra.mxu0 %v1214
    %v1240 = vpop.f32.mrf.mxu0
    %v1241 = vadd.f32 0.0, %v1240
    %1242 = vdwg.mxu0
    %1243 = vmatpush.msra.mxu0 %v410
    %1244 = vmatpush.msra.mxu0 %v406
    %1245 = vmatpush.msra.mxu0 %v402
    %1246 = vmatpush.msra.mxu0 %v398
    %1247 = vmatpush.msra.mxu0 %v394
    %1248 = vmatpush.msra.mxu0 %v390
    %1249 = vmatpush.msra.mxu0 %v386
    %1250 = vmatpush.msra.mxu0 %v382
    %1251 = vmatpush.msra.mxu0 %v378
    %1252 = vmatpush.msra.mxu0 %v374
    %1253 = vmatpush.msra.mxu0 %v370
    %1254 = vmatpush.msra.mxu0 %v366
    %1255 = vmatpush.msra.mxu0 %v362
    %1256 = vmatpush.msra.mxu0 %v358
    %1257 = vmatpush.msra.mxu0 %v354
    %1258 = vmatpush.msra.mxu0 %v350
    %1259 = vmatmul.f32.gmra.mxu0 %v1214
    %v1260 = vpop.f32.mrf.mxu0
    %v1261 = vadd.f32 0.0, %v1260
    %1262 = vdwg.mxu0
    %1263 = vmatpush.msra.mxu0 %v411
    %1264 = vmatpush.msra.mxu0 %v407
    %1265 = vmatpush.msra.mxu0 %v403
    %1266 = vmatpush.msra.mxu0 %v399
    %1267 = vmatpush.msra.mxu0 %v395
    %1268 = vmatpush.msra.mxu0 %v391
    %1269 = vmatpush.msra.mxu0 %v387
    %1270 = vmatpush.msra.mxu0 %v383
    %1271 = vmatpush.msra.mxu0 %v379
    %1272 = vmatpush.msra.mxu0 %v375
    %1273 = vmatpush.msra.mxu0 %v371
    %1274 = vmatpush.msra.mxu0 %v367
    %1275 = vmatpush.msra.mxu0 %v363
    %1276 = vmatpush.msra.mxu0 %v359
    %1277 = vmatpush.msra.mxu0 %v355
    %1278 = vmatpush.msra.mxu0 %v351
    %1279 = vmatmul.f32.gmra.mxu0 %v1214
    %v1280 = vpop.f32.mrf.mxu0
    %v1281 = vadd.f32 0.0, %v1280
    %1282 = vdwg.mxu0
    %1283 = vmatpush.msra.mxu0 %v412
    %1284 = vmatpush.msra.mxu0 %v408
    %1285 = vmatpush.msra.mxu0 %v404
    %1286 = vmatpush.msra.mxu0 %v400
    %1287 = vmatpush.msra.mxu0 %v396
    %1288 = vmatpush.msra.mxu0 %v392
    %1289 = vmatpush.msra.mxu0 %v388
    %1290 = vmatpush.msra.mxu0 %v384
    %1291 = vmatpush.msra.mxu0 %v380
    %1292 = vmatpush.msra.mxu0 %v376
    %1293 = vmatpush.msra.mxu0 %v372
    %1294 = vmatpush.msra.mxu0 %v368
    %1295 = vmatpush.msra.mxu0 %v364
    %1296 = vmatpush.msra.mxu0 %v360
    %1297 = vmatpush.msra.mxu0 %v356
    %1298 = vmatpush.msra.mxu0 %v352
    %1299 = vmatmul.f32.gmra.mxu0 %v1214
    %v1300 = vpop.f32.mrf.mxu0
    %v1301 = vadd.f32 0.0, %v1300
    %1302 = vdwg.mxu0
    %v1303 = vadd.f32 %v1219, %v1241
    %v1304 = vadd.f32 %v1220, %v1261
    %v1305 = vadd.f32 %v1221, %v1281
    %v1306 = vadd.f32 %v1222, %v1301
    %v1307 = vxor.u32 %v1303, 2147483648
    %v1308 = vmul.f32 %v1307, 1.442695
    %v1309 = vpow.pop %v1308
    %v1310 = vadd.f32 %v1309, 1.0
    %v1311 = vrcp.pop %v1310
    %v1312 = vmul.f32 %v1310, %v1311
    %v1313 = vsub.f32 1.0, %v1312
    %v1314 = vmul.f32 %v1311, %v1313
    %v1315 = vadd.f32 %v1311, %v1314
    %vm1316 = vweird.f32 %v1310
    %vm1317 = vweird.f32 %v1311
    %vm1318 = vmor %vm1316, %vm1317
    %v1319 = vsel %vm1318, %v1311, %v1315
    %v1320 = vand.u32 2147483647, %v1310
    %vm1321 = vcmp.eq.f32.partialorder %v1320, 8.507059e+37
    %v1322 = vand.u32 %v1310, 2147483648
    %v1323 = vor.u32 1.1754944e-38, %v1322
    %v1324 = vsel %vm1321, %v1323, %v1319
    %v1325 = vmul.f32 1.0, %v1324
    %v1326 = vxor.u32 %v1304, 2147483648
    %v1327 = vmul.f32 %v1326, 1.442695
    %v1328 = vpow.pop %v1327
    %v1329 = vadd.f32 %v1328, 1.0
    %v1330 = vrcp.pop %v1329
    %v1331 = vmul.f32 %v1329, %v1330
    %v1332 = vsub.f32 1.0, %v1331
    %v1333 = vmul.f32 %v1330, %v1332
    %v1334 = vadd.f32 %v1330, %v1333
    %vm1335 = vweird.f32 %v1329
    %vm1336 = vweird.f32 %v1330
    %vm1337 = vmor %vm1335, %vm1336
    %v1338 = vsel %vm1337, %v1330, %v1334
    %v1339 = vand.u32 2147483647, %v1329
    %vm1340 = vcmp.eq.f32.partialorder %v1339, 8.507059e+37
    %v1341 = vand.u32 %v1329, 2147483648
    %v1342 = vor.u32 1.1754944e-38, %v1341
    %v1343 = vsel %vm1340, %v1342, %v1338
    %v1344 = vmul.f32 1.0, %v1343
    %v1345 = vtanh.pop %v1305
    %v1346 = vxor.u32 %v1306, 2147483648
    %v1347 = vmul.f32 %v1346, 1.442695
    %v1348 = vpow.pop %v1347
    %v1349 = vadd.f32 %v1348, 1.0
    %v1350 = vrcp.pop %v1349
    %v1351 = vmul.f32 %v1349, %v1350
    %v1352 = vsub.f32 1.0, %v1351
    %v1353 = vmul.f32 %v1350, %v1352
    %v1354 = vadd.f32 %v1350, %v1353
    %vm1355 = vweird.f32 %v1349
    %vm1356 = vweird.f32 %v1350
    %vm1357 = vmor %vm1355, %vm1356
    %v1358 = vsel %vm1357, %v1350, %v1354
    %v1359 = vand.u32 2147483647, %v1349
    %vm1360 = vcmp.eq.f32.partialorder %v1359, 8.507059e+37
    %v1361 = vand.u32 %v1349, 2147483648
    %v1362 = vor.u32 1.1754944e-38, %v1361
    %v1363 = vsel %vm1360, %v1362, %v1358
    %v1364 = vmul.f32 1.0, %v1363
    %v1365 = vmul.f32 %v1344, %v1215
    %v1366 = vmul.f32 %v1325, %v1345
    %v1367 = vadd.f32 %v1365, %v1366
    %v1368 = vtanh.pop %v1367
    %v1369 = vmul.f32 %v1364, %v1368
    %vm1370 = vcmp.gt.s32.totalorder %v36, 5
    %v1371 = vsel %vm1370, 1, 0
    %1372 = vset.pattern.permute.xlu0 0
    %1373 = vperm.xlu0 %1372, %v1371
    %v1374 = vpop.permute.xlu0 %1373
    %vm1375 = vcmp.eq.s32.totalorder %v1374, 1
    %v1376 = vsel %vm1375, %v1369, %v1214
    %v1377 = vsel %vm1375, %v1367, %v1215
    %s1378 = smul.u32 6, 4
    %s1379 = smul.addr %s1378, 8
    %s1380 = scalar_lea.vmem [#allocation2], %s1379
    %v1381 = vld [vmem:[%s1380] sm:$0xff]
    %v1382 = vld [vmem:[%s1380 + $0x8] sm:$0xff]
    %v1383 = vld [vmem:[%s1380 + $0x10] sm:$0xff]
    %v1384 = vld [vmem:[%s1380 + $0x18] sm:$0xff]
    %1385 = vmatpush.msra.mxu0 %v409
    %1386 = vmatpush.msra.mxu0 %v405
    %1387 = vmatpush.msra.mxu0 %v401
    %1388 = vmatpush.msra.mxu0 %v397
    %1389 = vmatpush.msra.mxu0 %v393
    %1390 = vmatpush.msra.mxu0 %v389
    %1391 = vmatpush.msra.mxu0 %v385
    %1392 = vmatpush.msra.mxu0 %v381
    %1393 = vmatpush.msra.mxu0 %v377
    %1394 = vmatpush.msra.mxu0 %v373
    %1395 = vmatpush.msra.mxu0 %v369
    %1396 = vmatpush.msra.mxu0 %v365
    %1397 = vmatpush.msra.mxu0 %v361
    %1398 = vmatpush.msra.mxu0 %v357
    %1399 = vmatpush.msra.mxu0 %v353
    %1400 = vmatpush.msra.mxu0 %v349
    %1401 = vmatmul.f32.gmra.mxu0 %v1376
    %v1402 = vpop.f32.mrf.mxu0
    %v1403 = vadd.f32 0.0, %v1402
    %1404 = vdwg.mxu0
    %1405 = vmatpush.msra.mxu0 %v410
    %1406 = vmatpush.msra.mxu0 %v406
    %1407 = vmatpush.msra.mxu0 %v402
    %1408 = vmatpush.msra.mxu0 %v398
    %1409 = vmatpush.msra.mxu0 %v394
    %1410 = vmatpush.msra.mxu0 %v390
    %1411 = vmatpush.msra.mxu0 %v386
    %1412 = vmatpush.msra.mxu0 %v382
    %1413 = vmatpush.msra.mxu0 %v378
    %1414 = vmatpush.msra.mxu0 %v374
    %1415 = vmatpush.msra.mxu0 %v370
    %1416 = vmatpush.msra.mxu0 %v366
    %1417 = vmatpush.msra.mxu0 %v362
    %1418 = vmatpush.msra.mxu0 %v358
    %1419 = vmatpush.msra.mxu0 %v354
    %1420 = vmatpush.msra.mxu0 %v350
    %1421 = vmatmul.f32.gmra.mxu0 %v1376
    %v1422 = vpop.f32.mrf.mxu0
    %v1423 = vadd.f32 0.0, %v1422
    %1424 = vdwg.mxu0
    %1425 = vmatpush.msra.mxu0 %v411
    %1426 = vmatpush.msra.mxu0 %v407
    %1427 = vmatpush.msra.mxu0 %v403
    %1428 = vmatpush.msra.mxu0 %v399
    %1429 = vmatpush.msra.mxu0 %v395
    %1430 = vmatpush.msra.mxu0 %v391
    %1431 = vmatpush.msra.mxu0 %v387
    %1432 = vmatpush.msra.mxu0 %v383
    %1433 = vmatpush.msra.mxu0 %v379
    %1434 = vmatpush.msra.mxu0 %v375
    %1435 = vmatpush.msra.mxu0 %v371
    %1436 = vmatpush.msra.mxu0 %v367
    %1437 = vmatpush.msra.mxu0 %v363
    %1438 = vmatpush.msra.mxu0 %v359
    %1439 = vmatpush.msra.mxu0 %v355
    %1440 = vmatpush.msra.mxu0 %v351
    %1441 = vmatmul.f32.gmra.mxu0 %v1376
    %v1442 = vpop.f32.mrf.mxu0
    %v1443 = vadd.f32 0.0, %v1442
    %1444 = vdwg.mxu0
    %1445 = vmatpush.msra.mxu0 %v412
    %1446 = vmatpush.msra.mxu0 %v408
    %1447 = vmatpush.msra.mxu0 %v404
    %1448 = vmatpush.msra.mxu0 %v400
    %1449 = vmatpush.msra.mxu0 %v396
    %1450 = vmatpush.msra.mxu0 %v392
    %1451 = vmatpush.msra.mxu0 %v388
    %1452 = vmatpush.msra.mxu0 %v384
    %1453 = vmatpush.msra.mxu0 %v380
    %1454 = vmatpush.msra.mxu0 %v376
    %1455 = vmatpush.msra.mxu0 %v372
    %1456 = vmatpush.msra.mxu0 %v368
    %1457 = vmatpush.msra.mxu0 %v364
    %1458 = vmatpush.msra.mxu0 %v360
    %1459 = vmatpush.msra.mxu0 %v356
    %1460 = vmatpush.msra.mxu0 %v352
    %1461 = vmatmul.f32.gmra.mxu0 %v1376
    %v1462 = vpop.f32.mrf.mxu0
    %v1463 = vadd.f32 0.0, %v1462
    %1464 = vdwg.mxu0
    %v1465 = vadd.f32 %v1381, %v1403
    %v1466 = vadd.f32 %v1382, %v1423
    %v1467 = vadd.f32 %v1383, %v1443
    %v1468 = vadd.f32 %v1384, %v1463
    %v1469 = vxor.u32 %v1465, 2147483648
    %v1470 = vmul.f32 %v1469, 1.442695
    %v1471 = vpow.pop %v1470
    %v1472 = vadd.f32 %v1471, 1.0
    %v1473 = vrcp.pop %v1472
    %v1474 = vmul.f32 %v1472, %v1473
    %v1475 = vsub.f32 1.0, %v1474
    %v1476 = vmul.f32 %v1473, %v1475
    %v1477 = vadd.f32 %v1473, %v1476
    %vm1478 = vweird.f32 %v1472
    %vm1479 = vweird.f32 %v1473
    %vm1480 = vmor %vm1478, %vm1479
    %v1481 = vsel %vm1480, %v1473, %v1477
    %v1482 = vand.u32 2147483647, %v1472
    %vm1483 = vcmp.eq.f32.partialorder %v1482, 8.507059e+37
    %v1484 = vand.u32 %v1472, 2147483648
    %v1485 = vor.u32 1.1754944e-38, %v1484
    %v1486 = vsel %vm1483, %v1485, %v1481
    %v1487 = vmul.f32 1.0, %v1486
    %v1488 = vxor.u32 %v1466, 2147483648
    %v1489 = vmul.f32 %v1488, 1.442695
    %v1490 = vpow.pop %v1489
    %v1491 = vadd.f32 %v1490, 1.0
    %v1492 = vrcp.pop %v1491
    %v1493 = vmul.f32 %v1491, %v1492
    %v1494 = vsub.f32 1.0, %v1493
    %v1495 = vmul.f32 %v1492, %v1494
    %v1496 = vadd.f32 %v1492, %v1495
    %vm1497 = vweird.f32 %v1491
    %vm1498 = vweird.f32 %v1492
    %vm1499 = vmor %vm1497, %vm1498
    %v1500 = vsel %vm1499, %v1492, %v1496
    %v1501 = vand.u32 2147483647, %v1491
    %vm1502 = vcmp.eq.f32.partialorder %v1501, 8.507059e+37
    %v1503 = vand.u32 %v1491, 2147483648
    %v1504 = vor.u32 1.1754944e-38, %v1503
    %v1505 = vsel %vm1502, %v1504, %v1500
    %v1506 = vmul.f32 1.0, %v1505
    %v1507 = vtanh.pop %v1467
    %v1508 = vxor.u32 %v1468, 2147483648
    %v1509 = vmul.f32 %v1508, 1.442695
    %v1510 = vpow.pop %v1509
    %v1511 = vadd.f32 %v1510, 1.0
    %v1512 = vrcp.pop %v1511
    %v1513 = vmul.f32 %v1511, %v1512
    %v1514 = vsub.f32 1.0, %v1513
    %v1515 = vmul.f32 %v1512, %v1514
    %v1516 = vadd.f32 %v1512, %v1515
    %vm1517 = vweird.f32 %v1511
    %vm1518 = vweird.f32 %v1512
    %vm1519 = vmor %vm1517, %vm1518
    %v1520 = vsel %vm1519, %v1512, %v1516
    %v1521 = vand.u32 2147483647, %v1511
    %vm1522 = vcmp.eq.f32.partialorder %v1521, 8.507059e+37
    %v1523 = vand.u32 %v1511, 2147483648
    %v1524 = vor.u32 1.1754944e-38, %v1523
    %v1525 = vsel %vm1522, %v1524, %v1520
    %v1526 = vmul.f32 1.0, %v1525
    %v1527 = vmul.f32 %v1506, %v1377
    %v1528 = vmul.f32 %v1487, %v1507
    %v1529 = vadd.f32 %v1527, %v1528
    %v1530 = vtanh.pop %v1529
    %v1531 = vmul.f32 %v1526, %v1530
    %vm1532 = vcmp.gt.s32.totalorder %v36, 6
    %v1533 = vsel %vm1532, 1, 0
    %1534 = vset.pattern.permute.xlu0 0
    %1535 = vperm.xlu0 %1534, %v1533
    %v1536 = vpop.permute.xlu0 %1535
    %vm1537 = vcmp.eq.s32.totalorder %v1536, 1
    %v1538 = vsel %vm1537, %v1531, %v1376
    %v1539 = vld [vmem:[#allocation4 + $0x400] sm:$0xff]
    %v1540 = vld [vmem:[#allocation4 + $0x408] sm:$0xff]
    %v1541 = vld [vmem:[#allocation4 + $0x410] sm:$0xff]
    %v1542 = vld [vmem:[#allocation4 + $0x418] sm:$0xff]
    %v1543 = vld [vmem:[#allocation4 + $0x420] sm:$0xff]
    %v1544 = vld [vmem:[#allocation4 + $0x428] sm:$0xff]
    %v1545 = vld [vmem:[#allocation4 + $0x430] sm:$0xff]
    %v1546 = vld [vmem:[#allocation4 + $0x438] sm:$0xff]
    %v1547 = vld [vmem:[#allocation4 + $0x440] sm:$0xff]
    %v1548 = vld [vmem:[#allocation4 + $0x448] sm:$0xff]
    %v1549 = vld [vmem:[#allocation4 + $0x450] sm:$0xff]
    %v1550 = vld [vmem:[#allocation4 + $0x458] sm:$0xff]
    %v1551 = vld [vmem:[#allocation4 + $0x460] sm:$0xff]
    %v1552 = vld [vmem:[#allocation4 + $0x468] sm:$0xff]
    %v1553 = vld [vmem:[#allocation4 + $0x470] sm:$0xff]
    %v1554 = vld [vmem:[#allocation4 + $0x478] sm:$0xff]
    %v1555 = vld [vmem:[#allocation4 + $0x480] sm:$0xff]
    %v1556 = vld [vmem:[#allocation4 + $0x488] sm:$0xff]
    %v1557 = vld [vmem:[#allocation4 + $0x490] sm:$0xff]
    %v1558 = vld [vmem:[#allocation4 + $0x498] sm:$0xff]
    %v1559 = vld [vmem:[#allocation4 + $0x4a0] sm:$0xff]
    %v1560 = vld [vmem:[#allocation4 + $0x4a8] sm:$0xff]
    %v1561 = vld [vmem:[#allocation4 + $0x4b0] sm:$0xff]
    %v1562 = vld [vmem:[#allocation4 + $0x4b8] sm:$0xff]
    %v1563 = vld [vmem:[#allocation4 + $0x4c0] sm:$0xff]
    %v1564 = vld [vmem:[#allocation4 + $0x4c8] sm:$0xff]
    %v1565 = vld [vmem:[#allocation4 + $0x4d0] sm:$0xff]
    %v1566 = vld [vmem:[#allocation4 + $0x4d8] sm:$0xff]
    %v1567 = vld [vmem:[#allocation4 + $0x4e0] sm:$0xff]
    %v1568 = vld [vmem:[#allocation4 + $0x4e8] sm:$0xff]
    %v1569 = vld [vmem:[#allocation4 + $0x4f0] sm:$0xff]
    %v1570 = vld [vmem:[#allocation4 + $0x4f8] sm:$0xff]
    %v1571 = vld [vmem:[#allocation4 + $0x500] sm:$0xff]
    %v1572 = vld [vmem:[#allocation4 + $0x508] sm:$0xff]
    %v1573 = vld [vmem:[#allocation4 + $0x510] sm:$0xff]
    %v1574 = vld [vmem:[#allocation4 + $0x518] sm:$0xff]
    %v1575 = vld [vmem:[#allocation4 + $0x520] sm:$0xff]
    %v1576 = vld [vmem:[#allocation4 + $0x528] sm:$0xff]
    %v1577 = vld [vmem:[#allocation4 + $0x530] sm:$0xff]
    %v1578 = vld [vmem:[#allocation4 + $0x538] sm:$0xff]
    %v1579 = vld [vmem:[#allocation4 + $0x540] sm:$0xff]
    %v1580 = vld [vmem:[#allocation4 + $0x548] sm:$0xff]
    %v1581 = vld [vmem:[#allocation4 + $0x550] sm:$0xff]
    %v1582 = vld [vmem:[#allocation4 + $0x558] sm:$0xff]
    %v1583 = vld [vmem:[#allocation4 + $0x560] sm:$0xff]
    %v1584 = vld [vmem:[#allocation4 + $0x568] sm:$0xff]
    %v1585 = vld [vmem:[#allocation4 + $0x570] sm:$0xff]
    %v1586 = vld [vmem:[#allocation4 + $0x578] sm:$0xff]
    %v1587 = vld [vmem:[#allocation4 + $0x580] sm:$0xff]
    %v1588 = vld [vmem:[#allocation4 + $0x588] sm:$0xff]
    %v1589 = vld [vmem:[#allocation4 + $0x590] sm:$0xff]
    %v1590 = vld [vmem:[#allocation4 + $0x598] sm:$0xff]
    %v1591 = vld [vmem:[#allocation4 + $0x5a0] sm:$0xff]
    %v1592 = vld [vmem:[#allocation4 + $0x5a8] sm:$0xff]
    %v1593 = vld [vmem:[#allocation4 + $0x5b0] sm:$0xff]
    %v1594 = vld [vmem:[#allocation4 + $0x5b8] sm:$0xff]
    %v1595 = vld [vmem:[#allocation4 + $0x5c0] sm:$0xff]
    %v1596 = vld [vmem:[#allocation4 + $0x5c8] sm:$0xff]
    %v1597 = vld [vmem:[#allocation4 + $0x5d0] sm:$0xff]
    %v1598 = vld [vmem:[#allocation4 + $0x5d8] sm:$0xff]
    %v1599 = vld [vmem:[#allocation4 + $0x5e0] sm:$0xff]
    %v1600 = vld [vmem:[#allocation4 + $0x5e8] sm:$0xff]
    %v1601 = vld [vmem:[#allocation4 + $0x5f0] sm:$0xff]
    %v1602 = vld [vmem:[#allocation4 + $0x5f8] sm:$0xff]
    %v1603 = vld [vmem:[#allocation4 + $0x600] sm:$0xff]
    %v1604 = vld [vmem:[#allocation4 + $0x608] sm:$0xff]
    %v1605 = vld [vmem:[#allocation4 + $0x610] sm:$0xff]
    %v1606 = vld [vmem:[#allocation4 + $0x618] sm:$0xff]
    %v1607 = vld [vmem:[#allocation4 + $0x620] sm:$0xff]
    %v1608 = vld [vmem:[#allocation4 + $0x628] sm:$0xff]
    %v1609 = vld [vmem:[#allocation4 + $0x630] sm:$0xff]
    %v1610 = vld [vmem:[#allocation4 + $0x638] sm:$0xff]
    %v1611 = vld [vmem:[#allocation4 + $0x640] sm:$0xff]
    %v1612 = vld [vmem:[#allocation4 + $0x648] sm:$0xff]
    %v1613 = vld [vmem:[#allocation4 + $0x650] sm:$0xff]
    %v1614 = vld [vmem:[#allocation4 + $0x658] sm:$0xff]
    %v1615 = vld [vmem:[#allocation4 + $0x660] sm:$0xff]
    %v1616 = vld [vmem:[#allocation4 + $0x668] sm:$0xff]
    %v1617 = vld [vmem:[#allocation4 + $0x670] sm:$0xff]
    %v1618 = vld [vmem:[#allocation4 + $0x678] sm:$0xff]
    %v1619 = vld [vmem:[#allocation4 + $0x680] sm:$0xff]
    %v1620 = vld [vmem:[#allocation4 + $0x688] sm:$0xff]
    %v1621 = vld [vmem:[#allocation4 + $0x690] sm:$0xff]
    %v1622 = vld [vmem:[#allocation4 + $0x698] sm:$0xff]
    %v1623 = vld [vmem:[#allocation4 + $0x6a0] sm:$0xff]
    %v1624 = vld [vmem:[#allocation4 + $0x6a8] sm:$0xff]
    %v1625 = vld [vmem:[#allocation4 + $0x6b0] sm:$0xff]
    %v1626 = vld [vmem:[#allocation4 + $0x6b8] sm:$0xff]
    %v1627 = vld [vmem:[#allocation4 + $0x6c0] sm:$0xff]
    %v1628 = vld [vmem:[#allocation4 + $0x6c8] sm:$0xff]
    %v1629 = vld [vmem:[#allocation4 + $0x6d0] sm:$0xff]
    %v1630 = vld [vmem:[#allocation4 + $0x6d8] sm:$0xff]
    %v1631 = vld [vmem:[#allocation4 + $0x6e0] sm:$0xff]
    %v1632 = vld [vmem:[#allocation4 + $0x6e8] sm:$0xff]
    %v1633 = vld [vmem:[#allocation4 + $0x6f0] sm:$0xff]
    %v1634 = vld [vmem:[#allocation4 + $0x6f8] sm:$0xff]
    %v1635 = vld [vmem:[#allocation4 + $0x700] sm:$0xff]
    %v1636 = vld [vmem:[#allocation4 + $0x708] sm:$0xff]
    %v1637 = vld [vmem:[#allocation4 + $0x710] sm:$0xff]
    %v1638 = vld [vmem:[#allocation4 + $0x718] sm:$0xff]
    %v1639 = vld [vmem:[#allocation4 + $0x720] sm:$0xff]
    %v1640 = vld [vmem:[#allocation4 + $0x728] sm:$0xff]
    %v1641 = vld [vmem:[#allocation4 + $0x730] sm:$0xff]
    %v1642 = vld [vmem:[#allocation4 + $0x738] sm:$0xff]
    %v1643 = vld [vmem:[#allocation4 + $0x740] sm:$0xff]
    %v1644 = vld [vmem:[#allocation4 + $0x748] sm:$0xff]
    %v1645 = vld [vmem:[#allocation4 + $0x750] sm:$0xff]
    %v1646 = vld [vmem:[#allocation4 + $0x758] sm:$0xff]
    %v1647 = vld [vmem:[#allocation4 + $0x760] sm:$0xff]
    %v1648 = vld [vmem:[#allocation4 + $0x768] sm:$0xff]
    %v1649 = vld [vmem:[#allocation4 + $0x770] sm:$0xff]
    %v1650 = vld [vmem:[#allocation4 + $0x778] sm:$0xff]
    %v1651 = vld [vmem:[#allocation4 + $0x780] sm:$0xff]
    %v1652 = vld [vmem:[#allocation4 + $0x788] sm:$0xff]
    %v1653 = vld [vmem:[#allocation4 + $0x790] sm:$0xff]
    %v1654 = vld [vmem:[#allocation4 + $0x798] sm:$0xff]
    %v1655 = vld [vmem:[#allocation4 + $0x7a0] sm:$0xff]
    %v1656 = vld [vmem:[#allocation4 + $0x7a8] sm:$0xff]
    %v1657 = vld [vmem:[#allocation4 + $0x7b0] sm:$0xff]
    %v1658 = vld [vmem:[#allocation4 + $0x7b8] sm:$0xff]
    %v1659 = vld [vmem:[#allocation4 + $0x7c0] sm:$0xff]
    %v1660 = vld [vmem:[#allocation4 + $0x7c8] sm:$0xff]
    %v1661 = vld [vmem:[#allocation4 + $0x7d0] sm:$0xff]
    %v1662 = vld [vmem:[#allocation4 + $0x7d8] sm:$0xff]
    %v1663 = vld [vmem:[#allocation4 + $0x7e0] sm:$0xff]
    %v1664 = vld [vmem:[#allocation4 + $0x7e8] sm:$0xff]
    %v1665 = vld [vmem:[#allocation4 + $0x7f0] sm:$0xff]
    %v1666 = vld [vmem:[#allocation4 + $0x7f8] sm:$0xff]
    %1667 = vmatpush.msra.mxu0 %v1663
    %1668 = vmatpush.msra.mxu0 %v1659
    %1669 = vmatpush.msra.mxu0 %v1655
    %1670 = vmatpush.msra.mxu0 %v1651
    %1671 = vmatpush.msra.mxu0 %v1647
    %1672 = vmatpush.msra.mxu0 %v1643
    %1673 = vmatpush.msra.mxu0 %v1639
    %1674 = vmatpush.msra.mxu0 %v1635
    %1675 = vmatpush.msra.mxu0 %v1631
    %1676 = vmatpush.msra.mxu0 %v1627
    %1677 = vmatpush.msra.mxu0 %v1623
    %1678 = vmatpush.msra.mxu0 %v1619
    %1679 = vmatpush.msra.mxu0 %v1615
    %1680 = vmatpush.msra.mxu0 %v1611
    %1681 = vmatpush.msra.mxu0 %v1607
    %1682 = vmatpush.msra.mxu0 %v1603
    %1683 = vmatmul.f32.gmra.mxu0 %v1538
    %v1684 = vpop.f32.mrf.mxu0
    %v1685 = vadd.f32 0.0, %v1684
    %1686 = vdwg.mxu0
    %1687 = vmatpush.msra.mxu0 %v1664
    %1688 = vmatpush.msra.mxu0 %v1660
    %1689 = vmatpush.msra.mxu0 %v1656
    %1690 = vmatpush.msra.mxu0 %v1652
    %1691 = vmatpush.msra.mxu0 %v1648
    %1692 = vmatpush.msra.mxu0 %v1644
    %1693 = vmatpush.msra.mxu0 %v1640
    %1694 = vmatpush.msra.mxu0 %v1636
    %1695 = vmatpush.msra.mxu0 %v1632
    %1696 = vmatpush.msra.mxu0 %v1628
    %1697 = vmatpush.msra.mxu0 %v1624
    %1698 = vmatpush.msra.mxu0 %v1620
    %1699 = vmatpush.msra.mxu0 %v1616
    %1700 = vmatpush.msra.mxu0 %v1612
    %1701 = vmatpush.msra.mxu0 %v1608
    %1702 = vmatpush.msra.mxu0 %v1604
    %1703 = vmatmul.f32.gmra.mxu0 %v1538
    %v1704 = vpop.f32.mrf.mxu0
    %v1705 = vadd.f32 0.0, %v1704
    %1706 = vdwg.mxu0
    %1707 = vmatpush.msra.mxu0 %v1665
    %1708 = vmatpush.msra.mxu0 %v1661
    %1709 = vmatpush.msra.mxu0 %v1657
    %1710 = vmatpush.msra.mxu0 %v1653
    %1711 = vmatpush.msra.mxu0 %v1649
    %1712 = vmatpush.msra.mxu0 %v1645
    %1713 = vmatpush.msra.mxu0 %v1641
    %1714 = vmatpush.msra.mxu0 %v1637
    %1715 = vmatpush.msra.mxu0 %v1633
    %1716 = vmatpush.msra.mxu0 %v1629
    %1717 = vmatpush.msra.mxu0 %v1625
    %1718 = vmatpush.msra.mxu0 %v1621
    %1719 = vmatpush.msra.mxu0 %v1617
    %1720 = vmatpush.msra.mxu0 %v1613
    %1721 = vmatpush.msra.mxu0 %v1609
    %1722 = vmatpush.msra.mxu0 %v1605
    %1723 = vmatmul.f32.gmra.mxu0 %v1538
    %v1724 = vpop.f32.mrf.mxu0
    %v1725 = vadd.f32 0.0, %v1724
    %1726 = vdwg.mxu0
    %1727 = vmatpush.msra.mxu0 %v1666
    %1728 = vmatpush.msra.mxu0 %v1662
    %1729 = vmatpush.msra.mxu0 %v1658
    %1730 = vmatpush.msra.mxu0 %v1654
    %1731 = vmatpush.msra.mxu0 %v1650
    %1732 = vmatpush.msra.mxu0 %v1646
    %1733 = vmatpush.msra.mxu0 %v1642
    %1734 = vmatpush.msra.mxu0 %v1638
    %1735 = vmatpush.msra.mxu0 %v1634
    %1736 = vmatpush.msra.mxu0 %v1630
    %1737 = vmatpush.msra.mxu0 %v1626
    %1738 = vmatpush.msra.mxu0 %v1622
    %1739 = vmatpush.msra.mxu0 %v1618
    %1740 = vmatpush.msra.mxu0 %v1614
    %1741 = vmatpush.msra.mxu0 %v1610
    %1742 = vmatpush.msra.mxu0 %v1606
    %1743 = vmatmul.f32.gmra.mxu0 %v1538
    %v1744 = vpop.f32.mrf.mxu0
    %v1745 = vadd.f32 0.0, %v1744
    %1746 = vdwg.mxu0
    %1747 = vmatpush.msra.mxu0 %v1599
    %1748 = vmatpush.msra.mxu0 %v1595
    %1749 = vmatpush.msra.mxu0 %v1591
    %1750 = vmatpush.msra.mxu0 %v1587
    %1751 = vmatpush.msra.mxu0 %v1583
    %1752 = vmatpush.msra.mxu0 %v1579
    %1753 = vmatpush.msra.mxu0 %v1575
    %1754 = vmatpush.msra.mxu0 %v1571
    %1755 = vmatpush.msra.mxu0 %v1567
    %1756 = vmatpush.msra.mxu0 %v1563
    %1757 = vmatpush.msra.mxu0 %v1559
    %1758 = vmatpush.msra.mxu0 %v1555
    %1759 = vmatpush.msra.mxu0 %v1551
    %1760 = vmatpush.msra.mxu0 %v1547
    %1761 = vmatpush.msra.mxu0 %v1543
    %1762 = vmatpush.msra.mxu0 %v1539
    %1763 = vmatmul.f32.gmra.mxu0 %v86
    %v1764 = vpop.f32.mrf.mxu0
    %v1765 = vadd.f32 %v1685, %v1764
    %1766 = vdwg.mxu0
    %1767 = vmatpush.msra.mxu0 %v1600
    %1768 = vmatpush.msra.mxu0 %v1596
    %1769 = vmatpush.msra.mxu0 %v1592
    %1770 = vmatpush.msra.mxu0 %v1588
    %1771 = vmatpush.msra.mxu0 %v1584
    %1772 = vmatpush.msra.mxu0 %v1580
    %1773 = vmatpush.msra.mxu0 %v1576
    %1774 = vmatpush.msra.mxu0 %v1572
    %1775 = vmatpush.msra.mxu0 %v1568
    %1776 = vmatpush.msra.mxu0 %v1564
    %1777 = vmatpush.msra.mxu0 %v1560
    %1778 = vmatpush.msra.mxu0 %v1556
    %1779 = vmatpush.msra.mxu0 %v1552
    %1780 = vmatpush.msra.mxu0 %v1548
    %1781 = vmatpush.msra.mxu0 %v1544
    %1782 = vmatpush.msra.mxu0 %v1540
    %1783 = vmatmul.f32.gmra.mxu0 %v86
    %v1784 = vpop.f32.mrf.mxu0
    %v1785 = vadd.f32 %v1705, %v1784
    %1786 = vdwg.mxu0
    %1787 = vmatpush.msra.mxu0 %v1601
    %1788 = vmatpush.msra.mxu0 %v1597
    %1789 = vmatpush.msra.mxu0 %v1593
    %1790 = vmatpush.msra.mxu0 %v1589
    %1791 = vmatpush.msra.mxu0 %v1585
    %1792 = vmatpush.msra.mxu0 %v1581
    %1793 = vmatpush.msra.mxu0 %v1577
    %1794 = vmatpush.msra.mxu0 %v1573
    %1795 = vmatpush.msra.mxu0 %v1569
    %1796 = vmatpush.msra.mxu0 %v1565
    %1797 = vmatpush.msra.mxu0 %v1561
    %1798 = vmatpush.msra.mxu0 %v1557
    %1799 = vmatpush.msra.mxu0 %v1553
    %1800 = vmatpush.msra.mxu0 %v1549
    %1801 = vmatpush.msra.mxu0 %v1545
    %1802 = vmatpush.msra.mxu0 %v1541
    %1803 = vmatmul.f32.gmra.mxu0 %v86
    %v1804 = vpop.f32.mrf.mxu0
    %v1805 = vadd.f32 %v1725, %v1804
    %1806 = vdwg.mxu0
    %1807 = vmatpush.msra.mxu0 %v1602
    %1808 = vmatpush.msra.mxu0 %v1598
    %1809 = vmatpush.msra.mxu0 %v1594
    %1810 = vmatpush.msra.mxu0 %v1590
    %1811 = vmatpush.msra.mxu0 %v1586
    %1812 = vmatpush.msra.mxu0 %v1582
    %1813 = vmatpush.msra.mxu0 %v1578
    %1814 = vmatpush.msra.mxu0 %v1574
    %1815 = vmatpush.msra.mxu0 %v1570
    %1816 = vmatpush.msra.mxu0 %v1566
    %1817 = vmatpush.msra.mxu0 %v1562
    %1818 = vmatpush.msra.mxu0 %v1558
    %1819 = vmatpush.msra.mxu0 %v1554
    %1820 = vmatpush.msra.mxu0 %v1550
    %1821 = vmatpush.msra.mxu0 %v1546
    %1822 = vmatpush.msra.mxu0 %v1542
    %1823 = vmatmul.f32.gmra.mxu0 %v86
    %v1824 = vpop.f32.mrf.mxu0
    %v1825 = vadd.f32 %v1745, %v1824
    %1826 = vdwg.mxu0
    %s1827 = scalar_lea.vmem [#allocation4], 3073
    %v1828 = vld [vmem:[%s1827] ss:$8 sm:$0xf]
    %v1830 = vperm.slane %v1828, 0
    %v1831 = vperm.slane %v1828, 1
    %v1832 = vperm.slane %v1828, 2
    %v1833 = vperm.slane %v1828, 3
    %v1838 = vadd.f32 %v1765, %v1830
    %v1839 = vadd.f32 %v1785, %v1831
    %v1840 = vadd.f32 %v1805, %v1832
    %v1841 = vadd.f32 %v1825, %v1833
    %1842 = vst [vmem:[#allocation3] sm:$0xff] %v1838
    %1843 = vst [vmem:[#allocation3 + $0x8] sm:$0xff] %v1839
    %1844 = vst [vmem:[#allocation3 + $0x10] sm:$0xff] %v1840
    %1845 = vst [vmem:[#allocation3 + $0x18] sm:$0xff] %v1841
    %v1846 = vld [vmem:[#allocation3] ss:$8 sm:$0xf]
    %v1847 = vld [vmem:[#allocation4 + $0x800] sm:$0xff]
    %v1848 = vld [vmem:[#allocation4 + $0x808] sm:$0xff]
    %v1849 = vld [vmem:[#allocation4 + $0x810] sm:$0xff]
    %v1850 = vld [vmem:[#allocation4 + $0x818] sm:$0xff]
    %v1851 = vld [vmem:[#allocation4 + $0x820] sm:$0xff]
    %v1852 = vld [vmem:[#allocation4 + $0x828] sm:$0xff]
    %v1853 = vld [vmem:[#allocation4 + $0x830] sm:$0xff]
    %v1854 = vld [vmem:[#allocation4 + $0x838] sm:$0xff]
    %v1855 = vld [vmem:[#allocation4 + $0x840] sm:$0xff]
    %v1856 = vld [vmem:[#allocation4 + $0x848] sm:$0xff]
    %v1857 = vld [vmem:[#allocation4 + $0x850] sm:$0xff]
    %v1858 = vld [vmem:[#allocation4 + $0x858] sm:$0xff]
    %v1859 = vld [vmem:[#allocation4 + $0x860] sm:$0xff]
    %v1860 = vld [vmem:[#allocation4 + $0x868] sm:$0xff]
    %v1861 = vld [vmem:[#allocation4 + $0x870] sm:$0xff]
    %v1862 = vld [vmem:[#allocation4 + $0x878] sm:$0xff]
    %v1863 = vld [vmem:[#allocation4 + $0x880] sm:$0xff]
    %v1864 = vld [vmem:[#allocation4 + $0x888] sm:$0xff]
    %v1865 = vld [vmem:[#allocation4 + $0x890] sm:$0xff]
    %v1866 = vld [vmem:[#allocation4 + $0x898] sm:$0xff]
    %v1867 = vld [vmem:[#allocation4 + $0x8a0] sm:$0xff]
    %v1868 = vld [vmem:[#allocation4 + $0x8a8] sm:$0xff]
    %v1869 = vld [vmem:[#allocation4 + $0x8b0] sm:$0xff]
    %v1870 = vld [vmem:[#allocation4 + $0x8b8] sm:$0xff]
    %v1871 = vld [vmem:[#allocation4 + $0x8c0] sm:$0xff]
    %v1872 = vld [vmem:[#allocation4 + $0x8c8] sm:$0xff]
    %v1873 = vld [vmem:[#allocation4 + $0x8d0] sm:$0xff]
    %v1874 = vld [vmem:[#allocation4 + $0x8d8] sm:$0xff]
    %v1875 = vld [vmem:[#allocation4 + $0x8e0] sm:$0xff]
    %v1876 = vld [vmem:[#allocation4 + $0x8e8] sm:$0xff]
    %v1877 = vld [vmem:[#allocation4 + $0x8f0] sm:$0xff]
    %v1878 = vld [vmem:[#allocation4 + $0x8f8] sm:$0xff]
    %v1879 = vld [vmem:[#allocation4 + $0x900] sm:$0xff]
    %v1880 = vld [vmem:[#allocation4 + $0x908] sm:$0xff]
    %v1881 = vld [vmem:[#allocation4 + $0x910] sm:$0xff]
    %v1882 = vld [vmem:[#allocation4 + $0x918] sm:$0xff]
    %v1883 = vld [vmem:[#allocation4 + $0x920] sm:$0xff]
    %v1884 = vld [vmem:[#allocation4 + $0x928] sm:$0xff]
    %v1885 = vld [vmem:[#allocation4 + $0x930] sm:$0xff]
    %v1886 = vld [vmem:[#allocation4 + $0x938] sm:$0xff]
    %v1887 = vld [vmem:[#allocation4 + $0x940] sm:$0xff]
    %v1888 = vld [vmem:[#allocation4 + $0x948] sm:$0xff]
    %v1889 = vld [vmem:[#allocation4 + $0x950] sm:$0xff]
    %v1890 = vld [vmem:[#allocation4 + $0x958] sm:$0xff]
    %v1891 = vld [vmem:[#allocation4 + $0x960] sm:$0xff]
    %v1892 = vld [vmem:[#allocation4 + $0x968] sm:$0xff]
    %v1893 = vld [vmem:[#allocation4 + $0x970] sm:$0xff]
    %v1894 = vld [vmem:[#allocation4 + $0x978] sm:$0xff]
    %v1895 = vld [vmem:[#allocation4 + $0x980] sm:$0xff]
    %v1896 = vld [vmem:[#allocation4 + $0x988] sm:$0xff]
    %v1897 = vld [vmem:[#allocation4 + $0x990] sm:$0xff]
    %v1898 = vld [vmem:[#allocation4 + $0x998] sm:$0xff]
    %v1899 = vld [vmem:[#allocation4 + $0x9a0] sm:$0xff]
    %v1900 = vld [vmem:[#allocation4 + $0x9a8] sm:$0xff]
    %v1901 = vld [vmem:[#allocation4 + $0x9b0] sm:$0xff]
    %v1902 = vld [vmem:[#allocation4 + $0x9b8] sm:$0xff]
    %v1903 = vld [vmem:[#allocation4 + $0x9c0] sm:$0xff]
    %v1904 = vld [vmem:[#allocation4 + $0x9c8] sm:$0xff]
    %v1905 = vld [vmem:[#allocation4 + $0x9d0] sm:$0xff]
    %v1906 = vld [vmem:[#allocation4 + $0x9d8] sm:$0xff]
    %v1907 = vld [vmem:[#allocation4 + $0x9e0] sm:$0xff]
    %v1908 = vld [vmem:[#allocation4 + $0x9e8] sm:$0xff]
    %v1909 = vld [vmem:[#allocation4 + $0x9f0] sm:$0xff]
    %v1910 = vld [vmem:[#allocation4 + $0x9f8] sm:$0xff]
    %1911 = vmatpush.msra.mxu0 %v1907
    %1912 = vmatpush.msra.mxu0 %v1903
    %1913 = vmatpush.msra.mxu0 %v1899
    %1914 = vmatpush.msra.mxu0 %v1895
    %1915 = vmatpush.msra.mxu0 %v1891
    %1916 = vmatpush.msra.mxu0 %v1887
    %1917 = vmatpush.msra.mxu0 %v1883
    %1918 = vmatpush.msra.mxu0 %v1879
    %1919 = vmatpush.msra.mxu0 %v1875
    %1920 = vmatpush.msra.mxu0 %v1871
    %1921 = vmatpush.msra.mxu0 %v1867
    %1922 = vmatpush.msra.mxu0 %v1863
    %1923 = vmatpush.msra.mxu0 %v1859
    %1924 = vmatpush.msra.mxu0 %v1855
    %1925 = vmatpush.msra.mxu0 %v1851
    %1926 = vmatpush.msra.mxu0 %v1847
    %1927 = vmatmul.f32.gmra.mxu0 0.0
    %v1928 = vpop.f32.mrf.mxu0
    %v1929 = vadd.f32 0.0, %v1928
    %1930 = vdwg.mxu0
    %1931 = vmatpush.msra.mxu0 %v1908
    %1932 = vmatpush.msra.mxu0 %v1904
    %1933 = vmatpush.msra.mxu0 %v1900
    %1934 = vmatpush.msra.mxu0 %v1896
    %1935 = vmatpush.msra.mxu0 %v1892
    %1936 = vmatpush.msra.mxu0 %v1888
    %1937 = vmatpush.msra.mxu0 %v1884
    %1938 = vmatpush.msra.mxu0 %v1880
    %1939 = vmatpush.msra.mxu0 %v1876
    %1940 = vmatpush.msra.mxu0 %v1872
    %1941 = vmatpush.msra.mxu0 %v1868
    %1942 = vmatpush.msra.mxu0 %v1864
    %1943 = vmatpush.msra.mxu0 %v1860
    %1944 = vmatpush.msra.mxu0 %v1856
    %1945 = vmatpush.msra.mxu0 %v1852
    %1946 = vmatpush.msra.mxu0 %v1848
    %1947 = vmatmul.f32.gmra.mxu0 0.0
    %v1948 = vpop.f32.mrf.mxu0
    %v1949 = vadd.f32 0.0, %v1948
    %1950 = vdwg.mxu0
    %1951 = vmatpush.msra.mxu0 %v1909
    %1952 = vmatpush.msra.mxu0 %v1905
    %1953 = vmatpush.msra.mxu0 %v1901
    %1954 = vmatpush.msra.mxu0 %v1897
    %1955 = vmatpush.msra.mxu0 %v1893
    %1956 = vmatpush.msra.mxu0 %v1889
    %1957 = vmatpush.msra.mxu0 %v1885
    %1958 = vmatpush.msra.mxu0 %v1881
    %1959 = vmatpush.msra.mxu0 %v1877
    %1960 = vmatpush.msra.mxu0 %v1873
    %1961 = vmatpush.msra.mxu0 %v1869
    %1962 = vmatpush.msra.mxu0 %v1865
    %1963 = vmatpush.msra.mxu0 %v1861
    %1964 = vmatpush.msra.mxu0 %v1857
    %1965 = vmatpush.msra.mxu0 %v1853
    %1966 = vmatpush.msra.mxu0 %v1849
    %1967 = vmatmul.f32.gmra.mxu0 0.0
    %v1968 = vpop.f32.mrf.mxu0
    %v1969 = vadd.f32 0.0, %v1968
    %1970 = vdwg.mxu0
    %1971 = vmatpush.msra.mxu0 %v1910
    %1972 = vmatpush.msra.mxu0 %v1906
    %1973 = vmatpush.msra.mxu0 %v1902
    %1974 = vmatpush.msra.mxu0 %v1898
    %1975 = vmatpush.msra.mxu0 %v1894
    %1976 = vmatpush.msra.mxu0 %v1890
    %1977 = vmatpush.msra.mxu0 %v1886
    %1978 = vmatpush.msra.mxu0 %v1882
    %1979 = vmatpush.msra.mxu0 %v1878
    %1980 = vmatpush.msra.mxu0 %v1874
    %1981 = vmatpush.msra.mxu0 %v1870
    %1982 = vmatpush.msra.mxu0 %v1866
    %1983 = vmatpush.msra.mxu0 %v1862
    %1984 = vmatpush.msra.mxu0 %v1858
    %1985 = vmatpush.msra.mxu0 %v1854
    %1986 = vmatpush.msra.mxu0 %v1850
    %1987 = vmatmul.f32.gmra.mxu0 0.0
    %v1988 = vpop.f32.mrf.mxu0
    %v1989 = vadd.f32 0.0, %v1988
    %1990 = vdwg.mxu0
    %v1995 = vrot.slane %v1949, 7
    %v1996 = vrot.slane %v1969, 6
    %v1997 = vrot.slane %v1989, 5
    %vm1998 = vcmask 1040384
    %v1999 = vsel %vm1998, %v1929, %v1995
    %vm2000 = vcmask 1042434
    %v2001 = vsel %vm2000, %v1996, %v1997
    %vm2002 = vcmask 1041408
    %v2003 = vsel %vm2002, %v1999, %v2001
    %v2005 = vadd.f32 %v1846, %v2003
    %v2006 = vxor.u32 %v2005, 2147483648
    %v2007 = vmul.f32 %v2006, 1.442695
    %v2008 = vpow.pop %v2007
    %v2009 = vadd.f32 %v2008, 1.0
    %v2010 = vrcp.pop %v2009
    %v2011 = vmul.f32 %v2009, %v2010
    %v2012 = vsub.f32 1.0, %v2011
    %v2013 = vmul.f32 %v2010, %v2012
    %v2014 = vadd.f32 %v2010, %v2013
    %vm2015 = vweird.f32 %v2009
    %vm2016 = vweird.f32 %v2010
    %vm2017 = vmor %vm2015, %vm2016
    %v2018 = vsel %vm2017, %v2010, %v2014
    %v2019 = vand.u32 2147483647, %v2009
    %vm2020 = vcmp.eq.f32.partialorder %v2019, 8.507059e+37
    %v2021 = vand.u32 %v2009, 2147483648
    %v2022 = vor.u32 1.1754944e-38, %v2021
    %v2023 = vsel %vm2020, %v2022, %v2018
    %v2024 = vmul.f32 1.0, %v2023
    %v2026 = vrot.slane %v2005, 1
    %v2028 = vxor.u32 %v2026, 2147483648
    %v2029 = vmul.f32 %v2028, 1.442695
    %v2030 = vpow.pop %v2029
    %v2031 = vadd.f32 %v2030, 1.0
    %v2032 = vrcp.pop %v2031
    %v2033 = vmul.f32 %v2031, %v2032
    %v2034 = vsub.f32 1.0, %v2033
    %v2035 = vmul.f32 %v2032, %v2034
    %v2036 = vadd.f32 %v2032, %v2035
    %vm2037 = vweird.f32 %v2031
    %vm2038 = vweird.f32 %v2032
    %vm2039 = vmor %vm2037, %vm2038
    %v2040 = vsel %vm2039, %v2032, %v2036
    %v2041 = vand.u32 2147483647, %v2031
    %vm2042 = vcmp.eq.f32.partialorder %v2041, 8.507059e+37
    %v2043 = vand.u32 %v2031, 2147483648
    %v2044 = vor.u32 1.1754944e-38, %v2043
    %v2045 = vsel %vm2042, %v2044, %v2040
    %v2046 = vmul.f32 1.0, %v2045
    %v2047 = vrot.slane %v2005, 2
    %v2049 = vtanh.pop %v2047
    %v2050 = vrot.slane %v2005, 3
    %v2052 = vxor.u32 %v2050, 2147483648
    %v2053 = vmul.f32 %v2052, 1.442695
    %v2054 = vpow.pop %v2053
    %v2055 = vadd.f32 %v2054, 1.0
    %v2056 = vrcp.pop %v2055
    %v2057 = vmul.f32 %v2055, %v2056
    %v2058 = vsub.f32 1.0, %v2057
    %v2059 = vmul.f32 %v2056, %v2058
    %v2060 = vadd.f32 %v2056, %v2059
    %vm2061 = vweird.f32 %v2055
    %vm2062 = vweird.f32 %v2056
    %vm2063 = vmor %vm2061, %vm2062
    %v2064 = vsel %vm2063, %v2056, %v2060
    %v2065 = vand.u32 2147483647, %v2055
    %vm2066 = vcmp.eq.f32.partialorder %v2065, 8.507059e+37
    %v2067 = vand.u32 %v2055, 2147483648
    %v2068 = vor.u32 1.1754944e-38, %v2067
    %v2069 = vsel %vm2066, %v2068, %v2064
    %v2070 = vmul.f32 1.0, %v2069
    %v2071 = vmul.f32 %v2046, 0.0
    %v2072 = vmul.f32 %v2024, %v2049
    %v2073 = vadd.f32 %v2071, %v2072
    %v2074 = vtanh.pop %v2073
    %v2075 = vmul.f32 %v2070, %v2074
    %s2076 = scalar_lea.vmem [#allocation3], 1
    %v2077 = vld [vmem:[%s2076] ss:$8 sm:$0xf]
    %2078 = vmatpush.msra.mxu0 %v1907
    %2079 = vmatpush.msra.mxu0 %v1903
    %2080 = vmatpush.msra.mxu0 %v1899
    %2081 = vmatpush.msra.mxu0 %v1895
    %2082 = vmatpush.msra.mxu0 %v1891
    %2083 = vmatpush.msra.mxu0 %v1887
    %2084 = vmatpush.msra.mxu0 %v1883
    %2085 = vmatpush.msra.mxu0 %v1879
    %2086 = vmatpush.msra.mxu0 %v1875
    %2087 = vmatpush.msra.mxu0 %v1871
    %2088 = vmatpush.msra.mxu0 %v1867
    %2089 = vmatpush.msra.mxu0 %v1863
    %2090 = vmatpush.msra.mxu0 %v1859
    %2091 = vmatpush.msra.mxu0 %v1855
    %2092 = vmatpush.msra.mxu0 %v1851
    %2093 = vmatpush.msra.mxu0 %v1847
    %2094 = vmatmul.f32.gmra.mxu0 %v2075
    %v2095 = vpop.f32.mrf.mxu0
    %v2096 = vadd.f32 0.0, %v2095
    %2097 = vdwg.mxu0
    %2098 = vmatpush.msra.mxu0 %v1908
    %2099 = vmatpush.msra.mxu0 %v1904
    %2100 = vmatpush.msra.mxu0 %v1900
    %2101 = vmatpush.msra.mxu0 %v1896
    %2102 = vmatpush.msra.mxu0 %v1892
    %2103 = vmatpush.msra.mxu0 %v1888
    %2104 = vmatpush.msra.mxu0 %v1884
    %2105 = vmatpush.msra.mxu0 %v1880
    %2106 = vmatpush.msra.mxu0 %v1876
    %2107 = vmatpush.msra.mxu0 %v1872
    %2108 = vmatpush.msra.mxu0 %v1868
    %2109 = vmatpush.msra.mxu0 %v1864
    %2110 = vmatpush.msra.mxu0 %v1860
    %2111 = vmatpush.msra.mxu0 %v1856
    %2112 = vmatpush.msra.mxu0 %v1852
    %2113 = vmatpush.msra.mxu0 %v1848
    %2114 = vmatmul.f32.gmra.mxu0 %v2075
    %v2115 = vpop.f32.mrf.mxu0
    %v2116 = vadd.f32 0.0, %v2115
    %2117 = vdwg.mxu0
    %2118 = vmatpush.msra.mxu0 %v1909
    %2119 = vmatpush.msra.mxu0 %v1905
    %2120 = vmatpush.msra.mxu0 %v1901
    %2121 = vmatpush.msra.mxu0 %v1897
    %2122 = vmatpush.msra.mxu0 %v1893
    %2123 = vmatpush.msra.mxu0 %v1889
    %2124 = vmatpush.msra.mxu0 %v1885
    %2125 = vmatpush.msra.mxu0 %v1881
    %2126 = vmatpush.msra.mxu0 %v1877
    %2127 = vmatpush.msra.mxu0 %v1873
    %2128 = vmatpush.msra.mxu0 %v1869
    %2129 = vmatpush.msra.mxu0 %v1865
    %2130 = vmatpush.msra.mxu0 %v1861
    %2131 = vmatpush.msra.mxu0 %v1857
    %2132 = vmatpush.msra.mxu0 %v1853
    %2133 = vmatpush.msra.mxu0 %v1849
    %2134 = vmatmul.f32.gmra.mxu0 %v2075
    %v2135 = vpop.f32.mrf.mxu0
    %v2136 = vadd.f32 0.0, %v2135
    %2137 = vdwg.mxu0
    %2138 = vmatpush.msra.mxu0 %v1910
    %2139 = vmatpush.msra.mxu0 %v1906
    %2140 = vmatpush.msra.mxu0 %v1902
    %2141 = vmatpush.msra.mxu0 %v1898
    %2142 = vmatpush.msra.mxu0 %v1894
    %2143 = vmatpush.msra.mxu0 %v1890
    %2144 = vmatpush.msra.mxu0 %v1886
    %2145 = vmatpush.msra.mxu0 %v1882
    %2146 = vmatpush.msra.mxu0 %v1878
    %2147 = vmatpush.msra.mxu0 %v1874
    %2148 = vmatpush.msra.mxu0 %v1870
    %2149 = vmatpush.msra.mxu0 %v1866
    %2150 = vmatpush.msra.mxu0 %v1862
    %2151 = vmatpush.msra.mxu0 %v1858
    %2152 = vmatpush.msra.mxu0 %v1854
    %2153 = vmatpush.msra.mxu0 %v1850
    %2154 = vmatmul.f32.gmra.mxu0 %v2075
    %v2155 = vpop.f32.mrf.mxu0
    %v2156 = vadd.f32 0.0, %v2155
    %2157 = vdwg.mxu0
    %v2162 = vrot.slane %v2116, 7
    %v2163 = vrot.slane %v2136, 6
    %v2164 = vrot.slane %v2156, 5
    %v2165 = vsel %vm1998, %v2096, %v2162
    %v2166 = vsel %vm2000, %v2163, %v2164
    %v2167 = vsel %vm2002, %v2165, %v2166
    %v2169 = vadd.f32 %v2077, %v2167
    %v2170 = vxor.u32 %v2169, 2147483648
    %v2171 = vmul.f32 %v2170, 1.442695
    %v2172 = vpow.pop %v2171
    %v2173 = vadd.f32 %v2172, 1.0
    %v2174 = vrcp.pop %v2173
    %v2175 = vmul.f32 %v2173, %v2174
    %v2176 = vsub.f32 1.0, %v2175
    %v2177 = vmul.f32 %v2174, %v2176
    %v2178 = vadd.f32 %v2174, %v2177
    %vm2179 = vweird.f32 %v2173
    %vm2180 = vweird.f32 %v2174
    %vm2181 = vmor %vm2179, %vm2180
    %v2182 = vsel %vm2181, %v2174, %v2178
    %v2183 = vand.u32 2147483647, %v2173
    %vm2184 = vcmp.eq.f32.partialorder %v2183, 8.507059e+37
    %v2185 = vand.u32 %v2173, 2147483648
    %v2186 = vor.u32 1.1754944e-38, %v2185
    %v2187 = vsel %vm2184, %v2186, %v2182
    %v2188 = vmul.f32 1.0, %v2187
    %v2190 = vrot.slane %v2169, 1
    %v2192 = vxor.u32 %v2190, 2147483648
    %v2193 = vmul.f32 %v2192, 1.442695
    %v2194 = vpow.pop %v2193
    %v2195 = vadd.f32 %v2194, 1.0
    %v2196 = vrcp.pop %v2195
    %v2197 = vmul.f32 %v2195, %v2196
    %v2198 = vsub.f32 1.0, %v2197
    %v2199 = vmul.f32 %v2196, %v2198
    %v2200 = vadd.f32 %v2196, %v2199
    %vm2201 = vweird.f32 %v2195
    %vm2202 = vweird.f32 %v2196
    %vm2203 = vmor %vm2201, %vm2202
    %v2204 = vsel %vm2203, %v2196, %v2200
    %v2205 = vand.u32 2147483647, %v2195
    %vm2206 = vcmp.eq.f32.partialorder %v2205, 8.507059e+37
    %v2207 = vand.u32 %v2195, 2147483648
    %v2208 = vor.u32 1.1754944e-38, %v2207
    %v2209 = vsel %vm2206, %v2208, %v2204
    %v2210 = vmul.f32 1.0, %v2209
    %v2211 = vrot.slane %v2169, 2
    %v2213 = vtanh.pop %v2211
    %v2214 = vrot.slane %v2169, 3
    %v2216 = vxor.u32 %v2214, 2147483648
    %v2217 = vmul.f32 %v2216, 1.442695
    %v2218 = vpow.pop %v2217
    %v2219 = vadd.f32 %v2218, 1.0
    %v2220 = vrcp.pop %v2219
    %v2221 = vmul.f32 %v2219, %v2220
    %v2222 = vsub.f32 1.0, %v2221
    %v2223 = vmul.f32 %v2220, %v2222
    %v2224 = vadd.f32 %v2220, %v2223
    %vm2225 = vweird.f32 %v2219
    %vm2226 = vweird.f32 %v2220
    %vm2227 = vmor %vm2225, %vm2226
    %v2228 = vsel %vm2227, %v2220, %v2224
    %v2229 = vand.u32 2147483647, %v2219
    %vm2230 = vcmp.eq.f32.partialorder %v2229, 8.507059e+37
    %v2231 = vand.u32 %v2219, 2147483648
    %v2232 = vor.u32 1.1754944e-38, %v2231
    %v2233 = vsel %vm2230, %v2232, %v2228
    %v2234 = vmul.f32 1.0, %v2233
    %v2235 = vmul.f32 %v2210, %v2073
    %v2236 = vmul.f32 %v2188, %v2213
    %v2237 = vadd.f32 %v2235, %v2236
    %v2238 = vtanh.pop %v2237
    %v2239 = vmul.f32 %v2234, %v2238
    %s2240 = scalar_lea.vmem [#allocation3], 2
    %v2241 = vld [vmem:[%s2240] ss:$8 sm:$0xf]
    %2242 = vmatpush.msra.mxu0 %v1907
    %2243 = vmatpush.msra.mxu0 %v1903
    %2244 = vmatpush.msra.mxu0 %v1899
    %2245 = vmatpush.msra.mxu0 %v1895
    %2246 = vmatpush.msra.mxu0 %v1891
    %2247 = vmatpush.msra.mxu0 %v1887
    %2248 = vmatpush.msra.mxu0 %v1883
    %2249 = vmatpush.msra.mxu0 %v1879
    %2250 = vmatpush.msra.mxu0 %v1875
    %2251 = vmatpush.msra.mxu0 %v1871
    %2252 = vmatpush.msra.mxu0 %v1867
    %2253 = vmatpush.msra.mxu0 %v1863
    %2254 = vmatpush.msra.mxu0 %v1859
    %2255 = vmatpush.msra.mxu0 %v1855
    %2256 = vmatpush.msra.mxu0 %v1851
    %2257 = vmatpush.msra.mxu0 %v1847
    %2258 = vmatmul.f32.gmra.mxu0 %v2239
    %v2259 = vpop.f32.mrf.mxu0
    %v2260 = vadd.f32 0.0, %v2259
    %2261 = vdwg.mxu0
    %2262 = vmatpush.msra.mxu0 %v1908
    %2263 = vmatpush.msra.mxu0 %v1904
    %2264 = vmatpush.msra.mxu0 %v1900
    %2265 = vmatpush.msra.mxu0 %v1896
    %2266 = vmatpush.msra.mxu0 %v1892
    %2267 = vmatpush.msra.mxu0 %v1888
    %2268 = vmatpush.msra.mxu0 %v1884
    %2269 = vmatpush.msra.mxu0 %v1880
    %2270 = vmatpush.msra.mxu0 %v1876
    %2271 = vmatpush.msra.mxu0 %v1872
    %2272 = vmatpush.msra.mxu0 %v1868
    %2273 = vmatpush.msra.mxu0 %v1864
    %2274 = vmatpush.msra.mxu0 %v1860
    %2275 = vmatpush.msra.mxu0 %v1856
    %2276 = vmatpush.msra.mxu0 %v1852
    %2277 = vmatpush.msra.mxu0 %v1848
    %2278 = vmatmul.f32.gmra.mxu0 %v2239
    %v2279 = vpop.f32.mrf.mxu0
    %v2280 = vadd.f32 0.0, %v2279
    %2281 = vdwg.mxu0
    %2282 = vmatpush.msra.mxu0 %v1909
    %2283 = vmatpush.msra.mxu0 %v1905
    %2284 = vmatpush.msra.mxu0 %v1901
    %2285 = vmatpush.msra.mxu0 %v1897
    %2286 = vmatpush.msra.mxu0 %v1893
    %2287 = vmatpush.msra.mxu0 %v1889
    %2288 = vmatpush.msra.mxu0 %v1885
    %2289 = vmatpush.msra.mxu0 %v1881
    %2290 = vmatpush.msra.mxu0 %v1877
    %2291 = vmatpush.msra.mxu0 %v1873
    %2292 = vmatpush.msra.mxu0 %v1869
    %2293 = vmatpush.msra.mxu0 %v1865
    %2294 = vmatpush.msra.mxu0 %v1861
    %2295 = vmatpush.msra.mxu0 %v1857
    %2296 = vmatpush.msra.mxu0 %v1853
    %2297 = vmatpush.msra.mxu0 %v1849
    %2298 = vmatmul.f32.gmra.mxu0 %v2239
    %v2299 = vpop.f32.mrf.mxu0
    %v2300 = vadd.f32 0.0, %v2299
    %2301 = vdwg.mxu0
    %2302 = vmatpush.msra.mxu0 %v1910
    %2303 = vmatpush.msra.mxu0 %v1906
    %2304 = vmatpush.msra.mxu0 %v1902
    %2305 = vmatpush.msra.mxu0 %v1898
    %2306 = vmatpush.msra.mxu0 %v1894
    %2307 = vmatpush.msra.mxu0 %v1890
    %2308 = vmatpush.msra.mxu0 %v1886
    %2309 = vmatpush.msra.mxu0 %v1882
    %2310 = vmatpush.msra.mxu0 %v1878
    %2311 = vmatpush.msra.mxu0 %v1874
    %2312 = vmatpush.msra.mxu0 %v1870
    %2313 = vmatpush.msra.mxu0 %v1866
    %2314 = vmatpush.msra.mxu0 %v1862
    %2315 = vmatpush.msra.mxu0 %v1858
    %2316 = vmatpush.msra.mxu0 %v1854
    %2317 = vmatpush.msra.mxu0 %v1850
    %2318 = vmatmul.f32.gmra.mxu0 %v2239
    %v2319 = vpop.f32.mrf.mxu0
    %v2320 = vadd.f32 0.0, %v2319
    %2321 = vdwg.mxu0
    %v2326 = vrot.slane %v2280, 7
    %v2327 = vrot.slane %v2300, 6
    %v2328 = vrot.slane %v2320, 5
    %v2329 = vsel %vm1998, %v2260, %v2326
    %v2330 = vsel %vm2000, %v2327, %v2328
    %v2331 = vsel %vm2002, %v2329, %v2330
    %v2333 = vadd.f32 %v2241, %v2331
    %v2334 = vxor.u32 %v2333, 2147483648
    %v2335 = vmul.f32 %v2334, 1.442695
    %v2336 = vpow.pop %v2335
    %v2337 = vadd.f32 %v2336, 1.0
    %v2338 = vrcp.pop %v2337
    %v2339 = vmul.f32 %v2337, %v2338
    %v2340 = vsub.f32 1.0, %v2339
    %v2341 = vmul.f32 %v2338, %v2340
    %v2342 = vadd.f32 %v2338, %v2341
    %vm2343 = vweird.f32 %v2337
    %vm2344 = vweird.f32 %v2338
    %vm2345 = vmor %vm2343, %vm2344
    %v2346 = vsel %vm2345, %v2338, %v2342
    %v2347 = vand.u32 2147483647, %v2337
    %vm2348 = vcmp.eq.f32.partialorder %v2347, 8.507059e+37
    %v2349 = vand.u32 %v2337, 2147483648
    %v2350 = vor.u32 1.1754944e-38, %v2349
    %v2351 = vsel %vm2348, %v2350, %v2346
    %v2352 = vmul.f32 1.0, %v2351
    %v2354 = vrot.slane %v2333, 1
    %v2356 = vxor.u32 %v2354, 2147483648
    %v2357 = vmul.f32 %v2356, 1.442695
    %v2358 = vpow.pop %v2357
    %v2359 = vadd.f32 %v2358, 1.0
    %v2360 = vrcp.pop %v2359
    %v2361 = vmul.f32 %v2359, %v2360
    %v2362 = vsub.f32 1.0, %v2361
    %v2363 = vmul.f32 %v2360, %v2362
    %v2364 = vadd.f32 %v2360, %v2363
    %vm2365 = vweird.f32 %v2359
    %vm2366 = vweird.f32 %v2360
    %vm2367 = vmor %vm2365, %vm2366
    %v2368 = vsel %vm2367, %v2360, %v2364
    %v2369 = vand.u32 2147483647, %v2359
    %vm2370 = vcmp.eq.f32.partialorder %v2369, 8.507059e+37
    %v2371 = vand.u32 %v2359, 2147483648
    %v2372 = vor.u32 1.1754944e-38, %v2371
    %v2373 = vsel %vm2370, %v2372, %v2368
    %v2374 = vmul.f32 1.0, %v2373
    %v2375 = vrot.slane %v2333, 2
    %v2377 = vtanh.pop %v2375
    %v2378 = vrot.slane %v2333, 3
    %v2380 = vxor.u32 %v2378, 2147483648
    %v2381 = vmul.f32 %v2380, 1.442695
    %v2382 = vpow.pop %v2381
    %v2383 = vadd.f32 %v2382, 1.0
    %v2384 = vrcp.pop %v2383
    %v2385 = vmul.f32 %v2383, %v2384
    %v2386 = vsub.f32 1.0, %v2385
    %v2387 = vmul.f32 %v2384, %v2386
    %v2388 = vadd.f32 %v2384, %v2387
    %vm2389 = vweird.f32 %v2383
    %vm2390 = vweird.f32 %v2384
    %vm2391 = vmor %vm2389, %vm2390
    %v2392 = vsel %vm2391, %v2384, %v2388
    %v2393 = vand.u32 2147483647, %v2383
    %vm2394 = vcmp.eq.f32.partialorder %v2393, 8.507059e+37
    %v2395 = vand.u32 %v2383, 2147483648
    %v2396 = vor.u32 1.1754944e-38, %v2395
    %v2397 = vsel %vm2394, %v2396, %v2392
    %v2398 = vmul.f32 1.0, %v2397
    %v2399 = vmul.f32 %v2374, %v2237
    %v2400 = vmul.f32 %v2352, %v2377
    %v2401 = vadd.f32 %v2399, %v2400
    %v2402 = vtanh.pop %v2401
    %v2403 = vmul.f32 %v2398, %v2402
    %s2404 = scalar_lea.vmem [#allocation3], 3
    %v2405 = vld [vmem:[%s2404] ss:$8 sm:$0xf]
    %2406 = vmatpush.msra.mxu0 %v1907
    %2407 = vmatpush.msra.mxu0 %v1903
    %2408 = vmatpush.msra.mxu0 %v1899
    %2409 = vmatpush.msra.mxu0 %v1895
    %2410 = vmatpush.msra.mxu0 %v1891
    %2411 = vmatpush.msra.mxu0 %v1887
    %2412 = vmatpush.msra.mxu0 %v1883
    %2413 = vmatpush.msra.mxu0 %v1879
    %2414 = vmatpush.msra.mxu0 %v1875
    %2415 = vmatpush.msra.mxu0 %v1871
    %2416 = vmatpush.msra.mxu0 %v1867
    %2417 = vmatpush.msra.mxu0 %v1863
    %2418 = vmatpush.msra.mxu0 %v1859
    %2419 = vmatpush.msra.mxu0 %v1855
    %2420 = vmatpush.msra.mxu0 %v1851
    %2421 = vmatpush.msra.mxu0 %v1847
    %2422 = vmatmul.f32.gmra.mxu0 %v2403
    %v2423 = vpop.f32.mrf.mxu0
    %v2424 = vadd.f32 0.0, %v2423
    %2425 = vdwg.mxu0
    %2426 = vmatpush.msra.mxu0 %v1908
    %2427 = vmatpush.msra.mxu0 %v1904
    %2428 = vmatpush.msra.mxu0 %v1900
    %2429 = vmatpush.msra.mxu0 %v1896
    %2430 = vmatpush.msra.mxu0 %v1892
    %2431 = vmatpush.msra.mxu0 %v1888
    %2432 = vmatpush.msra.mxu0 %v1884
    %2433 = vmatpush.msra.mxu0 %v1880
    %2434 = vmatpush.msra.mxu0 %v1876
    %2435 = vmatpush.msra.mxu0 %v1872
    %2436 = vmatpush.msra.mxu0 %v1868
    %2437 = vmatpush.msra.mxu0 %v1864
    %2438 = vmatpush.msra.mxu0 %v1860
    %2439 = vmatpush.msra.mxu0 %v1856
    %2440 = vmatpush.msra.mxu0 %v1852
    %2441 = vmatpush.msra.mxu0 %v1848
    %2442 = vmatmul.f32.gmra.mxu0 %v2403
    %v2443 = vpop.f32.mrf.mxu0
    %v2444 = vadd.f32 0.0, %v2443
    %2445 = vdwg.mxu0
    %2446 = vmatpush.msra.mxu0 %v1909
    %2447 = vmatpush.msra.mxu0 %v1905
    %2448 = vmatpush.msra.mxu0 %v1901
    %2449 = vmatpush.msra.mxu0 %v1897
    %2450 = vmatpush.msra.mxu0 %v1893
    %2451 = vmatpush.msra.mxu0 %v1889
    %2452 = vmatpush.msra.mxu0 %v1885
    %2453 = vmatpush.msra.mxu0 %v1881
    %2454 = vmatpush.msra.mxu0 %v1877
    %2455 = vmatpush.msra.mxu0 %v1873
    %2456 = vmatpush.msra.mxu0 %v1869
    %2457 = vmatpush.msra.mxu0 %v1865
    %2458 = vmatpush.msra.mxu0 %v1861
    %2459 = vmatpush.msra.mxu0 %v1857
    %2460 = vmatpush.msra.mxu0 %v1853
    %2461 = vmatpush.msra.mxu0 %v1849
    %2462 = vmatmul.f32.gmra.mxu0 %v2403
    %v2463 = vpop.f32.mrf.mxu0
    %v2464 = vadd.f32 0.0, %v2463
    %2465 = vdwg.mxu0
    %2466 = vmatpush.msra.mxu0 %v1910
    %2467 = vmatpush.msra.mxu0 %v1906
    %2468 = vmatpush.msra.mxu0 %v1902
    %2469 = vmatpush.msra.mxu0 %v1898
    %2470 = vmatpush.msra.mxu0 %v1894
    %2471 = vmatpush.msra.mxu0 %v1890
    %2472 = vmatpush.msra.mxu0 %v1886
    %2473 = vmatpush.msra.mxu0 %v1882
    %2474 = vmatpush.msra.mxu0 %v1878
    %2475 = vmatpush.msra.mxu0 %v1874
    %2476 = vmatpush.msra.mxu0 %v1870
    %2477 = vmatpush.msra.mxu0 %v1866
    %2478 = vmatpush.msra.mxu0 %v1862
    %2479 = vmatpush.msra.mxu0 %v1858
    %2480 = vmatpush.msra.mxu0 %v1854
    %2481 = vmatpush.msra.mxu0 %v1850
    %2482 = vmatmul.f32.gmra.mxu0 %v2403
    %v2483 = vpop.f32.mrf.mxu0
    %v2484 = vadd.f32 0.0, %v2483
    %2485 = vdwg.mxu0
    %v2490 = vrot.slane %v2444, 7
    %v2491 = vrot.slane %v2464, 6
    %v2492 = vrot.slane %v2484, 5
    %v2493 = vsel %vm1998, %v2424, %v2490
    %v2494 = vsel %vm2000, %v2491, %v2492
    %v2495 = vsel %vm2002, %v2493, %v2494
    %v2497 = vadd.f32 %v2405, %v2495
    %v2498 = vxor.u32 %v2497, 2147483648
    %v2499 = vmul.f32 %v2498, 1.442695
    %v2500 = vpow.pop %v2499
    %v2501 = vadd.f32 %v2500, 1.0
    %v2502 = vrcp.pop %v2501
    %v2503 = vmul.f32 %v2501, %v2502
    %v2504 = vsub.f32 1.0, %v2503
    %v2505 = vmul.f32 %v2502, %v2504
    %v2506 = vadd.f32 %v2502, %v2505
    %vm2507 = vweird.f32 %v2501
    %vm2508 = vweird.f32 %v2502
    %vm2509 = vmor %vm2507, %vm2508
    %v2510 = vsel %vm2509, %v2502, %v2506
    %v2511 = vand.u32 2147483647, %v2501
    %vm2512 = vcmp.eq.f32.partialorder %v2511, 8.507059e+37
    %v2513 = vand.u32 %v2501, 2147483648
    %v2514 = vor.u32 1.1754944e-38, %v2513
    %v2515 = vsel %vm2512, %v2514, %v2510
    %v2516 = vmul.f32 1.0, %v2515
    %v2518 = vrot.slane %v2497, 1
    %v2520 = vxor.u32 %v2518, 2147483648
    %v2521 = vmul.f32 %v2520, 1.442695
    %v2522 = vpow.pop %v2521
    %v2523 = vadd.f32 %v2522, 1.0
    %v2524 = vrcp.pop %v2523
    %v2525 = vmul.f32 %v2523, %v2524
    %v2526 = vsub.f32 1.0, %v2525
    %v2527 = vmul.f32 %v2524, %v2526
    %v2528 = vadd.f32 %v2524, %v2527
    %vm2529 = vweird.f32 %v2523
    %vm2530 = vweird.f32 %v2524
    %vm2531 = vmor %vm2529, %vm2530
    %v2532 = vsel %vm2531, %v2524, %v2528
    %v2533 = vand.u32 2147483647, %v2523
    %vm2534 = vcmp.eq.f32.partialorder %v2533, 8.507059e+37
    %v2535 = vand.u32 %v2523, 2147483648
    %v2536 = vor.u32 1.1754944e-38, %v2535
    %v2537 = vsel %vm2534, %v2536, %v2532
    %v2538 = vmul.f32 1.0, %v2537
    %v2539 = vrot.slane %v2497, 2
    %v2541 = vtanh.pop %v2539
    %v2542 = vrot.slane %v2497, 3
    %v2544 = vxor.u32 %v2542, 2147483648
    %v2545 = vmul.f32 %v2544, 1.442695
    %v2546 = vpow.pop %v2545
    %v2547 = vadd.f32 %v2546, 1.0
    %v2548 = vrcp.pop %v2547
    %v2549 = vmul.f32 %v2547, %v2548
    %v2550 = vsub.f32 1.0, %v2549
    %v2551 = vmul.f32 %v2548, %v2550
    %v2552 = vadd.f32 %v2548, %v2551
    %vm2553 = vweird.f32 %v2547
    %vm2554 = vweird.f32 %v2548
    %vm2555 = vmor %vm2553, %vm2554
    %v2556 = vsel %vm2555, %v2548, %v2552
    %v2557 = vand.u32 2147483647, %v2547
    %vm2558 = vcmp.eq.f32.partialorder %v2557, 8.507059e+37
    %v2559 = vand.u32 %v2547, 2147483648
    %v2560 = vor.u32 1.1754944e-38, %v2559
    %v2561 = vsel %vm2558, %v2560, %v2556
    %v2562 = vmul.f32 1.0, %v2561
    %v2563 = vmul.f32 %v2538, %v2401
    %v2564 = vmul.f32 %v2516, %v2541
    %v2565 = vadd.f32 %v2563, %v2564
    %v2566 = vtanh.pop %v2565
    %v2567 = vmul.f32 %v2562, %v2566
    %s2568 = scalar_lea.vmem [#allocation3], 4
    %v2569 = vld [vmem:[%s2568] ss:$8 sm:$0xf]
    %2570 = vmatpush.msra.mxu0 %v1907
    %2571 = vmatpush.msra.mxu0 %v1903
    %2572 = vmatpush.msra.mxu0 %v1899
    %2573 = vmatpush.msra.mxu0 %v1895
    %2574 = vmatpush.msra.mxu0 %v1891
    %2575 = vmatpush.msra.mxu0 %v1887
    %2576 = vmatpush.msra.mxu0 %v1883
    %2577 = vmatpush.msra.mxu0 %v1879
    %2578 = vmatpush.msra.mxu0 %v1875
    %2579 = vmatpush.msra.mxu0 %v1871
    %2580 = vmatpush.msra.mxu0 %v1867
    %2581 = vmatpush.msra.mxu0 %v1863
    %2582 = vmatpush.msra.mxu0 %v1859
    %2583 = vmatpush.msra.mxu0 %v1855
    %2584 = vmatpush.msra.mxu0 %v1851
    %2585 = vmatpush.msra.mxu0 %v1847
    %2586 = vmatmul.f32.gmra.mxu0 %v2567
    %v2587 = vpop.f32.mrf.mxu0
    %v2588 = vadd.f32 0.0, %v2587
    %2589 = vdwg.mxu0
    %2590 = vmatpush.msra.mxu0 %v1908
    %2591 = vmatpush.msra.mxu0 %v1904
    %2592 = vmatpush.msra.mxu0 %v1900
    %2593 = vmatpush.msra.mxu0 %v1896
    %2594 = vmatpush.msra.mxu0 %v1892
    %2595 = vmatpush.msra.mxu0 %v1888
    %2596 = vmatpush.msra.mxu0 %v1884
    %2597 = vmatpush.msra.mxu0 %v1880
    %2598 = vmatpush.msra.mxu0 %v1876
    %2599 = vmatpush.msra.mxu0 %v1872
    %2600 = vmatpush.msra.mxu0 %v1868
    %2601 = vmatpush.msra.mxu0 %v1864
    %2602 = vmatpush.msra.mxu0 %v1860
    %2603 = vmatpush.msra.mxu0 %v1856
    %2604 = vmatpush.msra.mxu0 %v1852
    %2605 = vmatpush.msra.mxu0 %v1848
    %2606 = vmatmul.f32.gmra.mxu0 %v2567
    %v2607 = vpop.f32.mrf.mxu0
    %v2608 = vadd.f32 0.0, %v2607
    %2609 = vdwg.mxu0
    %2610 = vmatpush.msra.mxu0 %v1909
    %2611 = vmatpush.msra.mxu0 %v1905
    %2612 = vmatpush.msra.mxu0 %v1901
    %2613 = vmatpush.msra.mxu0 %v1897
    %2614 = vmatpush.msra.mxu0 %v1893
    %2615 = vmatpush.msra.mxu0 %v1889
    %2616 = vmatpush.msra.mxu0 %v1885
    %2617 = vmatpush.msra.mxu0 %v1881
    %2618 = vmatpush.msra.mxu0 %v1877
    %2619 = vmatpush.msra.mxu0 %v1873
    %2620 = vmatpush.msra.mxu0 %v1869
    %2621 = vmatpush.msra.mxu0 %v1865
    %2622 = vmatpush.msra.mxu0 %v1861
    %2623 = vmatpush.msra.mxu0 %v1857
    %2624 = vmatpush.msra.mxu0 %v1853
    %2625 = vmatpush.msra.mxu0 %v1849
    %2626 = vmatmul.f32.gmra.mxu0 %v2567
    %v2627 = vpop.f32.mrf.mxu0
    %v2628 = vadd.f32 0.0, %v2627
    %2629 = vdwg.mxu0
    %2630 = vmatpush.msra.mxu0 %v1910
    %2631 = vmatpush.msra.mxu0 %v1906
    %2632 = vmatpush.msra.mxu0 %v1902
    %2633 = vmatpush.msra.mxu0 %v1898
    %2634 = vmatpush.msra.mxu0 %v1894
    %2635 = vmatpush.msra.mxu0 %v1890
    %2636 = vmatpush.msra.mxu0 %v1886
    %2637 = vmatpush.msra.mxu0 %v1882
    %2638 = vmatpush.msra.mxu0 %v1878
    %2639 = vmatpush.msra.mxu0 %v1874
    %2640 = vmatpush.msra.mxu0 %v1870
    %2641 = vmatpush.msra.mxu0 %v1866
    %2642 = vmatpush.msra.mxu0 %v1862
    %2643 = vmatpush.msra.mxu0 %v1858
    %2644 = vmatpush.msra.mxu0 %v1854
    %2645 = vmatpush.msra.mxu0 %v1850
    %2646 = vmatmul.f32.gmra.mxu0 %v2567
    %v2647 = vpop.f32.mrf.mxu0
    %v2648 = vadd.f32 0.0, %v2647
    %2649 = vdwg.mxu0
    %v2654 = vrot.slane %v2608, 7
    %v2655 = vrot.slane %v2628, 6
    %v2656 = vrot.slane %v2648, 5
    %v2657 = vsel %vm1998, %v2588, %v2654
    %v2658 = vsel %vm2000, %v2655, %v2656
    %v2659 = vsel %vm2002, %v2657, %v2658
    %v2661 = vadd.f32 %v2569, %v2659
    %v2662 = vxor.u32 %v2661, 2147483648
    %v2663 = vmul.f32 %v2662, 1.442695
    %v2664 = vpow.pop %v2663
    %v2665 = vadd.f32 %v2664, 1.0
    %v2666 = vrcp.pop %v2665
    %v2667 = vmul.f32 %v2665, %v2666
    %v2668 = vsub.f32 1.0, %v2667
    %v2669 = vmul.f32 %v2666, %v2668
    %v2670 = vadd.f32 %v2666, %v2669
    %vm2671 = vweird.f32 %v2665
    %vm2672 = vweird.f32 %v2666
    %vm2673 = vmor %vm2671, %vm2672
    %v2674 = vsel %vm2673, %v2666, %v2670
    %v2675 = vand.u32 2147483647, %v2665
    %vm2676 = vcmp.eq.f32.partialorder %v2675, 8.507059e+37
    %v2677 = vand.u32 %v2665, 2147483648
    %v2678 = vor.u32 1.1754944e-38, %v2677
    %v2679 = vsel %vm2676, %v2678, %v2674
    %v2680 = vmul.f32 1.0, %v2679
    %v2682 = vrot.slane %v2661, 1
    %v2684 = vxor.u32 %v2682, 2147483648
    %v2685 = vmul.f32 %v2684, 1.442695
    %v2686 = vpow.pop %v2685
    %v2687 = vadd.f32 %v2686, 1.0
    %v2688 = vrcp.pop %v2687
    %v2689 = vmul.f32 %v2687, %v2688
    %v2690 = vsub.f32 1.0, %v2689
    %v2691 = vmul.f32 %v2688, %v2690
    %v2692 = vadd.f32 %v2688, %v2691
    %vm2693 = vweird.f32 %v2687
    %vm2694 = vweird.f32 %v2688
    %vm2695 = vmor %vm2693, %vm2694
    %v2696 = vsel %vm2695, %v2688, %v2692
    %v2697 = vand.u32 2147483647, %v2687
    %vm2698 = vcmp.eq.f32.partialorder %v2697, 8.507059e+37
    %v2699 = vand.u32 %v2687, 2147483648
    %v2700 = vor.u32 1.1754944e-38, %v2699
    %v2701 = vsel %vm2698, %v2700, %v2696
    %v2702 = vmul.f32 1.0, %v2701
    %v2703 = vrot.slane %v2661, 2
    %v2705 = vtanh.pop %v2703
    %v2706 = vrot.slane %v2661, 3
    %v2708 = vxor.u32 %v2706, 2147483648
    %v2709 = vmul.f32 %v2708, 1.442695
    %v2710 = vpow.pop %v2709
    %v2711 = vadd.f32 %v2710, 1.0
    %v2712 = vrcp.pop %v2711
    %v2713 = vmul.f32 %v2711, %v2712
    %v2714 = vsub.f32 1.0, %v2713
    %v2715 = vmul.f32 %v2712, %v2714
    %v2716 = vadd.f32 %v2712, %v2715
    %vm2717 = vweird.f32 %v2711
    %vm2718 = vweird.f32 %v2712
    %vm2719 = vmor %vm2717, %vm2718
    %v2720 = vsel %vm2719, %v2712, %v2716
    %v2721 = vand.u32 2147483647, %v2711
    %vm2722 = vcmp.eq.f32.partialorder %v2721, 8.507059e+37
    %v2723 = vand.u32 %v2711, 2147483648
    %v2724 = vor.u32 1.1754944e-38, %v2723
    %v2725 = vsel %vm2722, %v2724, %v2720
    %v2726 = vmul.f32 1.0, %v2725
    %v2727 = vmul.f32 %v2702, %v2565
    %v2728 = vmul.f32 %v2680, %v2705
    %v2729 = vadd.f32 %v2727, %v2728
    %v2730 = vtanh.pop %v2729
    %v2731 = vmul.f32 %v2726, %v2730
    %s2732 = scalar_lea.vmem [#allocation3], 5
    %v2733 = vld [vmem:[%s2732] ss:$8 sm:$0xf]
    %2734 = vmatpush.msra.mxu0 %v1907
    %2735 = vmatpush.msra.mxu0 %v1903
    %2736 = vmatpush.msra.mxu0 %v1899
    %2737 = vmatpush.msra.mxu0 %v1895
    %2738 = vmatpush.msra.mxu0 %v1891
    %2739 = vmatpush.msra.mxu0 %v1887
    %2740 = vmatpush.msra.mxu0 %v1883
    %2741 = vmatpush.msra.mxu0 %v1879
    %2742 = vmatpush.msra.mxu0 %v1875
    %2743 = vmatpush.msra.mxu0 %v1871
    %2744 = vmatpush.msra.mxu0 %v1867
    %2745 = vmatpush.msra.mxu0 %v1863
    %2746 = vmatpush.msra.mxu0 %v1859
    %2747 = vmatpush.msra.mxu0 %v1855
    %2748 = vmatpush.msra.mxu0 %v1851
    %2749 = vmatpush.msra.mxu0 %v1847
    %2750 = vmatmul.f32.gmra.mxu0 %v2731
    %v2751 = vpop.f32.mrf.mxu0
    %v2752 = vadd.f32 0.0, %v2751
    %2753 = vdwg.mxu0
    %2754 = vmatpush.msra.mxu0 %v1908
    %2755 = vmatpush.msra.mxu0 %v1904
    %2756 = vmatpush.msra.mxu0 %v1900
    %2757 = vmatpush.msra.mxu0 %v1896
    %2758 = vmatpush.msra.mxu0 %v1892
    %2759 = vmatpush.msra.mxu0 %v1888
    %2760 = vmatpush.msra.mxu0 %v1884
    %2761 = vmatpush.msra.mxu0 %v1880
    %2762 = vmatpush.msra.mxu0 %v1876
    %2763 = vmatpush.msra.mxu0 %v1872
    %2764 = vmatpush.msra.mxu0 %v1868
    %2765 = vmatpush.msra.mxu0 %v1864
    %2766 = vmatpush.msra.mxu0 %v1860
    %2767 = vmatpush.msra.mxu0 %v1856
    %2768 = vmatpush.msra.mxu0 %v1852
    %2769 = vmatpush.msra.mxu0 %v1848
    %2770 = vmatmul.f32.gmra.mxu0 %v2731
    %v2771 = vpop.f32.mrf.mxu0
    %v2772 = vadd.f32 0.0, %v2771
    %2773 = vdwg.mxu0
    %2774 = vmatpush.msra.mxu0 %v1909
    %2775 = vmatpush.msra.mxu0 %v1905
    %2776 = vmatpush.msra.mxu0 %v1901
    %2777 = vmatpush.msra.mxu0 %v1897
    %2778 = vmatpush.msra.mxu0 %v1893
    %2779 = vmatpush.msra.mxu0 %v1889
    %2780 = vmatpush.msra.mxu0 %v1885
    %2781 = vmatpush.msra.mxu0 %v1881
    %2782 = vmatpush.msra.mxu0 %v1877
    %2783 = vmatpush.msra.mxu0 %v1873
    %2784 = vmatpush.msra.mxu0 %v1869
    %2785 = vmatpush.msra.mxu0 %v1865
    %2786 = vmatpush.msra.mxu0 %v1861
    %2787 = vmatpush.msra.mxu0 %v1857
    %2788 = vmatpush.msra.mxu0 %v1853
    %2789 = vmatpush.msra.mxu0 %v1849
    %2790 = vmatmul.f32.gmra.mxu0 %v2731
    %v2791 = vpop.f32.mrf.mxu0
    %v2792 = vadd.f32 0.0, %v2791
    %2793 = vdwg.mxu0
    %2794 = vmatpush.msra.mxu0 %v1910
    %2795 = vmatpush.msra.mxu0 %v1906
    %2796 = vmatpush.msra.mxu0 %v1902
    %2797 = vmatpush.msra.mxu0 %v1898
    %2798 = vmatpush.msra.mxu0 %v1894
    %2799 = vmatpush.msra.mxu0 %v1890
    %2800 = vmatpush.msra.mxu0 %v1886
    %2801 = vmatpush.msra.mxu0 %v1882
    %2802 = vmatpush.msra.mxu0 %v1878
    %2803 = vmatpush.msra.mxu0 %v1874
    %2804 = vmatpush.msra.mxu0 %v1870
    %2805 = vmatpush.msra.mxu0 %v1866
    %2806 = vmatpush.msra.mxu0 %v1862
    %2807 = vmatpush.msra.mxu0 %v1858
    %2808 = vmatpush.msra.mxu0 %v1854
    %2809 = vmatpush.msra.mxu0 %v1850
    %2810 = vmatmul.f32.gmra.mxu0 %v2731
    %v2811 = vpop.f32.mrf.mxu0
    %v2812 = vadd.f32 0.0, %v2811
    %2813 = vdwg.mxu0
    %v2818 = vrot.slane %v2772, 7
    %v2819 = vrot.slane %v2792, 6
    %v2820 = vrot.slane %v2812, 5
    %v2821 = vsel %vm1998, %v2752, %v2818
    %v2822 = vsel %vm2000, %v2819, %v2820
    %v2823 = vsel %vm2002, %v2821, %v2822
    %v2825 = vadd.f32 %v2733, %v2823
    %v2826 = vxor.u32 %v2825, 2147483648
    %v2827 = vmul.f32 %v2826, 1.442695
    %v2828 = vpow.pop %v2827
    %v2829 = vadd.f32 %v2828, 1.0
    %v2830 = vrcp.pop %v2829
    %v2831 = vmul.f32 %v2829, %v2830
    %v2832 = vsub.f32 1.0, %v2831
    %v2833 = vmul.f32 %v2830, %v2832
    %v2834 = vadd.f32 %v2830, %v2833
    %vm2835 = vweird.f32 %v2829
    %vm2836 = vweird.f32 %v2830
    %vm2837 = vmor %vm2835, %vm2836
    %v2838 = vsel %vm2837, %v2830, %v2834
    %v2839 = vand.u32 2147483647, %v2829
    %vm2840 = vcmp.eq.f32.partialorder %v2839, 8.507059e+37
    %v2841 = vand.u32 %v2829, 2147483648
    %v2842 = vor.u32 1.1754944e-38, %v2841
    %v2843 = vsel %vm2840, %v2842, %v2838
    %v2844 = vmul.f32 1.0, %v2843
    %v2846 = vrot.slane %v2825, 1
    %v2848 = vxor.u32 %v2846, 2147483648
    %v2849 = vmul.f32 %v2848, 1.442695
    %v2850 = vpow.pop %v2849
    %v2851 = vadd.f32 %v2850, 1.0
    %v2852 = vrcp.pop %v2851
    %v2853 = vmul.f32 %v2851, %v2852
    %v2854 = vsub.f32 1.0, %v2853
    %v2855 = vmul.f32 %v2852, %v2854
    %v2856 = vadd.f32 %v2852, %v2855
    %vm2857 = vweird.f32 %v2851
    %vm2858 = vweird.f32 %v2852
    %vm2859 = vmor %vm2857, %vm2858
    %v2860 = vsel %vm2859, %v2852, %v2856
    %v2861 = vand.u32 2147483647, %v2851
    %vm2862 = vcmp.eq.f32.partialorder %v2861, 8.507059e+37
    %v2863 = vand.u32 %v2851, 2147483648
    %v2864 = vor.u32 1.1754944e-38, %v2863
    %v2865 = vsel %vm2862, %v2864, %v2860
    %v2866 = vmul.f32 1.0, %v2865
    %v2867 = vrot.slane %v2825, 2
    %v2869 = vtanh.pop %v2867
    %v2870 = vrot.slane %v2825, 3
    %v2872 = vxor.u32 %v2870, 2147483648
    %v2873 = vmul.f32 %v2872, 1.442695
    %v2874 = vpow.pop %v2873
    %v2875 = vadd.f32 %v2874, 1.0
    %v2876 = vrcp.pop %v2875
    %v2877 = vmul.f32 %v2875, %v2876
    %v2878 = vsub.f32 1.0, %v2877
    %v2879 = vmul.f32 %v2876, %v2878
    %v2880 = vadd.f32 %v2876, %v2879
    %vm2881 = vweird.f32 %v2875
    %vm2882 = vweird.f32 %v2876
    %vm2883 = vmor %vm2881, %vm2882
    %v2884 = vsel %vm2883, %v2876, %v2880
    %v2885 = vand.u32 2147483647, %v2875
    %vm2886 = vcmp.eq.f32.partialorder %v2885, 8.507059e+37
    %v2887 = vand.u32 %v2875, 2147483648
    %v2888 = vor.u32 1.1754944e-38, %v2887
    %v2889 = vsel %vm2886, %v2888, %v2884
    %v2890 = vmul.f32 1.0, %v2889
    %v2891 = vmul.f32 %v2866, %v2729
    %v2892 = vmul.f32 %v2844, %v2869
    %v2893 = vadd.f32 %v2891, %v2892
    %v2894 = vtanh.pop %v2893
    %v2895 = vmul.f32 %v2890, %v2894
    %s2896 = scalar_lea.vmem [#allocation3], 6
    %v2897 = vld [vmem:[%s2896] ss:$8 sm:$0xf]
    %2898 = vmatpush.msra.mxu0 %v1907
    %2899 = vmatpush.msra.mxu0 %v1903
    %2900 = vmatpush.msra.mxu0 %v1899
    %2901 = vmatpush.msra.mxu0 %v1895
    %2902 = vmatpush.msra.mxu0 %v1891
    %2903 = vmatpush.msra.mxu0 %v1887
    %2904 = vmatpush.msra.mxu0 %v1883
    %2905 = vmatpush.msra.mxu0 %v1879
    %2906 = vmatpush.msra.mxu0 %v1875
    %2907 = vmatpush.msra.mxu0 %v1871
    %2908 = vmatpush.msra.mxu0 %v1867
    %2909 = vmatpush.msra.mxu0 %v1863
    %2910 = vmatpush.msra.mxu0 %v1859
    %2911 = vmatpush.msra.mxu0 %v1855
    %2912 = vmatpush.msra.mxu0 %v1851
    %2913 = vmatpush.msra.mxu0 %v1847
    %2914 = vmatmul.f32.gmra.mxu0 %v2895
    %v2915 = vpop.f32.mrf.mxu0
    %v2916 = vadd.f32 0.0, %v2915
    %2917 = vdwg.mxu0
    %2918 = vmatpush.msra.mxu0 %v1908
    %2919 = vmatpush.msra.mxu0 %v1904
    %2920 = vmatpush.msra.mxu0 %v1900
    %2921 = vmatpush.msra.mxu0 %v1896
    %2922 = vmatpush.msra.mxu0 %v1892
    %2923 = vmatpush.msra.mxu0 %v1888
    %2924 = vmatpush.msra.mxu0 %v1884
    %2925 = vmatpush.msra.mxu0 %v1880
    %2926 = vmatpush.msra.mxu0 %v1876
    %2927 = vmatpush.msra.mxu0 %v1872
    %2928 = vmatpush.msra.mxu0 %v1868
    %2929 = vmatpush.msra.mxu0 %v1864
    %2930 = vmatpush.msra.mxu0 %v1860
    %2931 = vmatpush.msra.mxu0 %v1856
    %2932 = vmatpush.msra.mxu0 %v1852
    %2933 = vmatpush.msra.mxu0 %v1848
    %2934 = vmatmul.f32.gmra.mxu0 %v2895
    %v2935 = vpop.f32.mrf.mxu0
    %v2936 = vadd.f32 0.0, %v2935
    %2937 = vdwg.mxu0
    %2938 = vmatpush.msra.mxu0 %v1909
    %2939 = vmatpush.msra.mxu0 %v1905
    %2940 = vmatpush.msra.mxu0 %v1901
    %2941 = vmatpush.msra.mxu0 %v1897
    %2942 = vmatpush.msra.mxu0 %v1893
    %2943 = vmatpush.msra.mxu0 %v1889
    %2944 = vmatpush.msra.mxu0 %v1885
    %2945 = vmatpush.msra.mxu0 %v1881
    %2946 = vmatpush.msra.mxu0 %v1877
    %2947 = vmatpush.msra.mxu0 %v1873
    %2948 = vmatpush.msra.mxu0 %v1869
    %2949 = vmatpush.msra.mxu0 %v1865
    %2950 = vmatpush.msra.mxu0 %v1861
    %2951 = vmatpush.msra.mxu0 %v1857
    %2952 = vmatpush.msra.mxu0 %v1853
    %2953 = vmatpush.msra.mxu0 %v1849
    %2954 = vmatmul.f32.gmra.mxu0 %v2895
    %v2955 = vpop.f32.mrf.mxu0
    %v2956 = vadd.f32 0.0, %v2955
    %2957 = vdwg.mxu0
    %2958 = vmatpush.msra.mxu0 %v1910
    %2959 = vmatpush.msra.mxu0 %v1906
    %2960 = vmatpush.msra.mxu0 %v1902
    %2961 = vmatpush.msra.mxu0 %v1898
    %2962 = vmatpush.msra.mxu0 %v1894
    %2963 = vmatpush.msra.mxu0 %v1890
    %2964 = vmatpush.msra.mxu0 %v1886
    %2965 = vmatpush.msra.mxu0 %v1882
    %2966 = vmatpush.msra.mxu0 %v1878
    %2967 = vmatpush.msra.mxu0 %v1874
    %2968 = vmatpush.msra.mxu0 %v1870
    %2969 = vmatpush.msra.mxu0 %v1866
    %2970 = vmatpush.msra.mxu0 %v1862
    %2971 = vmatpush.msra.mxu0 %v1858
    %2972 = vmatpush.msra.mxu0 %v1854
    %2973 = vmatpush.msra.mxu0 %v1850
    %2974 = vmatmul.f32.gmra.mxu0 %v2895
    %v2975 = vpop.f32.mrf.mxu0
    %v2976 = vadd.f32 0.0, %v2975
    %2977 = vdwg.mxu0
    %v2982 = vrot.slane %v2936, 7
    %v2983 = vrot.slane %v2956, 6
    %v2984 = vrot.slane %v2976, 5
    %v2985 = vsel %vm1998, %v2916, %v2982
    %v2986 = vsel %vm2000, %v2983, %v2984
    %v2987 = vsel %vm2002, %v2985, %v2986
    %v2989 = vadd.f32 %v2897, %v2987
    %v2990 = vxor.u32 %v2989, 2147483648
    %v2991 = vmul.f32 %v2990, 1.442695
    %v2992 = vpow.pop %v2991
    %v2993 = vadd.f32 %v2992, 1.0
    %v2994 = vrcp.pop %v2993
    %v2995 = vmul.f32 %v2993, %v2994
    %v2996 = vsub.f32 1.0, %v2995
    %v2997 = vmul.f32 %v2994, %v2996
    %v2998 = vadd.f32 %v2994, %v2997
    %vm2999 = vweird.f32 %v2993
    %vm3000 = vweird.f32 %v2994
    %vm3001 = vmor %vm2999, %vm3000
    %v3002 = vsel %vm3001, %v2994, %v2998
    %v3003 = vand.u32 2147483647, %v2993
    %vm3004 = vcmp.eq.f32.partialorder %v3003, 8.507059e+37
    %v3005 = vand.u32 %v2993, 2147483648
    %v3006 = vor.u32 1.1754944e-38, %v3005
    %v3007 = vsel %vm3004, %v3006, %v3002
    %v3008 = vmul.f32 1.0, %v3007
    %v3010 = vrot.slane %v2989, 1
    %v3012 = vxor.u32 %v3010, 2147483648
    %v3013 = vmul.f32 %v3012, 1.442695
    %v3014 = vpow.pop %v3013
    %v3015 = vadd.f32 %v3014, 1.0
    %v3016 = vrcp.pop %v3015
    %v3017 = vmul.f32 %v3015, %v3016
    %v3018 = vsub.f32 1.0, %v3017
    %v3019 = vmul.f32 %v3016, %v3018
    %v3020 = vadd.f32 %v3016, %v3019
    %vm3021 = vweird.f32 %v3015
    %vm3022 = vweird.f32 %v3016
    %vm3023 = vmor %vm3021, %vm3022
    %v3024 = vsel %vm3023, %v3016, %v3020
    %v3025 = vand.u32 2147483647, %v3015
    %vm3026 = vcmp.eq.f32.partialorder %v3025, 8.507059e+37
    %v3027 = vand.u32 %v3015, 2147483648
    %v3028 = vor.u32 1.1754944e-38, %v3027
    %v3029 = vsel %vm3026, %v3028, %v3024
    %v3030 = vmul.f32 1.0, %v3029
    %v3031 = vrot.slane %v2989, 2
    %v3033 = vtanh.pop %v3031
    %v3034 = vrot.slane %v2989, 3
    %v3036 = vxor.u32 %v3034, 2147483648
    %v3037 = vmul.f32 %v3036, 1.442695
    %v3038 = vpow.pop %v3037
    %v3039 = vadd.f32 %v3038, 1.0
    %v3040 = vrcp.pop %v3039
    %v3041 = vmul.f32 %v3039, %v3040
    %v3042 = vsub.f32 1.0, %v3041
    %v3043 = vmul.f32 %v3040, %v3042
    %v3044 = vadd.f32 %v3040, %v3043
    %vm3045 = vweird.f32 %v3039
    %vm3046 = vweird.f32 %v3040
    %vm3047 = vmor %vm3045, %vm3046
    %v3048 = vsel %vm3047, %v3040, %v3044
    %v3049 = vand.u32 2147483647, %v3039
    %vm3050 = vcmp.eq.f32.partialorder %v3049, 8.507059e+37
    %v3051 = vand.u32 %v3039, 2147483648
    %v3052 = vor.u32 1.1754944e-38, %v3051
    %v3053 = vsel %vm3050, %v3052, %v3048
    %v3054 = vmul.f32 1.0, %v3053
    %v3055 = vmul.f32 %v3030, %v2893
    %v3056 = vmul.f32 %v3008, %v3033
    %v3057 = vadd.f32 %v3055, %v3056
    %v3058 = vtanh.pop %v3057
    %v3059 = vmul.f32 %v3054, %v3058
    %s3060 = scalar_lea.vmem [#allocation3], 7
    %v3061 = vld [vmem:[%s3060] ss:$8 sm:$0xf]
    %3062 = vmatpush.msra.mxu0 %v1907
    %3063 = vmatpush.msra.mxu0 %v1903
    %3064 = vmatpush.msra.mxu0 %v1899
    %3065 = vmatpush.msra.mxu0 %v1895
    %3066 = vmatpush.msra.mxu0 %v1891
    %3067 = vmatpush.msra.mxu0 %v1887
    %3068 = vmatpush.msra.mxu0 %v1883
    %3069 = vmatpush.msra.mxu0 %v1879
    %3070 = vmatpush.msra.mxu0 %v1875
    %3071 = vmatpush.msra.mxu0 %v1871
    %3072 = vmatpush.msra.mxu0 %v1867
    %3073 = vmatpush.msra.mxu0 %v1863
    %3074 = vmatpush.msra.mxu0 %v1859
    %3075 = vmatpush.msra.mxu0 %v1855
    %3076 = vmatpush.msra.mxu0 %v1851
    %3077 = vmatpush.msra.mxu0 %v1847
    %3078 = vmatmul.f32.gmra.mxu0 %v3059
    %v3079 = vpop.f32.mrf.mxu0
    %v3080 = vadd.f32 0.0, %v3079
    %3081 = vdwg.mxu0
    %3082 = vmatpush.msra.mxu0 %v1908
    %3083 = vmatpush.msra.mxu0 %v1904
    %3084 = vmatpush.msra.mxu0 %v1900
    %3085 = vmatpush.msra.mxu0 %v1896
    %3086 = vmatpush.msra.mxu0 %v1892
    %3087 = vmatpush.msra.mxu0 %v1888
    %3088 = vmatpush.msra.mxu0 %v1884
    %3089 = vmatpush.msra.mxu0 %v1880
    %3090 = vmatpush.msra.mxu0 %v1876
    %3091 = vmatpush.msra.mxu0 %v1872
    %3092 = vmatpush.msra.mxu0 %v1868
    %3093 = vmatpush.msra.mxu0 %v1864
    %3094 = vmatpush.msra.mxu0 %v1860
    %3095 = vmatpush.msra.mxu0 %v1856
    %3096 = vmatpush.msra.mxu0 %v1852
    %3097 = vmatpush.msra.mxu0 %v1848
    %3098 = vmatmul.f32.gmra.mxu0 %v3059
    %v3099 = vpop.f32.mrf.mxu0
    %v3100 = vadd.f32 0.0, %v3099
    %3101 = vdwg.mxu0
    %3102 = vmatpush.msra.mxu0 %v1909
    %3103 = vmatpush.msra.mxu0 %v1905
    %3104 = vmatpush.msra.mxu0 %v1901
    %3105 = vmatpush.msra.mxu0 %v1897
    %3106 = vmatpush.msra.mxu0 %v1893
    %3107 = vmatpush.msra.mxu0 %v1889
    %3108 = vmatpush.msra.mxu0 %v1885
    %3109 = vmatpush.msra.mxu0 %v1881
    %3110 = vmatpush.msra.mxu0 %v1877
    %3111 = vmatpush.msra.mxu0 %v1873
    %3112 = vmatpush.msra.mxu0 %v1869
    %3113 = vmatpush.msra.mxu0 %v1865
    %3114 = vmatpush.msra.mxu0 %v1861
    %3115 = vmatpush.msra.mxu0 %v1857
    %3116 = vmatpush.msra.mxu0 %v1853
    %3117 = vmatpush.msra.mxu0 %v1849
    %3118 = vmatmul.f32.gmra.mxu0 %v3059
    %v3119 = vpop.f32.mrf.mxu0
    %v3120 = vadd.f32 0.0, %v3119
    %3121 = vdwg.mxu0
    %3122 = vmatpush.msra.mxu0 %v1910
    %3123 = vmatpush.msra.mxu0 %v1906
    %3124 = vmatpush.msra.mxu0 %v1902
    %3125 = vmatpush.msra.mxu0 %v1898
    %3126 = vmatpush.msra.mxu0 %v1894
    %3127 = vmatpush.msra.mxu0 %v1890
    %3128 = vmatpush.msra.mxu0 %v1886
    %3129 = vmatpush.msra.mxu0 %v1882
    %3130 = vmatpush.msra.mxu0 %v1878
    %3131 = vmatpush.msra.mxu0 %v1874
    %3132 = vmatpush.msra.mxu0 %v1870
    %3133 = vmatpush.msra.mxu0 %v1866
    %3134 = vmatpush.msra.mxu0 %v1862
    %3135 = vmatpush.msra.mxu0 %v1858
    %3136 = vmatpush.msra.mxu0 %v1854
    %3137 = vmatpush.msra.mxu0 %v1850
    %3138 = vmatmul.f32.gmra.mxu0 %v3059
    %v3139 = vpop.f32.mrf.mxu0
    %v3140 = vadd.f32 0.0, %v3139
    %3141 = vdwg.mxu0
    %v3146 = vrot.slane %v3100, 7
    %v3147 = vrot.slane %v3120, 6
    %v3148 = vrot.slane %v3140, 5
    %v3149 = vsel %vm1998, %v3080, %v3146
    %v3150 = vsel %vm2000, %v3147, %v3148
    %v3151 = vsel %vm2002, %v3149, %v3150
    %v3153 = vadd.f32 %v3061, %v3151
    %v3154 = vxor.u32 %v3153, 2147483648
    %v3155 = vmul.f32 %v3154, 1.442695
    %v3156 = vpow.pop %v3155
    %v3157 = vadd.f32 %v3156, 1.0
    %v3158 = vrcp.pop %v3157
    %v3159 = vmul.f32 %v3157, %v3158
    %v3160 = vsub.f32 1.0, %v3159
    %v3161 = vmul.f32 %v3158, %v3160
    %v3162 = vadd.f32 %v3158, %v3161
    %vm3163 = vweird.f32 %v3157
    %vm3164 = vweird.f32 %v3158
    %vm3165 = vmor %vm3163, %vm3164
    %v3166 = vsel %vm3165, %v3158, %v3162
    %v3167 = vand.u32 2147483647, %v3157
    %vm3168 = vcmp.eq.f32.partialorder %v3167, 8.507059e+37
    %v3169 = vand.u32 %v3157, 2147483648
    %v3170 = vor.u32 1.1754944e-38, %v3169
    %v3171 = vsel %vm3168, %v3170, %v3166
    %v3172 = vmul.f32 1.0, %v3171
    %v3174 = vrot.slane %v3153, 1
    %v3176 = vxor.u32 %v3174, 2147483648
    %v3177 = vmul.f32 %v3176, 1.442695
    %v3178 = vpow.pop %v3177
    %v3179 = vadd.f32 %v3178, 1.0
    %v3180 = vrcp.pop %v3179
    %v3181 = vmul.f32 %v3179, %v3180
    %v3182 = vsub.f32 1.0, %v3181
    %v3183 = vmul.f32 %v3180, %v3182
    %v3184 = vadd.f32 %v3180, %v3183
    %vm3185 = vweird.f32 %v3179
    %vm3186 = vweird.f32 %v3180
    %vm3187 = vmor %vm3185, %vm3186
    %v3188 = vsel %vm3187, %v3180, %v3184
    %v3189 = vand.u32 2147483647, %v3179
    %vm3190 = vcmp.eq.f32.partialorder %v3189, 8.507059e+37
    %v3191 = vand.u32 %v3179, 2147483648
    %v3192 = vor.u32 1.1754944e-38, %v3191
    %v3193 = vsel %vm3190, %v3192, %v3188
    %v3194 = vmul.f32 1.0, %v3193
    %v3195 = vrot.slane %v3153, 2
    %v3197 = vtanh.pop %v3195
    %v3198 = vrot.slane %v3153, 3
    %v3200 = vxor.u32 %v3198, 2147483648
    %v3201 = vmul.f32 %v3200, 1.442695
    %v3202 = vpow.pop %v3201
    %v3203 = vadd.f32 %v3202, 1.0
    %v3204 = vrcp.pop %v3203
    %v3205 = vmul.f32 %v3203, %v3204
    %v3206 = vsub.f32 1.0, %v3205
    %v3207 = vmul.f32 %v3204, %v3206
    %v3208 = vadd.f32 %v3204, %v3207
    %vm3209 = vweird.f32 %v3203
    %vm3210 = vweird.f32 %v3204
    %vm3211 = vmor %vm3209, %vm3210
    %v3212 = vsel %vm3211, %v3204, %v3208
    %v3213 = vand.u32 2147483647, %v3203
    %vm3214 = vcmp.eq.f32.partialorder %v3213, 8.507059e+37
    %v3215 = vand.u32 %v3203, 2147483648
    %v3216 = vor.u32 1.1754944e-38, %v3215
    %v3217 = vsel %vm3214, %v3216, %v3212
    %v3218 = vmul.f32 1.0, %v3217
    %v3219 = vmul.f32 %v3194, %v3057
    %v3220 = vmul.f32 %v3172, %v3197
    %v3221 = vadd.f32 %v3219, %v3220
    %v3222 = vtanh.pop %v3221
    %v3223 = vmul.f32 %v3218, %v3222
    %v3225 = vperm.slane %v2239, 0
    %v3228 = vperm.slane %v2403, 0
    %v3231 = vperm.slane %v2567, 0
    %v3234 = vperm.slane %v2731, 0
    %v3237 = vperm.slane %v2895, 0
    %v3240 = vperm.slane %v3059, 0
    %v3243 = vperm.slane %v3223, 0
    %v3245 = vsel %vm1998, %v2075, %v3225
    %v3246 = vsel %vm2002, %v3245, %v3228
    %vm3247 = vcmask 1042432
    %v3248 = vsel %vm3247, %v3246, %v3231
    %vm3249 = vcmask 1043456
    %v3250 = vsel %vm3249, %v3248, %v3234
    %vm3251 = vcmask 1044480
    %v3252 = vsel %vm3251, %v3250, %v3237
    %vm3253 = vcmask 1045504
    %v3254 = vsel %vm3253, %v3252, %v3240
    %vm3255 = vcmask 1046528
    %v3256 = vsel %vm3255, %v3254, %v3243
    %v3257 = vld [vmem:[#allocation4 + $0xa00] sm:$0xff]
    %v3258 = vld [vmem:[#allocation4 + $0xa20] sm:$0xff]
    %v3259 = vld [vmem:[#allocation4 + $0xa40] sm:$0xff]
    %v3260 = vld [vmem:[#allocation4 + $0xa60] sm:$0xff]
    %v3261 = vld [vmem:[#allocation4 + $0xa80] sm:$0xff]
    %v3262 = vld [vmem:[#allocation4 + $0xaa0] sm:$0xff]
    %v3263 = vld [vmem:[#allocation4 + $0xac0] sm:$0xff]
    %v3264 = vld [vmem:[#allocation4 + $0xae0] sm:$0xff]
    %v3265 = vld [vmem:[#allocation4 + $0xb00] sm:$0xff]
    %v3266 = vld [vmem:[#allocation4 + $0xb20] sm:$0xff]
    %v3267 = vld [vmem:[#allocation4 + $0xb40] sm:$0xff]
    %v3268 = vld [vmem:[#allocation4 + $0xb60] sm:$0xff]
    %v3269 = vld [vmem:[#allocation4 + $0xb80] sm:$0xff]
    %v3270 = vld [vmem:[#allocation4 + $0xba0] sm:$0xff]
    %v3271 = vld [vmem:[#allocation4 + $0xbc0] sm:$0xff]
    %v3272 = vld [vmem:[#allocation4 + $0xbe0] sm:$0xff]
    %s3273 = scalar_lea.vmem [#allocation4], 3074
    %v3274 = vld [vmem:[%s3273] ss:$8 sm:$0xf]
    %v3276 = vperm.slane %v3274, 0
    %3278 = vmatpush.msra.mxu0 %v3272
    %3279 = vmatpush.msra.mxu0 %v3271
    %3280 = vmatpush.msra.mxu0 %v3270
    %3281 = vmatpush.msra.mxu0 %v3269
    %3282 = vmatpush.msra.mxu0 %v3268
    %3283 = vmatpush.msra.mxu0 %v3267
    %3284 = vmatpush.msra.mxu0 %v3266
    %3285 = vmatpush.msra.mxu0 %v3265
    %3286 = vmatpush.msra.mxu0 %v3264
    %3287 = vmatpush.msra.mxu0 %v3263
    %3288 = vmatpush.msra.mxu0 %v3262
    %3289 = vmatpush.msra.mxu0 %v3261
    %3290 = vmatpush.msra.mxu0 %v3260
    %3291 = vmatpush.msra.mxu0 %v3259
    %3292 = vmatpush.msra.mxu0 %v3258
    %3293 = vmatpush.msra.mxu0 %v3257
    %3294 = vmatmul.f32.gmra.mxu0 %v3256
    %v3295 = vpop.f32.mrf.mxu0
    %v3296 = vadd.f32 %v3276, %v3295
    %3297 = vdwg.mxu0
    %3298 = vmax.xlane.f32.xlu0 %v3296
    %v3299 = vpop.xlane.xlu0 %3298
    %v3300 = vsub.f32 %v3296, %v3299
    %v3301 = vmul.f32 %v3300, 1.442695
    %v3302 = vpow.pop %v3301
    %3303 = vadd.xlane.f32.xlu0 %v3302
    %v3304 = vpop.xlane.xlu0 %3303
    %v3305 = vlog2.pop %v3304
    %v3306 = vmul.f32 %v3305, 0.6931472
    %v3307 = vsub.f32 %v3300, %v3306
    %3308 = vst [vmem:[#allocation7] sm:$0xff] %v3307
    // Predicated region
    $region14: #{lstm_tagger_forward.1} parent=1 // pred_check
      _
    $region15: #{lstm_tagger_forward.1} parent=1 // pred_check_branch
      %3310 = sbr.rel (0) target = $region17
    $region16: #{lstm_tagger_forward.1} parent=1 // pred_region
      %3312 = vsyncadd [#allocation6], 0
      %s3314 = sshll.u32 [#allocation7], 4
      %s3315 = int_to_ptr.vmem [resolvable:$true] %s3314
      %s3316 = sshll.u32 %s2, 4
      %s3317 = int_to_ptr.hbm [resolvable:$true] %s3316
      %3319 = dma.vmem_to_hbm [thread:$0]  %s3315, 128, %s3317, [#allocation6]
    $region17: #{lstm_tagger_forward.1} parent=1 // pred_fallthru
      _
    // Predicated region
    $region18: #{lstm_tagger_forward.1} parent=1 // pred_check
      _
    $region19: #{lstm_tagger_forward.1} parent=1 // pred_check_branch
      %3321 = sbr.rel (0) target = $region21
    $region20: #{lstm_tagger_forward.1} parent=1 // pred_region
      %3323 = dma.done [#allocation6], 128
    $region21: #{lstm_tagger_forward.1} parent=1 // pred_fallthru
      _
    %3324 = vsyncpa [#allocation5], 1
    %3325 = vsyncpa [#allocation6], 1

</llo_original>
